<compile_context>
chip_gen: v7x
topology: tpu7x:2x2x1
jax: 0.10.0
libtpu: 0.0.40
codegen_flags: <defaults>
</compile_context>

<pallas_src>
import functools

import jax
import jax.numpy as jnp
from jax import lax
from jax.experimental import pallas as pl
from jax.experimental.pallas import tpu as pltpu


def _round_up(x, m):
    return ((x + m - 1) // m) * m


@functools.lru_cache(maxsize=None)
def _vmem_capacity_bytes():
    """Physical VMEM per TensorCore; conservative 64 MiB (v7x) fallback."""
    try:
        info = pltpu.get_tpu_info()
        for attr in ("vmem_capacity_bytes", "vmem_size_bytes", "vmem_bytes"):
            v = getattr(info, attr, None)
            if v:
                return int(v)
    except Exception:
        pass
    return 64 * 1024 * 1024


@functools.lru_cache(maxsize=None)
def _num_tensorcores():
    """2 TensorCores per chip on v7x, 1 on v5e / v6e."""
    try:
        kind = (getattr(jax.devices()[0], "device_kind", "") or "").lower()
        if "v7" in kind:
            return 2
    except Exception:
        pass
    return 1


def _vmem_limit_bytes():
    # Leave ~15% headroom below physical capacity on every generation.
    return int(_vmem_capacity_bytes() * 0.85)


def _pick_tile(dim, desired, align):
    """Tile size: multiple of `align`, <= desired; prefer exact divisors of
    `dim` (avoids jnp.pad copies) unless that would shrink the tile > 2x."""
    t = min(desired, _round_up(dim, align))
    if dim % align == 0:
        for cand in range(t, 0, -align):
            if dim % cand == 0:
                if 2 * cand >= t:
                    return cand
                break
    return t


# ----------------------------------------------------------------------------
# Generic tiled matmul + bias kernel (input projection and final FC).
# Grid (M/tm, N/tn, K/tk); bf16 MXU operands, f32 VMEM accumulator,
# lane-dense 128-multiple output tiles.
# ----------------------------------------------------------------------------
def _mm_bias_kernel(x_ref, w_ref, b_ref, o_ref, acc_ref):
    @pl.when(pl.program_id(2) == 0)
    def _():
        acc_ref[...] = jnp.zeros_like(acc_ref)

    acc_ref[...] += jnp.dot(x_ref[...], w_ref[...],
                            preferred_element_type=jnp.float32)

    @pl.when(pl.program_id(2) == pl.num_programs(2) - 1)
    def _():
        o_ref[...] = (acc_ref[...] + b_ref[...]).astype(o_ref.dtype)


def matmul_bias(x, w, b, *, out_dtype=jnp.float32, tm=256, tn=256, tk=512):
    """Computes x @ w + b with bf16 MXU inputs and f32 accumulation.
    x:(M,K)  w:(K,N)  b:(1,N) f32  ->  (M,N) out_dtype."""
    M, K = x.shape
    _, N = w.shape

    # bf16 MXU operands (halves DMA bytes and unlocks the full MXU path).
    if x.dtype != jnp.bfloat16:
        x = x.astype(jnp.bfloat16)
    if w.dtype != jnp.bfloat16:
        w = w.astype(jnp.bfloat16)
    b = b.astype(jnp.float32)

    tm = _pick_tile(M, tm, 8)
    tn = _pick_tile(N, tn, 128)
    tk = _pick_tile(K, tk, 128)
    Mp, Kp, Np = _round_up(M, tm), _round_up(K, tk), _round_up(N, tn)

    xp = x if (Mp == M and Kp == K) else jnp.pad(x, ((0, Mp - M), (0, Kp - K)))
    wp = w if (Kp == K and Np == N) else jnp.pad(w, ((0, Kp - K), (0, Np - N)))
    bp = b if Np == N else jnp.pad(b, ((0, 0), (0, Np - N)))

    cost = pl.CostEstimate(
        flops=2 * M * N * K,
        transcendentals=0,
        bytes_accessed=(M * K * 2 + K * N * 2 + N * 4
                        + M * N * jnp.dtype(out_dtype).itemsize),
    )

    out = pl.pallas_call(
        _mm_bias_kernel,
        out_shape=jax.ShapeDtypeStruct((Mp, Np), out_dtype),
        grid_spec=pltpu.PrefetchScalarGridSpec(
            num_scalar_prefetch=0,
            grid=(Mp // tm, Np // tn, Kp // tk),
            in_specs=[
                pl.BlockSpec((tm, tk), lambda i, j, k: (i, k)),
                pl.BlockSpec((tk, tn), lambda i, j, k: (k, j)),
                pl.BlockSpec((1, tn), lambda i, j, k: (0, j)),
            ],
            out_specs=pl.BlockSpec((tm, tn), lambda i, j, k: (i, j)),
            scratch_shapes=[pltpu.VMEM((tm, tn), jnp.float32)],
        ),
        compiler_params=pltpu.CompilerParams(
            dimension_semantics=("parallel", "parallel", "arbitrary"),
            vmem_limit_bytes=_vmem_limit_bytes()),
        cost_estimate=cost,
    )(xp, wp, bp)
    if Mp != M or Np != N:
        out = out[:M, :N]
    return out


# ----------------------------------------------------------------------------
# LSTM recurrence kernel.  gx = precomputed (x_t @ W_ih + b) for all steps
# (bf16).  Grid (B_blocks, T_blocks); t_blk steps per grid invocation.
# Gate order matches PyTorch: i, f, g, o.
# ----------------------------------------------------------------------------
def _sigmoid(x):
    # 1 EUP op per element instead of exp + divide (recurrence is EUP/latency
    # bound at small batch).  Mathematically identical to logistic sigmoid.
    return 0.5 * jnp.tanh(0.5 * x) + 0.5


def _lstm_rec_kernel(gx_ref, whh_ref, y_ref, hT_ref, cT_ref, h_sc, c_sc,
                     *, t_blk, unroll):
    t = pl.program_id(1)

    @pl.when(t == 0)
    def _():
        # Zero initial state (PyTorch hidden=None path); reset per batch block.
        # NOTE: relies on the time axis being the innermost ("arbitrary",
        # fastest-iterating) grid axis; never mark it "parallel".
        h_sc[...] = jnp.zeros_like(h_sc)
        c_sc[...] = jnp.zeros_like(c_sc)

    H = h_sc.shape[-1]
    whh = whh_ref[...]                       # bf16, resident across the block

    def step(i, carry):
        h, c = carry
        # Only the small recurrent matmul stays on the serial critical path;
        # gate math is kept in f32 (v5e VPU/EUP have no bf16 path).
        gates = gx_ref[i].astype(jnp.float32) + jnp.dot(
            h.astype(jnp.bfloat16), whh, preferred_element_type=jnp.float32)
        i_g = _sigmoid(gates[:, 0 * H:1 * H])
        f_g = _sigmoid(gates[:, 1 * H:2 * H])
        g_g = jnp.tanh(gates[:, 2 * H:3 * H])
        o_g = _sigmoid(gates[:, 3 * H:4 * H])
        c_new = f_g * c + i_g * g_g
        h_new = o_g * jnp.tanh(c_new)
        y_ref[i] = h_new.astype(y_ref.dtype)
        return h_new, c_new

    h, c = lax.fori_loop(0, t_blk, step, (h_sc[...], c_sc[...]), unroll=unroll)
    h_sc[...] = h
    c_sc[...] = c

    @pl.when(t == pl.num_programs(1) - 1)
    def _():
        hT_ref[...] = h
        cT_ref[...] = c


def _choose_rec_blocks(T, B, H):
    """VMEM-budget-driven (t_blk, b_blk) selection (~60% of physical VMEM)."""
    budget = int(_vmem_capacity_bytes() * 0.6)

    def vmem_bytes(t_blk, b_blk):
        gx = 2 * t_blk * b_blk * 4 * H * 2     # bf16 gx, double-buffered
        y = 2 * t_blk * b_blk * H * 2          # bf16 y, double-buffered
        whh = 2 * H * 4 * H * 2                # bf16 W_hh, double-buffered
        hc = 2 * b_blk * H * 4                 # f32 h/c scratch
        return gx + y + whh + hc

    # Split the batch only on 2-TensorCore parts (v7x); on v5e/v6e the
    # "parallel" B axis is a serial loop and splitting is pure overhead.
    b_blk = B
    if _num_tensorcores() >= 2 and B % 16 == 0 and B >= 16:
        b_blk = B // 2
    while vmem_bytes(1, b_blk) > budget and b_blk % 16 == 0:
        b_blk //= 2                            # stays a multiple of 8 & divisor of B

    t_blk = 1
    for cand in (16, 8, 4, 2, 1):              # powers of 2 -> clean unroll
        if T % cand == 0 and vmem_bytes(cand, b_blk) <= budget:
            t_blk = cand
            break
    # TODO(synk): prime T falls back to t_blk=1 (correct, ~0.35us/step grid
    #             overhead); could pad T instead.
    return t_blk, b_blk


def lstm_recurrence(gx_tm, w_hh):
    """gx_tm: (T, B, 4H) time-major precomputed input gates (bf16).
    w_hh: (H, 4H).  Returns (y_tm (T,B,H) bf16, h_T (B,H) f32, c_T (B,H) f32)."""
    T, B, G = gx_tm.shape
    H = G // 4
    if w_hh.dtype != jnp.bfloat16:
        w_hh = w_hh.astype(jnp.bfloat16)

    t_blk, b_blk = _choose_rec_blocks(T, B, H)
    unroll = t_blk if t_blk <= 8 else 8
    kernel = functools.partial(_lstm_rec_kernel, t_blk=t_blk, unroll=unroll)

    cost = pl.CostEstimate(
        flops=2 * T * B * H * 4 * H + 12 * T * B * H,
        transcendentals=5 * T * B * H,
        bytes_accessed=(T * B * 4 * H * 2 + T * B * H * 2
                        + H * 4 * H * 2 + 2 * B * H * 4),
    )

    return pl.pallas_call(
        kernel,
        out_shape=(
            jax.ShapeDtypeStruct((T, B, H), jnp.bfloat16),
            jax.ShapeDtypeStruct((B, H), jnp.float32),
            jax.ShapeDtypeStruct((B, H), jnp.float32),
        ),
        grid_spec=pltpu.PrefetchScalarGridSpec(
            num_scalar_prefetch=0,
            grid=(B // b_blk, T // t_blk),
            in_specs=[
                pl.BlockSpec((t_blk, b_blk, 4 * H), lambda b, t: (t, b, 0)),
                pl.BlockSpec((H, 4 * H), lambda b, t: (0, 0)),   # W_hh (const)
            ],
            out_specs=[
                pl.BlockSpec((t_blk, b_blk, H), lambda b, t: (t, b, 0)),
                pl.BlockSpec((b_blk, H), lambda b, t: (b, 0)),
                pl.BlockSpec((b_blk, H), lambda b, t: (b, 0)),
            ],
            scratch_shapes=[
                pltpu.VMEM((b_blk, H), jnp.float32),
                pltpu.VMEM((b_blk, H), jnp.float32),
            ],
        ),
        compiler_params=pltpu.CompilerParams(
            dimension_semantics=("parallel", "arbitrary"),
            vmem_limit_bytes=_vmem_limit_bytes()),
        cost_estimate=cost,
    )(gx_tm, w_hh)


# ----------------------------------------------------------------------------
# Parameter construction (deterministic, mimics PyTorch init shapes).
# ----------------------------------------------------------------------------
def init_params(key, input_size, hidden_size, output_size, n_layers):
    H = hidden_size
    k = 1.0 / jnp.sqrt(jnp.float32(H))
    keys = jax.random.split(key, 2 + 4 * n_layers + 2)

    params = {}
    emb = jax.random.normal(keys[0], (input_size, H), jnp.float32)
    emb = emb.at[0].set(0.0)                       # padding_idx = 0
    params["embedding"] = emb

    for l in range(n_layers):
        kb = 2 + 4 * l
        # stored transposed relative to PyTorch: (in, 4H) so we can do x @ W
        params[f"w_ih_{l}"] = jax.random.uniform(
            keys[kb + 0], (H, 4 * H), jnp.float32, -k, k)
        params[f"w_hh_{l}"] = jax.random.uniform(
            keys[kb + 1], (H, 4 * H), jnp.float32, -k, k)
        b_ih = jax.random.uniform(keys[kb + 2], (4 * H,), jnp.float32, -k, k)
        b_hh = jax.random.uniform(keys[kb + 3], (4 * H,), jnp.float32, -k, k)
        params[f"b_{l}"] = (b_ih + b_hh).reshape(1, 4 * H)

    params["fc_w"] = jax.random.uniform(
        keys[-2], (H, output_size), jnp.float32, -k, k)   # (H, O) = W^T
    params["fc_b"] = jax.random.uniform(
        keys[-1], (1, output_size), jnp.float32, -k, k)
    return params


# ----------------------------------------------------------------------------
# Full forward pass (mirrors LSTMLanguageModel.forward, eval mode).
# ----------------------------------------------------------------------------
@functools.partial(jax.jit, static_argnames=("n_layers", "hidden_size"))
def lstm_lm_forward(params, input_seq, n_layers, hidden_size):
    B, T = input_seq.shape
    H = hidden_size

    # Embedding gathered directly TIME-MAJOR (no (B,T,H) HBM transpose).
    x_tm = jnp.take(params["embedding"], input_seq.T, axis=0)     # (T, B, H)

    h_finals, c_finals = [], []
    for l in range(n_layers):
        # Hoisted input projection: one big MXU matmul over all T*B rows.
        gx = matmul_bias(x_tm.reshape(T * B, H),
                         params[f"w_ih_{l}"], params[f"b_{l}"],
                         out_dtype=jnp.bfloat16)                  # (T*B, 4H)
        gx = gx.reshape(T, B, 4 * H)
        x_tm, h_T, c_T = lstm_recurrence(gx, params[f"w_hh_{l}"])
        h_finals.append(h_T)
        c_finals.append(c_T)

    hidden = jnp.stack(h_finals, axis=0)                          # (L, B, H)
    cell = jnp.stack(c_finals, axis=0)                            # (L, B, H)

    # Small bf16 reorder so the flatten matches
    # output.contiguous().view(-1, hidden_size) (batch-major rows).
    out_bt = jnp.transpose(x_tm, (1, 0, 2)).reshape(B * T, H)

    # Dropout(0.3): identity (eval mode).
    logits = matmul_bias(out_bt, params["fc_w"], params["fc_b"],
                         out_dtype=jnp.float32)                   # (B*T, O)
    return logits, (hidden, cell)


# ----------------------------------------------------------------------------
# Pure-JAX f32 reference (for correctness check only).
# ----------------------------------------------------------------------------
def _ref_forward(params, input_seq, n_layers, H):
    B, T = input_seq.shape
    x = jnp.take(params["embedding"], input_seq, axis=0)          # (B, T, H)
    hs, cs = [], []
    for l in range(n_layers):
        w_ih, w_hh, b = params[f"w_ih_{l}"], params[f"w_hh_{l}"], params[f"b_{l}"]
        h = jnp.zeros((B, H), jnp.float32)
        c = jnp.zeros((B, H), jnp.float32)
        ys = []
        for t in range(T):
            g = x[:, t] @ w_ih + h @ w_hh + b[0]
            i_g = jax.nn.sigmoid(g[:, :H])
            f_g = jax.nn.sigmoid(g[:, H:2 * H])
            g_g = jnp.tanh(g[:, 2 * H:3 * H])
            o_g = jax.nn.sigmoid(g[:, 3 * H:])
            c = f_g * c + i_g * g_g
            h = o_g * jnp.tanh(c)
            ys.append(h)
        x = jnp.stack(ys, axis=1)                                  # (B, T, H)
        hs.append(h)
        cs.append(c)
    out = x.reshape(B * T, H)
    logits = out @ params["fc_w"] + params["fc_b"][0]
    return logits, (jnp.stack(hs), jnp.stack(cs))


if __name__ == "__main__":
    INPUT_SIZE = 16      # vocab size
    HIDDEN_SIZE = 128    # multiple of 128 -> lane-aligned gate slices
    OUTPUT_SIZE = 16
    N_LAYERS = 2
    B, T = 2, 8

    key = jax.random.PRNGKey(0)
    pkey, dkey = jax.random.split(key)
    params = init_params(pkey, INPUT_SIZE, HIDDEN_SIZE, OUTPUT_SIZE, N_LAYERS)
    input_seq = jax.random.randint(dkey, (B, T), 0, INPUT_SIZE, jnp.int32)

    logits, (hidden, cell) = lstm_lm_forward(
        params, input_seq, n_layers=N_LAYERS, hidden_size=HIDDEN_SIZE)
    jax.block_until_ready((logits, hidden, cell))

    assert logits.shape == (B * T, OUTPUT_SIZE)
    assert hidden.shape == (N_LAYERS, B, HIDDEN_SIZE)
    assert cell.shape == (N_LAYERS, B, HIDDEN_SIZE)

    # Numerical check against a plain-JAX f32 reference (kernel uses bf16 MXU
    # inputs with f32 accumulation -> loosened tolerance per review).
    ref_logits, (ref_h, ref_c) = _ref_forward(
        params, input_seq, N_LAYERS, HIDDEN_SIZE)
    assert jnp.allclose(logits, ref_logits, atol=5e-2, rtol=5e-2)
    assert jnp.allclose(hidden, ref_h, atol=5e-2, rtol=5e-2)
    assert jnp.allclose(cell, ref_c, atol=5e-2, rtol=5e-2)

    print("KERNEL_OK")
</pallas_src>

<mosaic_0001>
module attributes {stable_mosaic.version = 11 : i64} {
  func.func @_mm_bias_kernel(%arg0: i32, %arg1: i32, %arg2: i32, %arg3: memref<16x128xbf16, #tpu.memory_space<vmem>>, %arg4: memref<128x256xbf16, #tpu.memory_space<vmem>>, %arg5: memref<1x256xf32, #tpu.memory_space<vmem>>, %arg6: memref<16x256xbf16, #tpu.memory_space<vmem>>, %arg7: memref<16x256xf32, #tpu.memory_space<vmem>>) attributes {dimension_semantics = [#tpu.dimension_semantics<parallel>, #tpu.dimension_semantics<parallel>, #tpu.dimension_semantics<arbitrary>], iteration_bounds = array<i64: 1, 2, 1>, scalar_prefetch = 0 : i64, scratch_operands = 1 : i64, tpu.core_type = #tpu.core_type<tc>, window_params = [{transform_indices = @transform_0, window_bounds = array<i64: 16, 128>}, {transform_indices = @transform_1, window_bounds = array<i64: 128, 256>}, {transform_indices = @transform_2, window_bounds = array<i64: 1, 256>}, {transform_indices = @transform_3, window_bounds = array<i64: 16, 256>}]} {
    %c0_i32 = arith.constant 0 : i32
    %0 = arith.cmpi eq, %arg2, %c0_i32 : i32
    %1 = arith.extui %0 : i1 to i32
    %c0_i32_0 = arith.constant 0 : i32
    %2 = arith.cmpi ne, %1, %c0_i32_0 : i32
    scf.if %2 {
      %cst_10 = arith.constant 0.000000e+00 : f32
      %12 = vector.broadcast %cst_10 : f32 to vector<16x256xf32>
      %c0_11 = arith.constant 0 : index
      %c0_12 = arith.constant 0 : index
      %13 = vector.load %arg7[%c0_11, %c0_12] : memref<16x256xf32, #tpu.memory_space<vmem>>, vector<16x256xf32>
      tpu.vector_store %arg7[%c0_11, %c0_12], %12 {strides = array<i32>} : memref<16x256xf32, #tpu.memory_space<vmem>>, vector<16x256xf32>,
    } else {
    }
    %c0 = arith.constant 0 : index
    %c0_1 = arith.constant 0 : index
    %3 = vector.load %arg7[%c0, %c0_1] : memref<16x256xf32, #tpu.memory_space<vmem>>, vector<16x256xf32>
    %c0_2 = arith.constant 0 : index
    %c0_3 = arith.constant 0 : index
    %4 = vector.load %arg3[%c0_2, %c0_3] : memref<16x128xbf16, #tpu.memory_space<vmem>>, vector<16x128xbf16>
    %c0_4 = arith.constant 0 : index
    %c0_5 = arith.constant 0 : index
    %5 = vector.load %arg4[%c0_4, %c0_5] : memref<128x256xbf16, #tpu.memory_space<vmem>>, vector<128x256xbf16>
    %cst = arith.constant dense<0.000000e+00> : vector<16x256xf32>
    %6 = tpu.matmul %4, %5, %cst {dimension_numbers = #tpu.dot_dimension_numbers<[1], [0], [0], [1], [0, 0, 1, 1], [], []>} : vector<16x128xbf16>, vector<128x256xbf16>, vector<16x256xf32> -> vector<16x256xf32>
    %7 = arith.addf %3, %6 : vector<16x256xf32>
    %c0_6 = arith.constant 0 : index
    %c0_7 = arith.constant 0 : index
    %8 = vector.load %arg7[%c0_6, %c0_7] : memref<16x256xf32, #tpu.memory_space<vmem>>, vector<16x256xf32>
    tpu.vector_store %arg7[%c0_6, %c0_7], %7 {strides = array<i32>} : memref<16x256xf32, #tpu.memory_space<vmem>>, vector<16x256xf32>,
    %c0_i32_8 = arith.constant 0 : i32
    %9 = arith.cmpi eq, %arg2, %c0_i32_8 : i32
    %10 = arith.extui %9 : i1 to i32
    %c0_i32_9 = arith.constant 0 : i32
    %11 = arith.cmpi ne, %10, %c0_i32_9 : i32
    scf.if %11 {
      %c0_10 = arith.constant 0 : index
      %c0_11 = arith.constant 0 : index
      %12 = vector.load %arg7[%c0_10, %c0_11] : memref<16x256xf32, #tpu.memory_space<vmem>>, vector<16x256xf32>
      %c0_12 = arith.constant 0 : index
      %c0_13 = arith.constant 0 : index
      %13 = vector.load %arg5[%c0_12, %c0_13] : memref<1x256xf32, #tpu.memory_space<vmem>>, vector<1x256xf32>
      %14 = vector.broadcast %13 : vector<1x256xf32> to vector<16x256xf32>
      %15 = arith.addf %12, %14 : vector<16x256xf32>
      %16 = arith.truncf %15 : vector<16x256xf32> to vector<16x256xbf16>
      %c0_14 = arith.constant 0 : index
      %c0_15 = arith.constant 0 : index
      %17 = vector.load %arg6[%c0_14, %c0_15] : memref<16x256xbf16, #tpu.memory_space<vmem>>, vector<16x256xbf16>
      tpu.vector_store %arg6[%c0_14, %c0_15], %16 {strides = array<i32>} : memref<16x256xbf16, #tpu.memory_space<vmem>>, vector<16x256xbf16>,
    } else {
    }
    return
  }
  func.func @transform_0(%arg0: i32, %arg1: i32, %arg2: i32) -> (i32, i32) {
    %c0_i32 = arith.constant 0 : i32
    return %arg0, %arg2 : i32, i32
  }
  func.func @transform_1(%arg0: i32, %arg1: i32, %arg2: i32) -> (i32, i32) {
    %c0_i32 = arith.constant 0 : i32
    return %arg2, %arg1 : i32, i32
  }
  func.func @transform_2(%arg0: i32, %arg1: i32, %arg2: i32) -> (i32, i32) {
    %c0_i32 = arith.constant 0 : i32
    %c0_i32_0 = arith.constant 0 : i32
    return %c0_i32, %arg1 : i32, i32
  }
  func.func @transform_3(%arg0: i32, %arg1: i32, %arg2: i32) -> (i32, i32) {
    %c0_i32 = arith.constant 0 : i32
    return %arg0, %arg1 : i32, i32
  }
}

module attributes {stable_mosaic.version = 11 : i64} {
  func.func @_lstm_rec_kernel(%arg0: i32, %arg1: i32, %arg2: memref<8x2x512xbf16, #tpu.memory_space<vmem>>, %arg3: memref<128x512xbf16, #tpu.memory_space<vmem>>, %arg4: memref<8x2x128xbf16, #tpu.memory_space<vmem>>, %arg5: memref<2x128xf32, #tpu.memory_space<vmem>>, %arg6: memref<2x128xf32, #tpu.memory_space<vmem>>, %arg7: memref<2x128xf32, #tpu.memory_space<vmem>>, %arg8: memref<2x128xf32, #tpu.memory_space<vmem>>) attributes {dimension_semantics = [#tpu.dimension_semantics<parallel>, #tpu.dimension_semantics<arbitrary>], iteration_bounds = array<i64: 1, 1>, scalar_prefetch = 0 : i64, scratch_operands = 2 : i64, tpu.core_type = #tpu.core_type<tc>, window_params = [{transform_indices = @transform_0, window_bounds = array<i64: 8, 2, 512>}, {pipeline_mode = #tpu.pipeline_mode<synchronous>, transform_indices = @transform_1, window_bounds = array<i64: 128, 512>}, {transform_indices = @transform_2, window_bounds = array<i64: 8, 2, 128>}, {transform_indices = @transform_3, window_bounds = array<i64: 2, 128>}, {transform_indices = @transform_4, window_bounds = array<i64: 2, 128>}]} {
    %c0_i32 = arith.constant 0 : i32
    %0 = arith.cmpi eq, %arg1, %c0_i32 : i32
    %1 = arith.extui %0 : i1 to i32
    %c0_i32_0 = arith.constant 0 : i32
    %2 = arith.cmpi ne, %1, %c0_i32_0 : i32
    scf.if %2 {
      %cst_124 = arith.constant 0.000000e+00 : f32
      %355 = vector.broadcast %cst_124 : f32 to vector<2x128xf32>
      %c0_125 = arith.constant 0 : index
      %c0_126 = arith.constant 0 : index
      %356 = vector.load %arg7[%c0_125, %c0_126] : memref<2x128xf32, #tpu.memory_space<vmem>>, vector<2x128xf32>
      tpu.vector_store %arg7[%c0_125, %c0_126], %355 {strides = array<i32>} : memref<2x128xf32, #tpu.memory_space<vmem>>, vector<2x128xf32>,
      %cst_127 = arith.constant 0.000000e+00 : f32
      %357 = vector.broadcast %cst_127 : f32 to vector<2x128xf32>
      %c0_128 = arith.constant 0 : index
      %c0_129 = arith.constant 0 : index
      %358 = vector.load %arg8[%c0_128, %c0_129] : memref<2x128xf32, #tpu.memory_space<vmem>>, vector<2x128xf32>
      tpu.vector_store %arg8[%c0_128, %c0_129], %357 {strides = array<i32>} : memref<2x128xf32, #tpu.memory_space<vmem>>, vector<2x128xf32>,
    } else {
    }
    %c0 = arith.constant 0 : index
    %c0_1 = arith.constant 0 : index
    %3 = vector.load %arg3[%c0, %c0_1] : memref<128x512xbf16, #tpu.memory_space<vmem>>, vector<128x512xbf16>
    %c0_2 = arith.constant 0 : index
    %c0_3 = arith.constant 0 : index
    %4 = vector.load %arg7[%c0_2, %c0_3] : memref<2x128xf32, #tpu.memory_space<vmem>>, vector<2x128xf32>
    %c0_4 = arith.constant 0 : index
    %c0_5 = arith.constant 0 : index
    %5 = vector.load %arg8[%c0_4, %c0_5] : memref<2x128xf32, #tpu.memory_space<vmem>>, vector<2x128xf32>
    %c0_i32_6 = arith.constant 0 : i32
    %6 = arith.index_cast %c0_i32_6 : i32 to index
    %c0_7 = arith.constant 0 : index
    %c0_8 = arith.constant 0 : index
    %7 = vector.load %arg2[%6, %c0_7, %c0_8] : memref<8x2x512xbf16, #tpu.memory_space<vmem>>, vector<1x2x512xbf16>
    %8 = vector.shape_cast %7 : vector<1x2x512xbf16> to vector<2x512xbf16>
    %9 = arith.extf %8 : vector<2x512xbf16> to vector<2x512xf32>
    %10 = arith.truncf %4 : vector<2x128xf32> to vector<2x128xbf16>
    %cst = arith.constant dense<0.000000e+00> : vector<2x512xf32>
    %11 = tpu.matmul %10, %3, %cst {dimension_numbers = #tpu.dot_dimension_numbers<[1], [0], [0], [1], [0, 0, 1, 1], [], []>} : vector<2x128xbf16>, vector<128x512xbf16>, vector<2x512xf32> -> vector<2x512xf32>
    %12 = arith.addf %9, %11 : vector<2x512xf32>
    %13 = vector.extract_strided_slice %12 {offsets = [0, 0], sizes = [2, 128], strides = [1, 1]} : vector<2x512xf32> to vector<2x128xf32>
    %cst_9 = arith.constant 5.000000e-01 : f32
    %14 = vector.broadcast %cst_9 : f32 to vector<2x128xf32>
    %15 = arith.mulf %14, %13 : vector<2x128xf32>
    %16 = math.tanh %15 : vector<2x128xf32>
    %cst_10 = arith.constant 5.000000e-01 : f32
    %17 = vector.broadcast %cst_10 : f32 to vector<2x128xf32>
    %18 = arith.mulf %17, %16 : vector<2x128xf32>
    %cst_11 = arith.constant 5.000000e-01 : f32
    %19 = vector.broadcast %cst_11 : f32 to vector<2x128xf32>
    %20 = arith.addf %18, %19 : vector<2x128xf32>
    %21 = vector.extract_strided_slice %12 {offsets = [0, 128], sizes = [2, 128], strides = [1, 1]} : vector<2x512xf32> to vector<2x128xf32>
    %cst_12 = arith.constant 5.000000e-01 : f32
    %22 = vector.broadcast %cst_12 : f32 to vector<2x128xf32>
    %23 = arith.mulf %22, %21 : vector<2x128xf32>
    %24 = math.tanh %23 : vector<2x128xf32>
    %cst_13 = arith.constant 5.000000e-01 : f32
    %25 = vector.broadcast %cst_13 : f32 to vector<2x128xf32>
    %26 = arith.mulf %25, %24 : vector<2x128xf32>
    %cst_14 = arith.constant 5.000000e-01 : f32
    %27 = vector.broadcast %cst_14 : f32 to vector<2x128xf32>
    %28 = arith.addf %26, %27 : vector<2x128xf32>
    %29 = vector.extract_strided_slice %12 {offsets = [0, 256], sizes = [2, 128], strides = [1, 1]} : vector<2x512xf32> to vector<2x128xf32>
    %30 = math.tanh %29 : vector<2x128xf32>
    %31 = vector.extract_strided_slice %12 {offsets = [0, 384], sizes = [2, 128], strides = [1, 1]} : vector<2x512xf32> to vector<2x128xf32>
    %cst_15 = arith.constant 5.000000e-01 : f32
    %32 = vector.broadcast %cst_15 : f32 to vector<2x128xf32>
    %33 = arith.mulf %32, %31 : vector<2x128xf32>
    %34 = math.tanh %33 : vector<2x128xf32>
    %cst_16 = arith.constant 5.000000e-01 : f32
    %35 = vector.broadcast %cst_16 : f32 to vector<2x128xf32>
    %36 = arith.mulf %35, %34 : vector<2x128xf32>
    %cst_17 = arith.constant 5.000000e-01 : f32
    %37 = vector.broadcast %cst_17 : f32 to vector<2x128xf32>
    %38 = arith.addf %36, %37 : vector<2x128xf32>
    %39 = arith.mulf %28, %5 : vector<2x128xf32>
    %40 = arith.mulf %20, %30 : vector<2x128xf32>
    %41 = arith.addf %39, %40 : vector<2x128xf32>
    %42 = math.tanh %41 : vector<2x128xf32>
    %43 = arith.mulf %38, %42 : vector<2x128xf32>
    %44 = arith.truncf %43 : vector<2x128xf32> to vector<2x128xbf16>
    %45 = arith.index_cast %c0_i32_6 : i32 to index
    %c0_18 = arith.constant 0 : index
    %c0_19 = arith.constant 0 : index
    %46 = vector.load %arg4[%45, %c0_18, %c0_19] : memref<8x2x128xbf16, #tpu.memory_space<vmem>>, vector<1x2x128xbf16>
    %47 = vector.shape_cast %46 : vector<1x2x128xbf16> to vector<2x128xbf16>
    %48 = vector.shape_cast %44 : vector<2x128xbf16> to vector<1x2x128xbf16>
    tpu.vector_store %arg4[%45, %c0_18, %c0_19], %48 {strides = array<i32>} : memref<8x2x128xbf16, #tpu.memory_space<vmem>>, vector<1x2x128xbf16>,
    %c1_i32 = arith.constant 1 : i32
    %49 = arith.index_cast %c1_i32 : i32 to index
    %c0_20 = arith.constant 0 : index
    %c0_21 = arith.constant 0 : index
    %50 = vector.load %arg2[%49, %c0_20, %c0_21] : memref<8x2x512xbf16, #tpu.memory_space<vmem>>, vector<1x2x512xbf16>
    %51 = vector.shape_cast %50 : vector<1x2x512xbf16> to vector<2x512xbf16>
    %52 = arith.extf %51 : vector<2x512xbf16> to vector<2x512xf32>
    %53 = arith.truncf %43 : vector<2x128xf32> to vector<2x128xbf16>
    %cst_22 = arith.constant dense<0.000000e+00> : vector<2x512xf32>
    %54 = tpu.matmul %53, %3, %cst_22 {dimension_numbers = #tpu.dot_dimension_numbers<[1], [0], [0], [1], [0, 0, 1, 1], [], []>} : vector<2x128xbf16>, vector<128x512xbf16>, vector<2x512xf32> -> vector<2x512xf32>
    %55 = arith.addf %52, %54 : vector<2x512xf32>
    %56 = vector.extract_strided_slice %55 {offsets = [0, 0], sizes = [2, 128], strides = [1, 1]} : vector<2x512xf32> to vector<2x128xf32>
    %cst_23 = arith.constant 5.000000e-01 : f32
    %57 = vector.broadcast %cst_23 : f32 to vector<2x128xf32>
    %58 = arith.mulf %57, %56 : vector<2x128xf32>
    %59 = math.tanh %58 : vector<2x128xf32>
    %cst_24 = arith.constant 5.000000e-01 : f32
    %60 = vector.broadcast %cst_24 : f32 to vector<2x128xf32>
    %61 = arith.mulf %60, %59 : vector<2x128xf32>
    %cst_25 = arith.constant 5.000000e-01 : f32
    %62 = vector.broadcast %cst_25 : f32 to vector<2x128xf32>
    %63 = arith.addf %61, %62 : vector<2x128xf32>
    %64 = vector.extract_strided_slice %55 {offsets = [0, 128], sizes = [2, 128], strides = [1, 1]} : vector<2x512xf32> to vector<2x128xf32>
    %cst_26 = arith.constant 5.000000e-01 : f32
    %65 = vector.broadcast %cst_26 : f32 to vector<2x128xf32>
    %66 = arith.mulf %65, %64 : vector<2x128xf32>
    %67 = math.tanh %66 : vector<2x128xf32>
    %cst_27 = arith.constant 5.000000e-01 : f32
    %68 = vector.broadcast %cst_27 : f32 to vector<2x128xf32>
    %69 = arith.mulf %68, %67 : vector<2x128xf32>
    %cst_28 = arith.constant 5.000000e-01 : f32
    %70 = vector.broadcast %cst_28 : f32 to vector<2x128xf32>
    %71 = arith.addf %69, %70 : vector<2x128xf32>
    %72 = vector.extract_strided_slice %55 {offsets = [0, 256], sizes = [2, 128], strides = [1, 1]} : vector<2x512xf32> to vector<2x128xf32>
    %73 = math.tanh %72 : vector<2x128xf32>
    %74 = vector.extract_strided_slice %55 {offsets = [0, 384], sizes = [2, 128], strides = [1, 1]} : vector<2x512xf32> to vector<2x128xf32>
    %cst_29 = arith.constant 5.000000e-01 : f32
    %75 = vector.broadcast %cst_29 : f32 to vector<2x128xf32>
    %76 = arith.mulf %75, %74 : vector<2x128xf32>
    %77 = math.tanh %76 : vector<2x128xf32>
    %cst_30 = arith.constant 5.000000e-01 : f32
    %78 = vector.broadcast %cst_30 : f32 to vector<2x128xf32>
    %79 = arith.mulf %78, %77 : vector<2x128xf32>
    %cst_31 = arith.constant 5.000000e-01 : f32
    %80 = vector.broadcast %cst_31 : f32 to vector<2x128xf32>
    %81 = arith.addf %79, %80 : vector<2x128xf32>
    %82 = arith.mulf %71, %41 : vector<2x128xf32>
    %83 = arith.mulf %63, %73 : vector<2x128xf32>
    %84 = arith.addf %82, %83 : vector<2x128xf32>
    %85 = math.tanh %84 : vector<2x128xf32>
    %86 = arith.mulf %81, %85 : vector<2x128xf32>
    %87 = arith.truncf %86 : vector<2x128xf32> to vector<2x128xbf16>
    %88 = arith.index_cast %c1_i32 : i32 to index
    %c0_32 = arith.constant 0 : index
    %c0_33 = arith.constant 0 : index
    %89 = vector.load %arg4[%88, %c0_32, %c0_33] : memref<8x2x128xbf16, #tpu.memory_space<vmem>>, vector<1x2x128xbf16>
    %90 = vector.shape_cast %89 : vector<1x2x128xbf16> to vector<2x128xbf16>
    %91 = vector.shape_cast %87 : vector<2x128xbf16> to vector<1x2x128xbf16>
    tpu.vector_store %arg4[%88, %c0_32, %c0_33], %91 {strides = array<i32>} : memref<8x2x128xbf16, #tpu.memory_space<vmem>>, vector<1x2x128xbf16>,
    %c2_i32 = arith.constant 2 : i32
    %92 = arith.index_cast %c2_i32 : i32 to index
    %c0_34 = arith.constant 0 : index
    %c0_35 = arith.constant 0 : index
    %93 = vector.load %arg2[%92, %c0_34, %c0_35] : memref<8x2x512xbf16, #tpu.memory_space<vmem>>, vector<1x2x512xbf16>
    %94 = vector.shape_cast %93 : vector<1x2x512xbf16> to vector<2x512xbf16>
    %95 = arith.extf %94 : vector<2x512xbf16> to vector<2x512xf32>
    %96 = arith.truncf %86 : vector<2x128xf32> to vector<2x128xbf16>
    %cst_36 = arith.constant dense<0.000000e+00> : vector<2x512xf32>
    %97 = tpu.matmul %96, %3, %cst_36 {dimension_numbers = #tpu.dot_dimension_numbers<[1], [0], [0], [1], [0, 0, 1, 1], [], []>} : vector<2x128xbf16>, vector<128x512xbf16>, vector<2x512xf32> -> vector<2x512xf32>
    %98 = arith.addf %95, %97 : vector<2x512xf32>
    %99 = vector.extract_strided_slice %98 {offsets = [0, 0], sizes = [2, 128], strides = [1, 1]} : vector<2x512xf32> to vector<2x128xf32>
    %cst_37 = arith.constant 5.000000e-01 : f32
    %100 = vector.broadcast %cst_37 : f32 to vector<2x128xf32>
    %101 = arith.mulf %100, %99 : vector<2x128xf32>
    %102 = math.tanh %101 : vector<2x128xf32>
    %cst_38 = arith.constant 5.000000e-01 : f32
    %103 = vector.broadcast %cst_38 : f32 to vector<2x128xf32>
    %104 = arith.mulf %103, %102 : vector<2x128xf32>
    %cst_39 = arith.constant 5.000000e-01 : f32
    %105 = vector.broadcast %cst_39 : f32 to vector<2x128xf32>
    %106 = arith.addf %104, %105 : vector<2x128xf32>
    %107 = vector.extract_strided_slice %98 {offsets = [0, 128], sizes = [2, 128], strides = [1, 1]} : vector<2x512xf32> to vector<2x128xf32>
    %cst_40 = arith.constant 5.000000e-01 : f32
    %108 = vector.broadcast %cst_40 : f32 to vector<2x128xf32>
    %109 = arith.mulf %108, %107 : vector<2x128xf32>
    %110 = math.tanh %109 : vector<2x128xf32>
    %cst_41 = arith.constant 5.000000e-01 : f32
    %111 = vector.broadcast %cst_41 : f32 to vector<2x128xf32>
    %112 = arith.mulf %111, %110 : vector<2x128xf32>
    %cst_42 = arith.constant 5.000000e-01 : f32
    %113 = vector.broadcast %cst_42 : f32 to vector<2x128xf32>
    %114 = arith.addf %112, %113 : vector<2x128xf32>
    %115 = vector.extract_strided_slice %98 {offsets = [0, 256], sizes = [2, 128], strides = [1, 1]} : vector<2x512xf32> to vector<2x128xf32>
    %116 = math.tanh %115 : vector<2x128xf32>
    %117 = vector.extract_strided_slice %98 {offsets = [0, 384], sizes = [2, 128], strides = [1, 1]} : vector<2x512xf32> to vector<2x128xf32>
    %cst_43 = arith.constant 5.000000e-01 : f32
    %118 = vector.broadcast %cst_43 : f32 to vector<2x128xf32>
    %119 = arith.mulf %118, %117 : vector<2x128xf32>
    %120 = math.tanh %119 : vector<2x128xf32>
    %cst_44 = arith.constant 5.000000e-01 : f32
    %121 = vector.broadcast %cst_44 : f32 to vector<2x128xf32>
    %122 = arith.mulf %121, %120 : vector<2x128xf32>
    %cst_45 = arith.constant 5.000000e-01 : f32
    %123 = vector.broadcast %cst_45 : f32 to vector<2x128xf32>
    %124 = arith.addf %122, %123 : vector<2x128xf32>
    %125 = arith.mulf %114, %84 : vector<2x128xf32>
    %126 = arith.mulf %106, %116 : vector<2x128xf32>
    %127 = arith.addf %125, %126 : vector<2x128xf32>
    %128 = math.tanh %127 : vector<2x128xf32>
    %129 = arith.mulf %124, %128 : vector<2x128xf32>
    %130 = arith.truncf %129 : vector<2x128xf32> to vector<2x128xbf16>
    %131 = arith.index_cast %c2_i32 : i32 to index
    %c0_46 = arith.constant 0 : index
    %c0_47 = arith.constant 0 : index
    %132 = vector.load %arg4[%131, %c0_46, %c0_47] : memref<8x2x128xbf16, #tpu.memory_space<vmem>>, vector<1x2x128xbf16>
    %133 = vector.shape_cast %132 : vector<1x2x128xbf16> to vector<2x128xbf16>
    %134 = vector.shape_cast %130 : vector<2x128xbf16> to vector<1x2x128xbf16>
    tpu.vector_store %arg4[%131, %c0_46, %c0_47], %134 {strides = array<i32>} : memref<8x2x128xbf16, #tpu.memory_space<vmem>>, vector<1x2x128xbf16>,
    %c3_i32 = arith.constant 3 : i32
    %135 = arith.index_cast %c3_i32 : i32 to index
    %c0_48 = arith.constant 0 : index
    %c0_49 = arith.constant 0 : index
    %136 = vector.load %arg2[%135, %c0_48, %c0_49] : memref<8x2x512xbf16, #tpu.memory_space<vmem>>, vector<1x2x512xbf16>
    %137 = vector.shape_cast %136 : vector<1x2x512xbf16> to vector<2x512xbf16>
    %138 = arith.extf %137 : vector<2x512xbf16> to vector<2x512xf32>
    %139 = arith.truncf %129 : vector<2x128xf32> to vector<2x128xbf16>
    %cst_50 = arith.constant dense<0.000000e+00> : vector<2x512xf32>
    %140 = tpu.matmul %139, %3, %cst_50 {dimension_numbers = #tpu.dot_dimension_numbers<[1], [0], [0], [1], [0, 0, 1, 1], [], []>} : vector<2x128xbf16>, vector<128x512xbf16>, vector<2x512xf32> -> vector<2x512xf32>
    %141 = arith.addf %138, %140 : vector<2x512xf32>
    %142 = vector.extract_strided_slice %141 {offsets = [0, 0], sizes = [2, 128], strides = [1, 1]} : vector<2x512xf32> to vector<2x128xf32>
    %cst_51 = arith.constant 5.000000e-01 : f32
    %143 = vector.broadcast %cst_51 : f32 to vector<2x128xf32>
    %144 = arith.mulf %143, %142 : vector<2x128xf32>
    %145 = math.tanh %144 : vector<2x128xf32>
    %cst_52 = arith.constant 5.000000e-01 : f32
    %146 = vector.broadcast %cst_52 : f32 to vector<2x128xf32>
    %147 = arith.mulf %146, %145 : vector<2x128xf32>
    %cst_53 = arith.constant 5.000000e-01 : f32
    %148 = vector.broadcast %cst_53 : f32 to vector<2x128xf32>
    %149 = arith.addf %147, %148 : vector<2x128xf32>
    %150 = vector.extract_strided_slice %141 {offsets = [0, 128], sizes = [2, 128], strides = [1, 1]} : vector<2x512xf32> to vector<2x128xf32>
    %cst_54 = arith.constant 5.000000e-01 : f32
    %151 = vector.broadcast %cst_54 : f32 to vector<2x128xf32>
    %152 = arith.mulf %151, %150 : vector<2x128xf32>
    %153 = math.tanh %152 : vector<2x128xf32>
    %cst_55 = arith.constant 5.000000e-01 : f32
    %154 = vector.broadcast %cst_55 : f32 to vector<2x128xf32>
    %155 = arith.mulf %154, %153 : vector<2x128xf32>
    %cst_56 = arith.constant 5.000000e-01 : f32
    %156 = vector.broadcast %cst_56 : f32 to vector<2x128xf32>
    %157 = arith.addf %155, %156 : vector<2x128xf32>
    %158 = vector.extract_strided_slice %141 {offsets = [0, 256], sizes = [2, 128], strides = [1, 1]} : vector<2x512xf32> to vector<2x128xf32>
    %159 = math.tanh %158 : vector<2x128xf32>
    %160 = vector.extract_strided_slice %141 {offsets = [0, 384], sizes = [2, 128], strides = [1, 1]} : vector<2x512xf32> to vector<2x128xf32>
    %cst_57 = arith.constant 5.000000e-01 : f32
    %161 = vector.broadcast %cst_57 : f32 to vector<2x128xf32>
    %162 = arith.mulf %161, %160 : vector<2x128xf32>
    %163 = math.tanh %162 : vector<2x128xf32>
    %cst_58 = arith.constant 5.000000e-01 : f32
    %164 = vector.broadcast %cst_58 : f32 to vector<2x128xf32>
    %165 = arith.mulf %164, %163 : vector<2x128xf32>
    %cst_59 = arith.constant 5.000000e-01 : f32
    %166 = vector.broadcast %cst_59 : f32 to vector<2x128xf32>
    %167 = arith.addf %165, %166 : vector<2x128xf32>
    %168 = arith.mulf %157, %127 : vector<2x128xf32>
    %169 = arith.mulf %149, %159 : vector<2x128xf32>
    %170 = arith.addf %168, %169 : vector<2x128xf32>
    %171 = math.tanh %170 : vector<2x128xf32>
    %172 = arith.mulf %167, %171 : vector<2x128xf32>
    %173 = arith.truncf %172 : vector<2x128xf32> to vector<2x128xbf16>
    %174 = arith.index_cast %c3_i32 : i32 to index
    %c0_60 = arith.constant 0 : index
    %c0_61 = arith.constant 0 : index
    %175 = vector.load %arg4[%174, %c0_60, %c0_61] : memref<8x2x128xbf16, #tpu.memory_space<vmem>>, vector<1x2x128xbf16>
    %176 = vector.shape_cast %175 : vector<1x2x128xbf16> to vector<2x128xbf16>
    %177 = vector.shape_cast %173 : vector<2x128xbf16> to vector<1x2x128xbf16>
    tpu.vector_store %arg4[%174, %c0_60, %c0_61], %177 {strides = array<i32>} : memref<8x2x128xbf16, #tpu.memory_space<vmem>>, vector<1x2x128xbf16>,
    %c4_i32 = arith.constant 4 : i32
    %178 = arith.index_cast %c4_i32 : i32 to index
    %c0_62 = arith.constant 0 : index
    %c0_63 = arith.constant 0 : index
    %179 = vector.load %arg2[%178, %c0_62, %c0_63] : memref<8x2x512xbf16, #tpu.memory_space<vmem>>, vector<1x2x512xbf16>
    %180 = vector.shape_cast %179 : vector<1x2x512xbf16> to vector<2x512xbf16>
    %181 = arith.extf %180 : vector<2x512xbf16> to vector<2x512xf32>
    %182 = arith.truncf %172 : vector<2x128xf32> to vector<2x128xbf16>
    %cst_64 = arith.constant dense<0.000000e+00> : vector<2x512xf32>
    %183 = tpu.matmul %182, %3, %cst_64 {dimension_numbers = #tpu.dot_dimension_numbers<[1], [0], [0], [1], [0, 0, 1, 1], [], []>} : vector<2x128xbf16>, vector<128x512xbf16>, vector<2x512xf32> -> vector<2x512xf32>
    %184 = arith.addf %181, %183 : vector<2x512xf32>
    %185 = vector.extract_strided_slice %184 {offsets = [0, 0], sizes = [2, 128], strides = [1, 1]} : vector<2x512xf32> to vector<2x128xf32>
    %cst_65 = arith.constant 5.000000e-01 : f32
    %186 = vector.broadcast %cst_65 : f32 to vector<2x128xf32>
    %187 = arith.mulf %186, %185 : vector<2x128xf32>
    %188 = math.tanh %187 : vector<2x128xf32>
    %cst_66 = arith.constant 5.000000e-01 : f32
    %189 = vector.broadcast %cst_66 : f32 to vector<2x128xf32>
    %190 = arith.mulf %189, %188 : vector<2x128xf32>
    %cst_67 = arith.constant 5.000000e-01 : f32
    %191 = vector.broadcast %cst_67 : f32 to vector<2x128xf32>
    %192 = arith.addf %190, %191 : vector<2x128xf32>
    %193 = vector.extract_strided_slice %184 {offsets = [0, 128], sizes = [2, 128], strides = [1, 1]} : vector<2x512xf32> to vector<2x128xf32>
    %cst_68 = arith.constant 5.000000e-01 : f32
    %194 = vector.broadcast %cst_68 : f32 to vector<2x128xf32>
    %195 = arith.mulf %194, %193 : vector<2x128xf32>
    %196 = math.tanh %195 : vector<2x128xf32>
    %cst_69 = arith.constant 5.000000e-01 : f32
    %197 = vector.broadcast %cst_69 : f32 to vector<2x128xf32>
    %198 = arith.mulf %197, %196 : vector<2x128xf32>
    %cst_70 = arith.constant 5.000000e-01 : f32
    %199 = vector.broadcast %cst_70 : f32 to vector<2x128xf32>
    %200 = arith.addf %198, %199 : vector<2x128xf32>
    %201 = vector.extract_strided_slice %184 {offsets = [0, 256], sizes = [2, 128], strides = [1, 1]} : vector<2x512xf32> to vector<2x128xf32>
    %202 = math.tanh %201 : vector<2x128xf32>
    %203 = vector.extract_strided_slice %184 {offsets = [0, 384], sizes = [2, 128], strides = [1, 1]} : vector<2x512xf32> to vector<2x128xf32>
    %cst_71 = arith.constant 5.000000e-01 : f32
    %204 = vector.broadcast %cst_71 : f32 to vector<2x128xf32>
    %205 = arith.mulf %204, %203 : vector<2x128xf32>
    %206 = math.tanh %205 : vector<2x128xf32>
    %cst_72 = arith.constant 5.000000e-01 : f32
    %207 = vector.broadcast %cst_72 : f32 to vector<2x128xf32>
    %208 = arith.mulf %207, %206 : vector<2x128xf32>
    %cst_73 = arith.constant 5.000000e-01 : f32
    %209 = vector.broadcast %cst_73 : f32 to vector<2x128xf32>
    %210 = arith.addf %208, %209 : vector<2x128xf32>
    %211 = arith.mulf %200, %170 : vector<2x128xf32>
    %212 = arith.mulf %192, %202 : vector<2x128xf32>
    %213 = arith.addf %211, %212 : vector<2x128xf32>
    %214 = math.tanh %213 : vector<2x128xf32>
    %215 = arith.mulf %210, %214 : vector<2x128xf32>
    %216 = arith.truncf %215 : vector<2x128xf32> to vector<2x128xbf16>
    %217 = arith.index_cast %c4_i32 : i32 to index
    %c0_74 = arith.constant 0 : index
    %c0_75 = arith.constant 0 : index
    %218 = vector.load %arg4[%217, %c0_74, %c0_75] : memref<8x2x128xbf16, #tpu.memory_space<vmem>>, vector<1x2x128xbf16>
    %219 = vector.shape_cast %218 : vector<1x2x128xbf16> to vector<2x128xbf16>
    %220 = vector.shape_cast %216 : vector<2x128xbf16> to vector<1x2x128xbf16>
    tpu.vector_store %arg4[%217, %c0_74, %c0_75], %220 {strides = array<i32>} : memref<8x2x128xbf16, #tpu.memory_space<vmem>>, vector<1x2x128xbf16>,
    %c5_i32 = arith.constant 5 : i32
    %221 = arith.index_cast %c5_i32 : i32 to index
    %c0_76 = arith.constant 0 : index
    %c0_77 = arith.constant 0 : index
    %222 = vector.load %arg2[%221, %c0_76, %c0_77] : memref<8x2x512xbf16, #tpu.memory_space<vmem>>, vector<1x2x512xbf16>
    %223 = vector.shape_cast %222 : vector<1x2x512xbf16> to vector<2x512xbf16>
    %224 = arith.extf %223 : vector<2x512xbf16> to vector<2x512xf32>
    %225 = arith.truncf %215 : vector<2x128xf32> to vector<2x128xbf16>
    %cst_78 = arith.constant dense<0.000000e+00> : vector<2x512xf32>
    %226 = tpu.matmul %225, %3, %cst_78 {dimension_numbers = #tpu.dot_dimension_numbers<[1], [0], [0], [1], [0, 0, 1, 1], [], []>} : vector<2x128xbf16>, vector<128x512xbf16>, vector<2x512xf32> -> vector<2x512xf32>
    %227 = arith.addf %224, %226 : vector<2x512xf32>
    %228 = vector.extract_strided_slice %227 {offsets = [0, 0], sizes = [2, 128], strides = [1, 1]} : vector<2x512xf32> to vector<2x128xf32>
    %cst_79 = arith.constant 5.000000e-01 : f32
    %229 = vector.broadcast %cst_79 : f32 to vector<2x128xf32>
    %230 = arith.mulf %229, %228 : vector<2x128xf32>
    %231 = math.tanh %230 : vector<2x128xf32>
    %cst_80 = arith.constant 5.000000e-01 : f32
    %232 = vector.broadcast %cst_80 : f32 to vector<2x128xf32>
    %233 = arith.mulf %232, %231 : vector<2x128xf32>
    %cst_81 = arith.constant 5.000000e-01 : f32
    %234 = vector.broadcast %cst_81 : f32 to vector<2x128xf32>
    %235 = arith.addf %233, %234 : vector<2x128xf32>
    %236 = vector.extract_strided_slice %227 {offsets = [0, 128], sizes = [2, 128], strides = [1, 1]} : vector<2x512xf32> to vector<2x128xf32>
    %cst_82 = arith.constant 5.000000e-01 : f32
    %237 = vector.broadcast %cst_82 : f32 to vector<2x128xf32>
    %238 = arith.mulf %237, %236 : vector<2x128xf32>
    %239 = math.tanh %238 : vector<2x128xf32>
    %cst_83 = arith.constant 5.000000e-01 : f32
    %240 = vector.broadcast %cst_83 : f32 to vector<2x128xf32>
    %241 = arith.mulf %240, %239 : vector<2x128xf32>
    %cst_84 = arith.constant 5.000000e-01 : f32
    %242 = vector.broadcast %cst_84 : f32 to vector<2x128xf32>
    %243 = arith.addf %241, %242 : vector<2x128xf32>
    %244 = vector.extract_strided_slice %227 {offsets = [0, 256], sizes = [2, 128], strides = [1, 1]} : vector<2x512xf32> to vector<2x128xf32>
    %245 = math.tanh %244 : vector<2x128xf32>
    %246 = vector.extract_strided_slice %227 {offsets = [0, 384], sizes = [2, 128], strides = [1, 1]} : vector<2x512xf32> to vector<2x128xf32>
    %cst_85 = arith.constant 5.000000e-01 : f32
    %247 = vector.broadcast %cst_85 : f32 to vector<2x128xf32>
    %248 = arith.mulf %247, %246 : vector<2x128xf32>
    %249 = math.tanh %248 : vector<2x128xf32>
    %cst_86 = arith.constant 5.000000e-01 : f32
    %250 = vector.broadcast %cst_86 : f32 to vector<2x128xf32>
    %251 = arith.mulf %250, %249 : vector<2x128xf32>
    %cst_87 = arith.constant 5.000000e-01 : f32
    %252 = vector.broadcast %cst_87 : f32 to vector<2x128xf32>
    %253 = arith.addf %251, %252 : vector<2x128xf32>
    %254 = arith.mulf %243, %213 : vector<2x128xf32>
    %255 = arith.mulf %235, %245 : vector<2x128xf32>
    %256 = arith.addf %254, %255 : vector<2x128xf32>
    %257 = math.tanh %256 : vector<2x128xf32>
    %258 = arith.mulf %253, %257 : vector<2x128xf32>
    %259 = arith.truncf %258 : vector<2x128xf32> to vector<2x128xbf16>
    %260 = arith.index_cast %c5_i32 : i32 to index
    %c0_88 = arith.constant 0 : index
    %c0_89 = arith.constant 0 : index
    %261 = vector.load %arg4[%260, %c0_88, %c0_89] : memref<8x2x128xbf16, #tpu.memory_space<vmem>>, vector<1x2x128xbf16>
    %262 = vector.shape_cast %261 : vector<1x2x128xbf16> to vector<2x128xbf16>
    %263 = vector.shape_cast %259 : vector<2x128xbf16> to vector<1x2x128xbf16>
    tpu.vector_store %arg4[%260, %c0_88, %c0_89], %263 {strides = array<i32>} : memref<8x2x128xbf16, #tpu.memory_space<vmem>>, vector<1x2x128xbf16>,
    %c6_i32 = arith.constant 6 : i32
    %264 = arith.index_cast %c6_i32 : i32 to index
    %c0_90 = arith.constant 0 : index
    %c0_91 = arith.constant 0 : index
    %265 = vector.load %arg2[%264, %c0_90, %c0_91] : memref<8x2x512xbf16, #tpu.memory_space<vmem>>, vector<1x2x512xbf16>
    %266 = vector.shape_cast %265 : vector<1x2x512xbf16> to vector<2x512xbf16>
    %267 = arith.extf %266 : vector<2x512xbf16> to vector<2x512xf32>
    %268 = arith.truncf %258 : vector<2x128xf32> to vector<2x128xbf16>
    %cst_92 = arith.constant dense<0.000000e+00> : vector<2x512xf32>
    %269 = tpu.matmul %268, %3, %cst_92 {dimension_numbers = #tpu.dot_dimension_numbers<[1], [0], [0], [1], [0, 0, 1, 1], [], []>} : vector<2x128xbf16>, vector<128x512xbf16>, vector<2x512xf32> -> vector<2x512xf32>
    %270 = arith.addf %267, %269 : vector<2x512xf32>
    %271 = vector.extract_strided_slice %270 {offsets = [0, 0], sizes = [2, 128], strides = [1, 1]} : vector<2x512xf32> to vector<2x128xf32>
    %cst_93 = arith.constant 5.000000e-01 : f32
    %272 = vector.broadcast %cst_93 : f32 to vector<2x128xf32>
    %273 = arith.mulf %272, %271 : vector<2x128xf32>
    %274 = math.tanh %273 : vector<2x128xf32>
    %cst_94 = arith.constant 5.000000e-01 : f32
    %275 = vector.broadcast %cst_94 : f32 to vector<2x128xf32>
    %276 = arith.mulf %275, %274 : vector<2x128xf32>
    %cst_95 = arith.constant 5.000000e-01 : f32
    %277 = vector.broadcast %cst_95 : f32 to vector<2x128xf32>
    %278 = arith.addf %276, %277 : vector<2x128xf32>
    %279 = vector.extract_strided_slice %270 {offsets = [0, 128], sizes = [2, 128], strides = [1, 1]} : vector<2x512xf32> to vector<2x128xf32>
    %cst_96 = arith.constant 5.000000e-01 : f32
    %280 = vector.broadcast %cst_96 : f32 to vector<2x128xf32>
    %281 = arith.mulf %280, %279 : vector<2x128xf32>
    %282 = math.tanh %281 : vector<2x128xf32>
    %cst_97 = arith.constant 5.000000e-01 : f32
    %283 = vector.broadcast %cst_97 : f32 to vector<2x128xf32>
    %284 = arith.mulf %283, %282 : vector<2x128xf32>
    %cst_98 = arith.constant 5.000000e-01 : f32
    %285 = vector.broadcast %cst_98 : f32 to vector<2x128xf32>
    %286 = arith.addf %284, %285 : vector<2x128xf32>
    %287 = vector.extract_strided_slice %270 {offsets = [0, 256], sizes = [2, 128], strides = [1, 1]} : vector<2x512xf32> to vector<2x128xf32>
    %288 = math.tanh %287 : vector<2x128xf32>
    %289 = vector.extract_strided_slice %270 {offsets = [0, 384], sizes = [2, 128], strides = [1, 1]} : vector<2x512xf32> to vector<2x128xf32>
    %cst_99 = arith.constant 5.000000e-01 : f32
    %290 = vector.broadcast %cst_99 : f32 to vector<2x128xf32>
    %291 = arith.mulf %290, %289 : vector<2x128xf32>
    %292 = math.tanh %291 : vector<2x128xf32>
    %cst_100 = arith.constant 5.000000e-01 : f32
    %293 = vector.broadcast %cst_100 : f32 to vector<2x128xf32>
    %294 = arith.mulf %293, %292 : vector<2x128xf32>
    %cst_101 = arith.constant 5.000000e-01 : f32
    %295 = vector.broadcast %cst_101 : f32 to vector<2x128xf32>
    %296 = arith.addf %294, %295 : vector<2x128xf32>
    %297 = arith.mulf %286, %256 : vector<2x128xf32>
    %298 = arith.mulf %278, %288 : vector<2x128xf32>
    %299 = arith.addf %297, %298 : vector<2x128xf32>
    %300 = math.tanh %299 : vector<2x128xf32>
    %301 = arith.mulf %296, %300 : vector<2x128xf32>
    %302 = arith.truncf %301 : vector<2x128xf32> to vector<2x128xbf16>
    %303 = arith.index_cast %c6_i32 : i32 to index
    %c0_102 = arith.constant 0 : index
    %c0_103 = arith.constant 0 : index
    %304 = vector.load %arg4[%303, %c0_102, %c0_103] : memref<8x2x128xbf16, #tpu.memory_space<vmem>>, vector<1x2x128xbf16>
    %305 = vector.shape_cast %304 : vector<1x2x128xbf16> to vector<2x128xbf16>
    %306 = vector.shape_cast %302 : vector<2x128xbf16> to vector<1x2x128xbf16>
    tpu.vector_store %arg4[%303, %c0_102, %c0_103], %306 {strides = array<i32>} : memref<8x2x128xbf16, #tpu.memory_space<vmem>>, vector<1x2x128xbf16>,
    %c7_i32 = arith.constant 7 : i32
    %307 = arith.index_cast %c7_i32 : i32 to index
    %c0_104 = arith.constant 0 : index
    %c0_105 = arith.constant 0 : index
    %308 = vector.load %arg2[%307, %c0_104, %c0_105] : memref<8x2x512xbf16, #tpu.memory_space<vmem>>, vector<1x2x512xbf16>
    %309 = vector.shape_cast %308 : vector<1x2x512xbf16> to vector<2x512xbf16>
    %310 = arith.extf %309 : vector<2x512xbf16> to vector<2x512xf32>
    %311 = arith.truncf %301 : vector<2x128xf32> to vector<2x128xbf16>
    %cst_106 = arith.constant dense<0.000000e+00> : vector<2x512xf32>
    %312 = tpu.matmul %311, %3, %cst_106 {dimension_numbers = #tpu.dot_dimension_numbers<[1], [0], [0], [1], [0, 0, 1, 1], [], []>} : vector<2x128xbf16>, vector<128x512xbf16>, vector<2x512xf32> -> vector<2x512xf32>
    %313 = arith.addf %310, %312 : vector<2x512xf32>
    %314 = vector.extract_strided_slice %313 {offsets = [0, 0], sizes = [2, 128], strides = [1, 1]} : vector<2x512xf32> to vector<2x128xf32>
    %cst_107 = arith.constant 5.000000e-01 : f32
    %315 = vector.broadcast %cst_107 : f32 to vector<2x128xf32>
    %316 = arith.mulf %315, %314 : vector<2x128xf32>
    %317 = math.tanh %316 : vector<2x128xf32>
    %cst_108 = arith.constant 5.000000e-01 : f32
    %318 = vector.broadcast %cst_108 : f32 to vector<2x128xf32>
    %319 = arith.mulf %318, %317 : vector<2x128xf32>
    %cst_109 = arith.constant 5.000000e-01 : f32
    %320 = vector.broadcast %cst_109 : f32 to vector<2x128xf32>
    %321 = arith.addf %319, %320 : vector<2x128xf32>
    %322 = vector.extract_strided_slice %313 {offsets = [0, 128], sizes = [2, 128], strides = [1, 1]} : vector<2x512xf32> to vector<2x128xf32>
    %cst_110 = arith.constant 5.000000e-01 : f32
    %323 = vector.broadcast %cst_110 : f32 to vector<2x128xf32>
    %324 = arith.mulf %323, %322 : vector<2x128xf32>
    %325 = math.tanh %324 : vector<2x128xf32>
    %cst_111 = arith.constant 5.000000e-01 : f32
    %326 = vector.broadcast %cst_111 : f32 to vector<2x128xf32>
    %327 = arith.mulf %326, %325 : vector<2x128xf32>
    %cst_112 = arith.constant 5.000000e-01 : f32
    %328 = vector.broadcast %cst_112 : f32 to vector<2x128xf32>
    %329 = arith.addf %327, %328 : vector<2x128xf32>
    %330 = vector.extract_strided_slice %313 {offsets = [0, 256], sizes = [2, 128], strides = [1, 1]} : vector<2x512xf32> to vector<2x128xf32>
    %331 = math.tanh %330 : vector<2x128xf32>
    %332 = vector.extract_strided_slice %313 {offsets = [0, 384], sizes = [2, 128], strides = [1, 1]} : vector<2x512xf32> to vector<2x128xf32>
    %cst_113 = arith.constant 5.000000e-01 : f32
    %333 = vector.broadcast %cst_113 : f32 to vector<2x128xf32>
    %334 = arith.mulf %333, %332 : vector<2x128xf32>
    %335 = math.tanh %334 : vector<2x128xf32>
    %cst_114 = arith.constant 5.000000e-01 : f32
    %336 = vector.broadcast %cst_114 : f32 to vector<2x128xf32>
    %337 = arith.mulf %336, %335 : vector<2x128xf32>
    %cst_115 = arith.constant 5.000000e-01 : f32
    %338 = vector.broadcast %cst_115 : f32 to vector<2x128xf32>
    %339 = arith.addf %337, %338 : vector<2x128xf32>
    %340 = arith.mulf %329, %299 : vector<2x128xf32>
    %341 = arith.mulf %321, %331 : vector<2x128xf32>
    %342 = arith.addf %340, %341 : vector<2x128xf32>
    %343 = math.tanh %342 : vector<2x128xf32>
    %344 = arith.mulf %339, %343 : vector<2x128xf32>
    %345 = arith.truncf %344 : vector<2x128xf32> to vector<2x128xbf16>
    %346 = arith.index_cast %c7_i32 : i32 to index
    %c0_116 = arith.constant 0 : index
    %c0_117 = arith.constant 0 : index
    %347 = vector.load %arg4[%346, %c0_116, %c0_117] : memref<8x2x128xbf16, #tpu.memory_space<vmem>>, vector<1x2x128xbf16>
    %348 = vector.shape_cast %347 : vector<1x2x128xbf16> to vector<2x128xbf16>
    %349 = vector.shape_cast %345 : vector<2x128xbf16> to vector<1x2x128xbf16>
    tpu.vector_store %arg4[%346, %c0_116, %c0_117], %349 {strides = array<i32>} : memref<8x2x128xbf16, #tpu.memory_space<vmem>>, vector<1x2x128xbf16>,
    %c8_i32 = arith.constant 8 : i32
    %c0_118 = arith.constant 0 : index
    %c0_119 = arith.constant 0 : index
    %350 = vector.load %arg7[%c0_118, %c0_119] : memref<2x128xf32, #tpu.memory_space<vmem>>, vector<2x128xf32>
    tpu.vector_store %arg7[%c0_118, %c0_119], %344 {strides = array<i32>} : memref<2x128xf32, #tpu.memory_space<vmem>>, vector<2x128xf32>,
    %c0_120 = arith.constant 0 : index
    %c0_121 = arith.constant 0 : index
    %351 = vector.load %arg8[%c0_120, %c0_121] : memref<2x128xf32, #tpu.memory_space<vmem>>, vector<2x128xf32>
    tpu.vector_store %arg8[%c0_120, %c0_121], %342 {strides = array<i32>} : memref<2x128xf32, #tpu.memory_space<vmem>>, vector<2x128xf32>,
    %c0_i32_122 = arith.constant 0 : i32
    %352 = arith.cmpi eq, %arg1, %c0_i32_122 : i32
    %353 = arith.extui %352 : i1 to i32
    %c0_i32_123 = arith.constant 0 : i32
    %354 = arith.cmpi ne, %353, %c0_i32_123 : i32
    scf.if %354 {
      %c0_124 = arith.constant 0 : index
      %c0_125 = arith.constant 0 : index
      %355 = vector.load %arg5[%c0_124, %c0_125] : memref<2x128xf32, #tpu.memory_space<vmem>>, vector<2x128xf32>
      tpu.vector_store %arg5[%c0_124, %c0_125], %344 {strides = array<i32>} : memref<2x128xf32, #tpu.memory_space<vmem>>, vector<2x128xf32>,
      %c0_126 = arith.constant 0 : index
      %c0_127 = arith.constant 0 : index
      %356 = vector.load %arg6[%c0_126, %c0_127] : memref<2x128xf32, #tpu.memory_space<vmem>>, vector<2x128xf32>
      tpu.vector_store %arg6[%c0_126, %c0_127], %342 {strides = array<i32>} : memref<2x128xf32, #tpu.memory_space<vmem>>, vector<2x128xf32>,
    } else {
    }
    return
  }
  func.func @transform_0(%arg0: i32, %arg1: i32) -> (i32, i32, i32) {
    %c0_i32 = arith.constant 0 : i32
    %c0_i32_0 = arith.constant 0 : i32
    return %arg1, %arg0, %c0_i32 : i32, i32, i32
  }
  func.func @transform_1(%arg0: i32, %arg1: i32) -> (i32, i32) {
    %c0_i32 = arith.constant 0 : i32
    %c0_i32_0 = arith.constant 0 : i32
    %c0_i32_1 = arith.constant 0 : i32
    return %c0_i32, %c0_i32_0 : i32, i32
  }
  func.func @transform_2(%arg0: i32, %arg1: i32) -> (i32, i32, i32) {
    %c0_i32 = arith.constant 0 : i32
    %c0_i32_0 = arith.constant 0 : i32
    return %arg1, %arg0, %c0_i32 : i32, i32, i32
  }
  func.func @transform_3(%arg0: i32, %arg1: i32) -> (i32, i32) {
    %c0_i32 = arith.constant 0 : i32
    %c0_i32_0 = arith.constant 0 : i32
    return %arg0, %c0_i32 : i32, i32
  }
  func.func @transform_4(%arg0: i32, %arg1: i32) -> (i32, i32) {
    %c0_i32 = arith.constant 0 : i32
    %c0_i32_0 = arith.constant 0 : i32
    return %arg0, %c0_i32 : i32, i32
  }
}

module attributes {stable_mosaic.version = 11 : i64} {
  func.func @_mm_bias_kernel(%arg0: i32, %arg1: i32, %arg2: i32, %arg3: memref<16x128xbf16, #tpu.memory_space<vmem>>, %arg4: memref<128x128xbf16, #tpu.memory_space<vmem>>, %arg5: memref<1x128xf32, #tpu.memory_space<vmem>>, %arg6: memref<16x128xf32, #tpu.memory_space<vmem>>, %arg7: memref<16x128xf32, #tpu.memory_space<vmem>>) attributes {dimension_semantics = [#tpu.dimension_semantics<parallel>, #tpu.dimension_semantics<parallel>, #tpu.dimension_semantics<arbitrary>], iteration_bounds = array<i64: 1, 1, 1>, scalar_prefetch = 0 : i64, scratch_operands = 1 : i64, tpu.core_type = #tpu.core_type<tc>, window_params = [{transform_indices = @transform_0, window_bounds = array<i64: 16, 128>}, {transform_indices = @transform_1, window_bounds = array<i64: 128, 128>}, {transform_indices = @transform_2, window_bounds = array<i64: 1, 128>}, {transform_indices = @transform_3, window_bounds = array<i64: 16, 128>}]} {
    %c0_i32 = arith.constant 0 : i32
    %0 = arith.cmpi eq, %arg2, %c0_i32 : i32
    %1 = arith.extui %0 : i1 to i32
    %c0_i32_0 = arith.constant 0 : i32
    %2 = arith.cmpi ne, %1, %c0_i32_0 : i32
    scf.if %2 {
      %cst_10 = arith.constant 0.000000e+00 : f32
      %12 = vector.broadcast %cst_10 : f32 to vector<16x128xf32>
      %c0_11 = arith.constant 0 : index
      %c0_12 = arith.constant 0 : index
      %13 = vector.load %arg7[%c0_11, %c0_12] : memref<16x128xf32, #tpu.memory_space<vmem>>, vector<16x128xf32>
      tpu.vector_store %arg7[%c0_11, %c0_12], %12 {strides = array<i32>} : memref<16x128xf32, #tpu.memory_space<vmem>>, vector<16x128xf32>,
    } else {
    }
    %c0 = arith.constant 0 : index
    %c0_1 = arith.constant 0 : index
    %3 = vector.load %arg7[%c0, %c0_1] : memref<16x128xf32, #tpu.memory_space<vmem>>, vector<16x128xf32>
    %c0_2 = arith.constant 0 : index
    %c0_3 = arith.constant 0 : index
    %4 = vector.load %arg3[%c0_2, %c0_3] : memref<16x128xbf16, #tpu.memory_space<vmem>>, vector<16x128xbf16>
    %c0_4 = arith.constant 0 : index
    %c0_5 = arith.constant 0 : index
    %5 = vector.load %arg4[%c0_4, %c0_5] : memref<128x128xbf16, #tpu.memory_space<vmem>>, vector<128x128xbf16>
    %cst = arith.constant dense<0.000000e+00> : vector<16x128xf32>
    %6 = tpu.matmul %4, %5, %cst {dimension_numbers = #tpu.dot_dimension_numbers<[1], [0], [0], [1], [0, 0, 1, 1], [], []>} : vector<16x128xbf16>, vector<128x128xbf16>, vector<16x128xf32> -> vector<16x128xf32>
    %7 = arith.addf %3, %6 : vector<16x128xf32>
    %c0_6 = arith.constant 0 : index
    %c0_7 = arith.constant 0 : index
    %8 = vector.load %arg7[%c0_6, %c0_7] : memref<16x128xf32, #tpu.memory_space<vmem>>, vector<16x128xf32>
    tpu.vector_store %arg7[%c0_6, %c0_7], %7 {strides = array<i32>} : memref<16x128xf32, #tpu.memory_space<vmem>>, vector<16x128xf32>,
    %c0_i32_8 = arith.constant 0 : i32
    %9 = arith.cmpi eq, %arg2, %c0_i32_8 : i32
    %10 = arith.extui %9 : i1 to i32
    %c0_i32_9 = arith.constant 0 : i32
    %11 = arith.cmpi ne, %10, %c0_i32_9 : i32
    scf.if %11 {
      %c0_10 = arith.constant 0 : index
      %c0_11 = arith.constant 0 : index
      %12 = vector.load %arg7[%c0_10, %c0_11] : memref<16x128xf32, #tpu.memory_space<vmem>>, vector<16x128xf32>
      %c0_12 = arith.constant 0 : index
      %c0_13 = arith.constant 0 : index
      %13 = vector.load %arg5[%c0_12, %c0_13] : memref<1x128xf32, #tpu.memory_space<vmem>>, vector<1x128xf32>
      %14 = vector.broadcast %13 : vector<1x128xf32> to vector<16x128xf32>
      %15 = arith.addf %12, %14 : vector<16x128xf32>
      %c0_14 = arith.constant 0 : index
      %c0_15 = arith.constant 0 : index
      %16 = vector.load %arg6[%c0_14, %c0_15] : memref<16x128xf32, #tpu.memory_space<vmem>>, vector<16x128xf32>
      tpu.vector_store %arg6[%c0_14, %c0_15], %15 {strides = array<i32>} : memref<16x128xf32, #tpu.memory_space<vmem>>, vector<16x128xf32>,
    } else {
    }
    return
  }
  func.func @transform_0(%arg0: i32, %arg1: i32, %arg2: i32) -> (i32, i32) {
    %c0_i32 = arith.constant 0 : i32
    return %arg0, %arg2 : i32, i32
  }
  func.func @transform_1(%arg0: i32, %arg1: i32, %arg2: i32) -> (i32, i32) {
    %c0_i32 = arith.constant 0 : i32
    return %arg2, %arg1 : i32, i32
  }
  func.func @transform_2(%arg0: i32, %arg1: i32, %arg2: i32) -> (i32, i32) {
    %c0_i32 = arith.constant 0 : i32
    %c0_i32_0 = arith.constant 0 : i32
    return %c0_i32, %arg1 : i32, i32
  }
  func.func @transform_3(%arg0: i32, %arg1: i32, %arg2: i32) -> (i32, i32) {
    %c0_i32 = arith.constant 0 : i32
    return %arg0, %arg1 : i32, i32
  }
}

</mosaic_0001>

<llo_original>
// kernel: lstm_lm_forward.5
$region0: #{lstm_lm_forward.5}
  #allocation0 [shape = 'u32[]', space=smem, size = 0x4, offset = 0x4, fixed_abs, tag = 'smem constant byte address 0x4 - core index']
  #allocation1 [shape = 'u32[144,128]{1,0:T(1,128)}', space=vmem, size = 0x12000, scoped, tag = 'internal scratch']
  #allocation2 [shape = 'f32[16,256]{1,0:T(8,128)}', space=vmem, size = 0x4000, scoped, tag = 'scratch operand']
  %s0 = inlined_call_operand.vmem [shape: bf16[16,128], index: 0, kind: input, shape index: {}]
  %s1 = inlined_call_operand.vmem [shape: bf16[128,512], index: 1, kind: input, shape index: {}]
  %s2 = inlined_call_operand.vmem [shape: f32[1,512], index: 2, kind: input, shape index: {}]
  %s3 = inlined_call_operand.vmem [shape: bf16[16,512], index: 3, kind: output, shape index: {}]
  %s4 = sld [smem:[#allocation0]]
  $region125: #{lstm_lm_forward.5} parent=0
    _
  %s6 = ssub.s32 1, %s4
  %s7 = scalar_select 0, %s6, %s4
  $region1: #{lstm_lm_forward.5} parent=0
    #allocation3 [shape = 'u8[131072]{0}', space=vmem, size = 0x20000, scoped, tag = 'input window, operand 1']
    #allocation4 [shape = 'u8[16384]{0}', space=vmem, size = 0x4000, scoped, tag = 'output window, operand 0']
    loop: start=0, step=1, limit=4
    $region2: #{lstm_lm_forward.5} parent=1 // loop_pre_header
      _
    $region3: #{lstm_lm_forward.5} parent=1 // loop_header
      %s9 = sphi 0, %s13
      %p10 = scmp.ge.s32.totalorder %s9, 4
      %s16 = sphi 0, %s35
      %s17 = sphi 0, %s31
      %s18 = sphi 0, %s27
      %s19 = sphi 0, %s16
      %s20 = sphi 0, %s17
      %s21 = sphi 0, %s18
      %s22 = sphi 0, %s19
      %s23 = sphi 0, %s20
      %s24 = sphi 0, %s21
      %s40 = sphi 0, %s42
      %s43 = sphi 0, %s40
      %s44 = sphi 0, %s43
      %s60 = sphi 0, %s44
      %s68 = sphi 0, %s70
      %s71 = sphi 0, %s68
      %s72 = sphi 0, %s71
      %s88 = sphi 0, %s72
      %s94 = sphi 0, %s96
      %s97 = sphi 0, %s94
      %s98 = sphi 0, %s97
      %s114 = sphi 0, %s98
      %s122 = sphi 0, %s124
      %s125 = sphi 0, %s122
      %s126 = sphi 0, %s125
      %s142 = sphi 0, %s126
    $region4: #{lstm_lm_forward.5} parent=1 // loop_header_branch
      %12 = sbr.rel (%p10) target = $region8
    $region5: #{lstm_lm_forward.5} parent=1 // loop_body
      %s14 = ssub.s32 %s9, 1
      %s15 = ssub.s32 %s9, 2
      %s25 = sadd.s32 1, %s18
      %p26 = scmp.ge.s32.totalorder %s25, 1
      %s27 = scalar_select %p26, 0, %s25
      %s28 = sadd.s32 1, %s17
      %s29 = scalar_select %p26, %s28, %s17
      %p30 = scmp.ge.s32.totalorder %s29, 2
      %s31 = scalar_select %p30, 0, %s29
      %s32 = sadd.s32 1, %s16
      %s33 = scalar_select %p30, %s32, %s16
      %p34 = scmp.ge.s32.totalorder %s33, 1
      %s35 = scalar_select %p34, 0, %s33
      %s36 = ssub.s32 %s16, %s35
      %s37 = ssub.s32 %s18, %s27
      %s38 = sor.u32 %s36, %s37
      %p39 = scmp.eq.s32.totalorder %s38, 0
      %s41 = sadd.s32 %s40, 1
      %s42 = scalar_select %p39, %s40, %s41
      %p45 = pneg %p39
      %p46 = scmp.eq.s32.totalorder %s9, 1
      %p47 = por %p45, %p46
      %p48 = scmp.ne.s32.totalorder %s40, %s43
      %p49 = scmp.eq.s32.totalorder %s9, 0
      %p50 = por %p48, %p49
      %p51 = scmp.ne.s32.totalorder %s40, %s43
      %p52 = scmp.eq.s32.totalorder %s14, 1
      %p53 = por %p51, %p52
      %p54 = scmp.ne.s32.totalorder %s43, %s44
      %p55 = scmp.eq.s32.totalorder %s14, 0
      %p56 = por %p54, %p55
      %p57 = scmp.ne.s32.totalorder %s43, %s44
      %p58 = scmp.eq.s32.totalorder %s15, 1
      %p59 = por %p57, %p58
      %p61 = scmp.ne.s32.totalorder %s44, %s60
      %p62 = scmp.eq.s32.totalorder %s15, 0
      %p63 = por %p61, %p62
      %s64 = ssub.s32 %s18, %s27
      %s65 = ssub.s32 %s17, %s31
      %s66 = sor.u32 %s64, %s65
      %p67 = scmp.eq.s32.totalorder %s66, 0
      %s69 = sadd.s32 %s68, 1
      %s70 = scalar_select %p67, %s68, %s69
      %p73 = pneg %p67
      %p74 = scmp.eq.s32.totalorder %s9, 1
      %p75 = por %p73, %p74
      %p76 = scmp.ne.s32.totalorder %s68, %s71
      %p77 = scmp.eq.s32.totalorder %s9, 0
      %p78 = por %p76, %p77
      %p79 = scmp.ne.s32.totalorder %s68, %s71
      %p80 = scmp.eq.s32.totalorder %s14, 1
      %p81 = por %p79, %p80
      %p82 = scmp.ne.s32.totalorder %s71, %s72
      %p83 = scmp.eq.s32.totalorder %s14, 0
      %p84 = por %p82, %p83
      %p85 = scmp.ne.s32.totalorder %s71, %s72
      %p86 = scmp.eq.s32.totalorder %s15, 1
      %p87 = por %p85, %p86
      %p89 = scmp.ne.s32.totalorder %s72, %s88
      %p90 = scmp.eq.s32.totalorder %s15, 0
      %p91 = por %p89, %p90
      %s92 = ssub.s32 %s17, %s31
      %p93 = scmp.eq.s32.totalorder %s92, 0
      %s95 = sadd.s32 %s94, 1
      %s96 = scalar_select %p93, %s94, %s95
      %p99 = pneg %p93
      %p100 = scmp.eq.s32.totalorder %s9, 1
      %p101 = por %p99, %p100
      %p102 = scmp.ne.s32.totalorder %s94, %s97
      %p103 = scmp.eq.s32.totalorder %s9, 0
      %p104 = por %p102, %p103
      %p105 = scmp.ne.s32.totalorder %s94, %s97
      %p106 = scmp.eq.s32.totalorder %s14, 1
      %p107 = por %p105, %p106
      %p108 = scmp.ne.s32.totalorder %s97, %s98
      %p109 = scmp.eq.s32.totalorder %s14, 0
      %p110 = por %p108, %p109
      %p111 = scmp.ne.s32.totalorder %s97, %s98
      %p112 = scmp.eq.s32.totalorder %s15, 1
      %p113 = por %p111, %p112
      %p115 = scmp.ne.s32.totalorder %s98, %s114
      %p116 = scmp.eq.s32.totalorder %s15, 0
      %p117 = por %p115, %p116
      %s118 = ssub.s32 %s16, %s35
      %s119 = ssub.s32 %s17, %s31
      %s120 = sor.u32 %s118, %s119
      %p121 = scmp.eq.s32.totalorder %s120, 0
      %s123 = sadd.s32 %s122, 1
      %s124 = scalar_select %p121, %s122, %s123
      %p127 = pneg %p121
      %p128 = scmp.eq.s32.totalorder %s9, 1
      %p129 = por %p127, %p128
      %p130 = scmp.ne.s32.totalorder %s122, %s125
      %p131 = scmp.eq.s32.totalorder %s9, 0
      %p132 = por %p130, %p131
      %p133 = scmp.ne.s32.totalorder %s122, %s125
      %p134 = scmp.eq.s32.totalorder %s14, 1
      %p135 = por %p133, %p134
      %p136 = scmp.ne.s32.totalorder %s125, %s126
      %p137 = scmp.eq.s32.totalorder %s14, 0
      %p138 = por %p136, %p137
      %p139 = scmp.ne.s32.totalorder %s125, %s126
      %p140 = scmp.eq.s32.totalorder %s15, 1
      %p141 = por %p139, %p140
      %p143 = scmp.ne.s32.totalorder %s126, %s142
      %p144 = scmp.eq.s32.totalorder %s15, 0
      %p145 = por %p143, %p144
      %p146 = scmp.le.s32.totalorder 1, %s9
      %p147 = scmp.lt.s32.totalorder %s9, 3
      %p148 = pnand %p146, %p147
      %p149 = pneg %p148
      // Predicated region
      $region9: #{lstm_lm_forward.5} parent=5 // pred_check
        _
      $region10: #{lstm_lm_forward.5} parent=5 // pred_check_branch
        %151 = sbr.rel (%p148) target = $region12
      $region11: #{lstm_lm_forward.5} parent=5 // pred_region
        %s152 = ssub.s32 %s9, 1
        // Predicated region
        $region13: #{lstm_lm_forward.5} parent=11 // pred_check
          %p153 = pneg %p56
        $region14: #{lstm_lm_forward.5} parent=11 // pred_check_branch
          %155 = sbr.rel (%p153) target = $region16
        $region15: #{lstm_lm_forward.5} parent=11 // pred_region
          %s156 = smul.u32 2, %s19
          %p157 = scmp.lt.s32.totalorder %s156, 1
          %s158 = scalar_select %p157, %s156, 1
          %p159 = scmp.lt.s32.totalorder %s21, 0
          %s160 = scalar_select %p159, %s21, 0
          %s161 = sadd.s32 %s160, %s158
          %s162 = smul.addr %s161, 4
          %s163 = scalar_lea.vmem %s0, %s162
          %s164 = smul.u32 2, %s19
        $region16: #{lstm_lm_forward.5} parent=11 // pred_fallthru
          _
      $region12: #{lstm_lm_forward.5} parent=5 // pred_fallthru
        _
      %p165 = scmp.lt.s32.totalorder %s9, 2
      // Predicated region
      $region17: #{lstm_lm_forward.5} parent=5 // pred_check
        %p166 = pneg %p165
      $region18: #{lstm_lm_forward.5} parent=5 // pred_check_branch
        %168 = sbr.rel (%p166) target = $region20
      $region19: #{lstm_lm_forward.5} parent=5 // pred_region
        // Predicated region
        $region21: #{lstm_lm_forward.5} parent=19 // pred_check
          %p169 = pneg %p78
        $region22: #{lstm_lm_forward.5} parent=19 // pred_check_branch
          %171 = sbr.rel (%p169) target = $region24
        $region23: #{lstm_lm_forward.5} parent=19 // pred_region
          %s172 = sand.u32 %s68, 1
          %s173 = sand.u32 %s68, 1
          %s174 = smul.addr %s173, 128
          %s175 = scalar_lea.vmem [#allocation3], %s174
          %s176 = smul.u32 16, %s18
          %s177 = smul.u32 2, %s17
          %s178 = smul.addr %s176, 4
          %s179 = sadd.s32 %s177, %s178
          %s180 = smul.addr %s179, 4
          %s181 = scalar_lea.vmem %s1, %s180
          // Predicated region
          $region25: #{lstm_lm_forward.5} parent=23 // pred_check
            _
          $region26: #{lstm_lm_forward.5} parent=23 // pred_check_branch
            %183 = sbr.rel (0) target = $region28
          $region27: #{lstm_lm_forward.5} parent=23 // pred_region
            // Predicated region
            $region29: #{lstm_lm_forward.5} parent=27 // pred_check
              _
            $region30: #{lstm_lm_forward.5} parent=27 // pred_check_branch
              %185 = sbr.rel (0) target = $region32
            $region31: #{lstm_lm_forward.5} parent=27 // pred_region
              // Predicated region
              $region44: #{lstm_lm_forward.5} parent=31 // pred_check
                _
              $region45: #{lstm_lm_forward.5} parent=31 // pred_check_branch
                %230 = sbr.rel (0) target = $region47
              $region46: #{lstm_lm_forward.5} parent=31 // pred_region
                loop: start=0, step=1, limit=1
                $region48: #{lstm_lm_forward.5} parent=46 // loop_pre_header
                  _
                $region49: #{lstm_lm_forward.5} parent=46 // loop_header
                  %s232 = sphi 0, %s236
                  %p233 = scmp.ge.s32.totalorder %s232, 1
                  %s237 = sphi %s181, %s181
                  %s238 = sphi %s175, %s175
                $region50: #{lstm_lm_forward.5} parent=46 // loop_header_branch
                  %235 = sbr.rel (%p233) target = $region54
                $region51: #{lstm_lm_forward.5} parent=46 // loop_body
                  %v239 = vld [vmem:[%s237] sm:$0xff]
                  %240 = vst [vmem:[%s238] sm:$0xff] %v239
                  %v241 = vld [vmem:[%s237 + $0x10] sm:$0xff]
                  %242 = vst [vmem:[%s238 + $0x8] sm:$0xff] %v241
                  %v243 = vld [vmem:[%s237 + $0x20] sm:$0xff]
                  %244 = vst [vmem:[%s238 + $0x10] sm:$0xff] %v243
                  %v245 = vld [vmem:[%s237 + $0x30] sm:$0xff]
                  %246 = vst [vmem:[%s238 + $0x18] sm:$0xff] %v245
                  %v247 = vld [vmem:[%s237 + $0x40] sm:$0xff]
                  %248 = vst [vmem:[%s238 + $0x20] sm:$0xff] %v247
                  %v249 = vld [vmem:[%s237 + $0x50] sm:$0xff]
                  %250 = vst [vmem:[%s238 + $0x28] sm:$0xff] %v249
                  %v251 = vld [vmem:[%s237 + $0x60] sm:$0xff]
                  %252 = vst [vmem:[%s238 + $0x30] sm:$0xff] %v251
                  %v253 = vld [vmem:[%s237 + $0x70] sm:$0xff]
                  %254 = vst [vmem:[%s238 + $0x38] sm:$0xff] %v253
                  %v255 = vld [vmem:[%s237 + $0x80] sm:$0xff]
                  %256 = vst [vmem:[%s238 + $0x40] sm:$0xff] %v255
                  %v257 = vld [vmem:[%s237 + $0x90] sm:$0xff]
                  %258 = vst [vmem:[%s238 + $0x48] sm:$0xff] %v257
                  %v259 = vld [vmem:[%s237 + $0xa0] sm:$0xff]
                  %260 = vst [vmem:[%s238 + $0x50] sm:$0xff] %v259
                  %v261 = vld [vmem:[%s237 + $0xb0] sm:$0xff]
                  %262 = vst [vmem:[%s238 + $0x58] sm:$0xff] %v261
                  %v263 = vld [vmem:[%s237 + $0xc0] sm:$0xff]
                  %264 = vst [vmem:[%s238 + $0x60] sm:$0xff] %v263
                  %v265 = vld [vmem:[%s237 + $0xd0] sm:$0xff]
                  %266 = vst [vmem:[%s238 + $0x68] sm:$0xff] %v265
                  %v267 = vld [vmem:[%s237 + $0xe0] sm:$0xff]
                  %268 = vst [vmem:[%s238 + $0x70] sm:$0xff] %v267
                  %v269 = vld [vmem:[%s237 + $0xf0] sm:$0xff]
                  %270 = vst [vmem:[%s238 + $0x78] sm:$0xff] %v269
                $region52: #{lstm_lm_forward.5} parent=46 // loop_footer
                  %s236 = sadd.s32 1, %s232
                $region53: #{lstm_lm_forward.5} parent=46 // loop_footer_branch
                  %231 = sbr.rel target = $region49
                $region54: #{lstm_lm_forward.5} parent=46 // loop_exit
                  _
              $region47: #{lstm_lm_forward.5} parent=31 // pred_fallthru
                _
              // Predicated region
              $region55: #{lstm_lm_forward.5} parent=31 // pred_check
                _
              $region56: #{lstm_lm_forward.5} parent=31 // pred_check_branch
                %272 = sbr.rel target = $region58
              $region57: #{lstm_lm_forward.5} parent=31 // pred_region
                _
              $region58: #{lstm_lm_forward.5} parent=31 // pred_fallthru
                _
            $region32: #{lstm_lm_forward.5} parent=27 // pred_fallthru
              _
            // Predicated region
            $region33: #{lstm_lm_forward.5} parent=27 // pred_check
              _
            $region34: #{lstm_lm_forward.5} parent=27 // pred_check_branch
              %187 = sbr.rel target = $region36
            $region35: #{lstm_lm_forward.5} parent=27 // pred_region
              loop: start=0, step=1, limit=1
              $region37: #{lstm_lm_forward.5} parent=35 // loop_pre_header
                _
              $region38: #{lstm_lm_forward.5} parent=35 // loop_header
                %s190 = sphi 0, %s194
                %p191 = scmp.ge.s32.totalorder %s190, 1
                %s195 = sphi %s181, %s181
                %s196 = sphi %s175, %s175
              $region39: #{lstm_lm_forward.5} parent=35 // loop_header_branch
                %193 = sbr.rel (%p191) target = $region43
              $region40: #{lstm_lm_forward.5} parent=35 // loop_body
                %v197 = vld [vmem:[%s195] sm:$0xff]
                %198 = vst [vmem:[%s196] sm:$0xff] %v197
                %v199 = vld [vmem:[%s195 + $0x10] sm:$0xff]
                %200 = vst [vmem:[%s196 + $0x8] sm:$0xff] %v199
                %v201 = vld [vmem:[%s195 + $0x20] sm:$0xff]
                %202 = vst [vmem:[%s196 + $0x10] sm:$0xff] %v201
                %v203 = vld [vmem:[%s195 + $0x30] sm:$0xff]
                %204 = vst [vmem:[%s196 + $0x18] sm:$0xff] %v203
                %v205 = vld [vmem:[%s195 + $0x40] sm:$0xff]
                %206 = vst [vmem:[%s196 + $0x20] sm:$0xff] %v205
                %v207 = vld [vmem:[%s195 + $0x50] sm:$0xff]
                %208 = vst [vmem:[%s196 + $0x28] sm:$0xff] %v207
                %v209 = vld [vmem:[%s195 + $0x60] sm:$0xff]
                %210 = vst [vmem:[%s196 + $0x30] sm:$0xff] %v209
                %v211 = vld [vmem:[%s195 + $0x70] sm:$0xff]
                %212 = vst [vmem:[%s196 + $0x38] sm:$0xff] %v211
                %v213 = vld [vmem:[%s195 + $0x80] sm:$0xff]
                %214 = vst [vmem:[%s196 + $0x40] sm:$0xff] %v213
                %v215 = vld [vmem:[%s195 + $0x90] sm:$0xff]
                %216 = vst [vmem:[%s196 + $0x48] sm:$0xff] %v215
                %v217 = vld [vmem:[%s195 + $0xa0] sm:$0xff]
                %218 = vst [vmem:[%s196 + $0x50] sm:$0xff] %v217
                %v219 = vld [vmem:[%s195 + $0xb0] sm:$0xff]
                %220 = vst [vmem:[%s196 + $0x58] sm:$0xff] %v219
                %v221 = vld [vmem:[%s195 + $0xc0] sm:$0xff]
                %222 = vst [vmem:[%s196 + $0x60] sm:$0xff] %v221
                %v223 = vld [vmem:[%s195 + $0xd0] sm:$0xff]
                %224 = vst [vmem:[%s196 + $0x68] sm:$0xff] %v223
                %v225 = vld [vmem:[%s195 + $0xe0] sm:$0xff]
                %226 = vst [vmem:[%s196 + $0x70] sm:$0xff] %v225
                %v227 = vld [vmem:[%s195 + $0xf0] sm:$0xff]
                %228 = vst [vmem:[%s196 + $0x78] sm:$0xff] %v227
              $region41: #{lstm_lm_forward.5} parent=35 // loop_footer
                %s194 = sadd.s32 1, %s190
              $region42: #{lstm_lm_forward.5} parent=35 // loop_footer_branch
                %189 = sbr.rel target = $region38
              $region43: #{lstm_lm_forward.5} parent=35 // loop_exit
                _
            $region36: #{lstm_lm_forward.5} parent=27 // pred_fallthru
              _
          $region28: #{lstm_lm_forward.5} parent=23 // pred_fallthru
            _
          %273 = vnop
        $region24: #{lstm_lm_forward.5} parent=19 // pred_fallthru
          _
        // Predicated region
        $region59: #{lstm_lm_forward.5} parent=19 // pred_check
          %p274 = pneg %p104
        $region60: #{lstm_lm_forward.5} parent=19 // pred_check_branch
          %276 = sbr.rel (%p274) target = $region62
        $region61: #{lstm_lm_forward.5} parent=19 // pred_region
          %s277 = smul.u32 2, %s17
          %p278 = scmp.lt.s32.totalorder %s277, 3
          %s279 = scalar_select %p278, %s277, 3
          %s280 = scalar_lea.vmem %s2, %s279
          %s281 = smul.u32 2, %s17
        $region62: #{lstm_lm_forward.5} parent=19 // pred_fallthru
          _
      $region20: #{lstm_lm_forward.5} parent=5 // pred_fallthru
        _
      %p282 = scmp.le.s32.totalorder 1, %s9
      %p283 = scmp.lt.s32.totalorder %s9, 3
      %p284 = pnand %p282, %p283
      %p285 = pneg %p284
      // Predicated region
      $region63: #{lstm_lm_forward.5} parent=5 // pred_check
        _
      $region64: #{lstm_lm_forward.5} parent=5 // pred_check_branch
        %287 = sbr.rel (%p284) target = $region66
      $region65: #{lstm_lm_forward.5} parent=5 // pred_region
        %s288 = ssub.s32 %s9, 1
        %s289 = sand.u32 %s71, 1
        %s290 = sand.u32 %s71, 1
        %s291 = smul.addr %s290, 128
        %s292 = scalar_lea.vmem [#allocation3], %s291
        // Predicated region
        $region67: #{lstm_lm_forward.5} parent=65 // pred_check
          %p293 = pneg %p84
        $region68: #{lstm_lm_forward.5} parent=65 // pred_check_branch
          %295 = sbr.rel (%p293) target = $region70
        $region69: #{lstm_lm_forward.5} parent=65 // pred_region
          _
        $region70: #{lstm_lm_forward.5} parent=65 // pred_fallthru
          _
        %s296 = smul.u32 2, %s19
        %p297 = scmp.lt.s32.totalorder %s296, 1
        %s298 = scalar_select %p297, %s296, 1
        %p299 = scmp.lt.s32.totalorder %s21, 0
        %s300 = scalar_select %p299, %s21, 0
        %s301 = sadd.s32 %s300, %s298
        %s302 = smul.addr %s301, 4
        %s303 = scalar_lea.vmem %s0, %s302
        %p304 = pneg %p56
        %p305 = pneg %p53
        %s306 = sand.u32 %s71, 1
        %s307 = sand.u32 %s71, 1
        %s308 = smul.addr %s307, 128
        %s309 = scalar_lea.vmem [#allocation3], %s308
        %p310 = pneg %p84
        %p311 = pneg %p81
        %s312 = smul.u32 2, %s20
        %p313 = scmp.lt.s32.totalorder %s312, 3
        %s314 = scalar_select %p313, %s312, 3
        %s315 = scalar_lea.vmem %s2, %s314
        %p316 = pneg %p110
        %p317 = pneg %p107
        %p318 = pneg %p138
        %p319 = pneg %p135
        %s320 = sand.u32 %s125, 1
        %s321 = sand.u32 %s125, 1
        %s322 = smul.addr %s321, 16
        %s323 = scalar_lea.vmem [#allocation4], %s322
        %s324 = smul.u32 2, %s19
        %p325 = scmp.lt.s32.totalorder %s324, 1
        %s326 = scalar_select %p325, %s324, 1
        %p327 = scmp.lt.s32.totalorder %s21, 0
        %s328 = scalar_select %p327, %s21, 0
        %s329 = sadd.s32 %s328, %s326
        %s330 = smul.addr %s329, 4
        %s331 = scalar_lea.vmem %s0, %s330
        %s332 = smul.u32 2, %s19
        %s333 = smul.u32 16, %s21
        %s334 = smul.u32 2, %s20
        %s335 = smul.u32 2, %s20
        %p336 = scmp.lt.s32.totalorder %s335, 3
        %s337 = scalar_select %p336, %s335, 3
        %s338 = scalar_lea.vmem %s2, %s337
        %s339 = smul.u32 2, %s20
        %s340 = smul.u32 2, %s19
        %s341 = smul.u32 2, %s20
        %p343 = scmp.eq.s32.totalorder %s21, 0
        // Predicated region
        $region71: #{lstm_lm_forward.5} parent=65 // pred_check
          %p344 = pneg %p343
        $region72: #{lstm_lm_forward.5} parent=65 // pred_check_branch
          %346 = sbr.rel (%p344) target = $region74
        $region73: #{lstm_lm_forward.5} parent=65 // pred_region
          %347 = vst [vmem:[#allocation2] sm:$0xff] 0.0
          %348 = vst [vmem:[#allocation2 + $0x8] sm:$0xff] 0.0
          %349 = vst [vmem:[#allocation2 + $0x10] sm:$0xff] 0.0
          %350 = vst [vmem:[#allocation2 + $0x18] sm:$0xff] 0.0
        $region74: #{lstm_lm_forward.5} parent=65 // pred_fallthru
          _
        %v351 = vld [vmem:[#allocation2] sm:$0xff]
        %v352 = vld [vmem:[#allocation2 + $0x8] sm:$0xff]
        %v353 = vld [vmem:[#allocation2 + $0x10] sm:$0xff]
        %v354 = vld [vmem:[#allocation2 + $0x18] sm:$0xff]
        %v355 = vld [vmem:[%s331] sm:$0xf]
        %v356 = vld [vmem:[%s331 + $0x4] sm:$0xf]
        %v357 = vld [vmem:[%s292] sm:$0xff]
        %v358 = vld [vmem:[%s292 + $0x8] sm:$0xff]
        %v359 = vld [vmem:[%s292 + $0x10] sm:$0xff]
        %v360 = vld [vmem:[%s292 + $0x18] sm:$0xff]
        %v361 = vld [vmem:[%s292 + $0x20] sm:$0xff]
        %v362 = vld [vmem:[%s292 + $0x28] sm:$0xff]
        %v363 = vld [vmem:[%s292 + $0x30] sm:$0xff]
        %v364 = vld [vmem:[%s292 + $0x38] sm:$0xff]
        %v365 = vld [vmem:[%s292 + $0x40] sm:$0xff]
        %v366 = vld [vmem:[%s292 + $0x48] sm:$0xff]
        %v367 = vld [vmem:[%s292 + $0x50] sm:$0xff]
        %v368 = vld [vmem:[%s292 + $0x58] sm:$0xff]
        %v369 = vld [vmem:[%s292 + $0x60] sm:$0xff]
        %v370 = vld [vmem:[%s292 + $0x68] sm:$0xff]
        %v371 = vld [vmem:[%s292 + $0x70] sm:$0xff]
        %v372 = vld [vmem:[%s292 + $0x78] sm:$0xff]
        %v375 = vunpack.c.l.b16 %v355
        %v376 = vunpack.c.l.b16 %v356
        %v377 = vpack.c.b16 %v376, %v375
        %v395 = vunpack.c.l.b16 %v357
        %v396 = vunpack.c.h.b16 %v357
        %v397 = vunpack.c.l.b16 %v358
        %v398 = vunpack.c.h.b16 %v358
        %v399 = vunpack.c.l.b16 %v359
        %v400 = vunpack.c.h.b16 %v359
        %v401 = vunpack.c.l.b16 %v360
        %v402 = vunpack.c.h.b16 %v360
        %v403 = vunpack.c.l.b16 %v361
        %v404 = vunpack.c.h.b16 %v361
        %v405 = vunpack.c.l.b16 %v362
        %v406 = vunpack.c.h.b16 %v362
        %v407 = vunpack.c.l.b16 %v363
        %v408 = vunpack.c.h.b16 %v363
        %v409 = vunpack.c.l.b16 %v364
        %v410 = vunpack.c.h.b16 %v364
        %v411 = vunpack.c.l.b16 %v365
        %v412 = vunpack.c.h.b16 %v365
        %v413 = vunpack.c.l.b16 %v366
        %v414 = vunpack.c.h.b16 %v366
        %v415 = vunpack.c.l.b16 %v367
        %v416 = vunpack.c.h.b16 %v367
        %v417 = vunpack.c.l.b16 %v368
        %v418 = vunpack.c.h.b16 %v368
        %v419 = vunpack.c.l.b16 %v369
        %v420 = vunpack.c.h.b16 %v369
        %v421 = vunpack.c.l.b16 %v370
        %v422 = vunpack.c.h.b16 %v370
        %v423 = vunpack.c.l.b16 %v371
        %v424 = vunpack.c.h.b16 %v371
        %v425 = vunpack.c.l.b16 %v372
        %v426 = vunpack.c.h.b16 %v372
        %v427 = vpack.c.b16 %v397, %v395
        %v428 = vpack.c.b16 %v398, %v396
        %v429 = vpack.c.b16 %v401, %v399
        %v430 = vpack.c.b16 %v402, %v400
        %v431 = vpack.c.b16 %v405, %v403
        %v432 = vpack.c.b16 %v406, %v404
        %v433 = vpack.c.b16 %v409, %v407
        %v434 = vpack.c.b16 %v410, %v408
        %v435 = vpack.c.b16 %v413, %v411
        %v436 = vpack.c.b16 %v414, %v412
        %v437 = vpack.c.b16 %v417, %v415
        %v438 = vpack.c.b16 %v418, %v416
        %v439 = vpack.c.b16 %v421, %v419
        %v440 = vpack.c.b16 %v422, %v420
        %v441 = vpack.c.b16 %v425, %v423
        %v442 = vpack.c.b16 %v426, %v424
        %459 = vmatprep.subr.bf16.mxu0 %v428
        %460 = vmatpush1.bf16.msra.mxu0 %v427
        %461 = vmatprep.subr.bf16.mxu0 %v430
        %462 = vmatpush1.bf16.msra.mxu0 %v429
        %463 = vmatprep.subr.bf16.mxu0 %v432
        %464 = vmatpush1.bf16.msra.mxu0 %v431
        %465 = vmatprep.subr.bf16.mxu0 %v434
        %466 = vmatpush1.bf16.msra.mxu0 %v433
        %467 = vmatprep.subr.bf16.mxu0 %v436
        %468 = vmatpush1.bf16.msra.mxu0 %v435
        %469 = vmatprep.subr.bf16.mxu0 %v438
        %470 = vmatpush1.bf16.msra.mxu0 %v437
        %471 = vmatprep.subr.bf16.mxu0 %v440
        %472 = vmatpush1.bf16.msra.mxu0 %v439
        %473 = vmatprep.subr.bf16.mxu0 %v442
        %474 = vmatpush1.bf16.msra.mxu0 %v441
        %475 = vmatprep.subr.bf16.mxu0 0
        %476 = vmatpush1.bf16.msra.mxu0 0
        %477 = vmatprep.subr.bf16.mxu0 0
        %478 = vmatpush1.bf16.msra.mxu0 0
        %479 = vmatprep.subr.bf16.mxu0 0
        %480 = vmatpush1.bf16.msra.mxu0 0
        %481 = vmatprep.subr.bf16.mxu0 0
        %482 = vmatpush1.bf16.msra.mxu0 0
        %483 = vmatprep.subr.bf16.mxu0 0
        %484 = vmatpush1.bf16.msra.mxu0 0
        %485 = vmatprep.subr.bf16.mxu0 0
        %486 = vmatpush1.bf16.msra.mxu0 0
        %487 = vmatprep.subr.bf16.mxu0 0
        %488 = vmatpush1.bf16.msra.mxu0 0
        %489 = vmatprep.subr.bf16.mxu0 0
        %490 = vmatpush1.bf16.msra.mxu0 0
        %491 = vmatprep.mubr.bf16.mxu0 0
        %492 = vmatmul.mubr.bf16.gmra.mrb[0].mxu0 %v377
        %v493 = vpop.f32.mrb[0].mxu0
        %v494 = vadd.f32 0.0, %v493
        %v495 = vpop.f32.mrb[0].mxu0
        %v496 = vadd.f32 0.0, %v495
        %v497 = vpop.f32.mrb[0].mxu0
        %v498 = vadd.f32 0.0, %v497
        %v499 = vpop.f32.mrb[0].mxu0
        %v500 = vadd.f32 0.0, %v499
        %501 = vdwg.mxu0
        %v502 = vadd.f32 %v351, %v494
        %v503 = vadd.f32 %v352, %v496
        %v504 = vadd.f32 %v353, %v498
        %v505 = vadd.f32 %v354, %v500
        %506 = vst [vmem:[#allocation2] sm:$0xff] %v502
        %507 = vst [vmem:[#allocation2 + $0x8] sm:$0xff] %v503
        %508 = vst [vmem:[#allocation2 + $0x10] sm:$0xff] %v504
        %509 = vst [vmem:[#allocation2 + $0x18] sm:$0xff] %v505
        // Predicated region
        $region75: #{lstm_lm_forward.5} parent=65 // pred_check
          %p510 = pneg %p343
        $region76: #{lstm_lm_forward.5} parent=65 // pred_check_branch
          %512 = sbr.rel (%p510) target = $region78
        $region77: #{lstm_lm_forward.5} parent=65 // pred_region
          %v513 = vld [vmem:[#allocation2] sm:$0xff]
          %v514 = vld [vmem:[#allocation2 + $0x8] sm:$0xff]
          %v515 = vld [vmem:[#allocation2 + $0x10] sm:$0xff]
          %v516 = vld [vmem:[#allocation2 + $0x18] sm:$0xff]
          %v517 = vld [vmem:[%s338] sm:$0x3]
          %v519 = vlaneseq
          %v520 = vshrl.u32 %v519, 7
          %v521 = vsub.s32 0, %v520
          %v522 = vrot.slane %v517, %v521
          %v523 = vlaneseq
          %v524 = vshrl.u32 %v523, 7
          %v525 = vsub.s32 1, %v524
          %v526 = vrot.slane %v517, %v525
          %v529 = vadd.f32 %v513, %v522
          %v530 = vadd.f32 %v514, %v526
          %v531 = vadd.f32 %v515, %v522
          %v532 = vadd.f32 %v516, %v526
          %v533 = vpack.c.bf16 %v531, %v529
          %v534 = vpack.c.bf16 %v532, %v530
          %v537 = vunpack.c.l.b16 %v533
          %v538 = vunpack.c.l.b16 %v534
          %v539 = vunpack.c.h.b16 %v533
          %v540 = vunpack.c.h.b16 %v534
          %v541 = vpack.c.b16 %v538, %v537
          %v542 = vpack.c.b16 %v540, %v539
          %545 = vst [vmem:[%s323] sm:$0xff] %v541
          %546 = vst [vmem:[%s323 + $0x8] sm:$0xff] %v542
        $region78: #{lstm_lm_forward.5} parent=65 // pred_fallthru
          _
        %s547 = sand.u32 %s125, 1
        %s548 = sand.u32 %s125, 1
        %s549 = smul.addr %s548, 16
        %s550 = scalar_lea.vmem [#allocation4], %s549
        // Predicated region
        $region79: #{lstm_lm_forward.5} parent=65 // pred_check
          %p551 = pneg %p135
        $region80: #{lstm_lm_forward.5} parent=65 // pred_check_branch
          %553 = sbr.rel (%p551) target = $region82
        $region81: #{lstm_lm_forward.5} parent=65 // pred_region
          %s554 = smul.u32 2, %s19
          %s555 = smul.u32 2, %s20
          %s556 = smul.addr %s554, 4
          %s557 = sadd.s32 %s555, %s556
          %s558 = smul.addr %s557, 4
          %s559 = scalar_lea.vmem %s3, %s558
          // Predicated region
          $region83: #{lstm_lm_forward.5} parent=81 // pred_check
            _
          $region84: #{lstm_lm_forward.5} parent=81 // pred_check_branch
            %561 = sbr.rel (0) target = $region86
          $region85: #{lstm_lm_forward.5} parent=81 // pred_region
            // Predicated region
            $region87: #{lstm_lm_forward.5} parent=85 // pred_check
              _
            $region88: #{lstm_lm_forward.5} parent=85 // pred_check_branch
              %563 = sbr.rel (0) target = $region90
            $region89: #{lstm_lm_forward.5} parent=85 // pred_region
              // Predicated region
              $region102: #{lstm_lm_forward.5} parent=89 // pred_check
                _
              $region103: #{lstm_lm_forward.5} parent=89 // pred_check_branch
                %580 = sbr.rel (0) target = $region105
              $region104: #{lstm_lm_forward.5} parent=89 // pred_region
                loop: start=0, step=1, limit=1
                $region106: #{lstm_lm_forward.5} parent=104 // loop_pre_header
                  _
                $region107: #{lstm_lm_forward.5} parent=104 // loop_header
                  %s582 = sphi 0, %s586
                  %p583 = scmp.ge.s32.totalorder %s582, 1
                  %s587 = sphi %s550, %s550
                  %s588 = sphi %s559, %s559
                $region108: #{lstm_lm_forward.5} parent=104 // loop_header_branch
                  %585 = sbr.rel (%p583) target = $region112
                $region109: #{lstm_lm_forward.5} parent=104 // loop_body
                  %v589 = vld [vmem:[%s587] sm:$0xff]
                  %590 = vst [vmem:[%s588] sm:$0xff] %v589
                  %v591 = vld [vmem:[%s587 + $0x8] sm:$0xff]
                  %592 = vst [vmem:[%s588 + $0x10] sm:$0xff] %v591
                $region110: #{lstm_lm_forward.5} parent=104 // loop_footer
                  %s586 = sadd.s32 1, %s582
                $region111: #{lstm_lm_forward.5} parent=104 // loop_footer_branch
                  %581 = sbr.rel target = $region107
                $region112: #{lstm_lm_forward.5} parent=104 // loop_exit
                  _
              $region105: #{lstm_lm_forward.5} parent=89 // pred_fallthru
                _
              // Predicated region
              $region113: #{lstm_lm_forward.5} parent=89 // pred_check
                _
              $region114: #{lstm_lm_forward.5} parent=89 // pred_check_branch
                %594 = sbr.rel target = $region116
              $region115: #{lstm_lm_forward.5} parent=89 // pred_region
                _
              $region116: #{lstm_lm_forward.5} parent=89 // pred_fallthru
                _
            $region90: #{lstm_lm_forward.5} parent=85 // pred_fallthru
              _
            // Predicated region
            $region91: #{lstm_lm_forward.5} parent=85 // pred_check
              _
            $region92: #{lstm_lm_forward.5} parent=85 // pred_check_branch
              %565 = sbr.rel target = $region94
            $region93: #{lstm_lm_forward.5} parent=85 // pred_region
              loop: start=0, step=1, limit=1
              $region95: #{lstm_lm_forward.5} parent=93 // loop_pre_header
                _
              $region96: #{lstm_lm_forward.5} parent=93 // loop_header
                %s568 = sphi 0, %s572
                %p569 = scmp.ge.s32.totalorder %s568, 1
                %s573 = sphi %s550, %s550
                %s574 = sphi %s559, %s559
              $region97: #{lstm_lm_forward.5} parent=93 // loop_header_branch
                %571 = sbr.rel (%p569) target = $region101
              $region98: #{lstm_lm_forward.5} parent=93 // loop_body
                %v575 = vld [vmem:[%s573] sm:$0xff]
                %576 = vst [vmem:[%s574] sm:$0xff] %v575
                %v577 = vld [vmem:[%s573 + $0x8] sm:$0xff]
                %578 = vst [vmem:[%s574 + $0x10] sm:$0xff] %v577
              $region99: #{lstm_lm_forward.5} parent=93 // loop_footer
                %s572 = sadd.s32 1, %s568
              $region100: #{lstm_lm_forward.5} parent=93 // loop_footer_branch
                %567 = sbr.rel target = $region96
              $region101: #{lstm_lm_forward.5} parent=93 // loop_exit
                _
            $region94: #{lstm_lm_forward.5} parent=85 // pred_fallthru
              _
          $region86: #{lstm_lm_forward.5} parent=81 // pred_fallthru
            _
          %595 = vnop
        $region82: #{lstm_lm_forward.5} parent=65 // pred_fallthru
          _
      $region66: #{lstm_lm_forward.5} parent=5 // pred_fallthru
        _
      %p596 = scmp.le.s32.totalorder 2, %s9
      // Predicated region
      $region117: #{lstm_lm_forward.5} parent=5 // pred_check
        %p597 = pneg %p596
      $region118: #{lstm_lm_forward.5} parent=5 // pred_check_branch
        %599 = sbr.rel (%p597) target = $region120
      $region119: #{lstm_lm_forward.5} parent=5 // pred_region
        %s600 = ssub.s32 %s9, 2
        // Predicated region
        $region121: #{lstm_lm_forward.5} parent=119 // pred_check
          %p601 = pneg %p141
        $region122: #{lstm_lm_forward.5} parent=119 // pred_check_branch
          %603 = sbr.rel (%p601) target = $region124
        $region123: #{lstm_lm_forward.5} parent=119 // pred_region
          %s604 = sand.u32 %s126, 1
          %s605 = sand.u32 %s126, 1
          %s606 = smul.addr %s605, 16
          %s607 = scalar_lea.vmem [#allocation4], %s606
        $region124: #{lstm_lm_forward.5} parent=119 // pred_fallthru
          _
      $region120: #{lstm_lm_forward.5} parent=5 // pred_fallthru
        _
    $region6: #{lstm_lm_forward.5} parent=1 // loop_footer
      %s13 = sadd.s32 1, %s9
    $region7: #{lstm_lm_forward.5} parent=1 // loop_footer_branch
      %8 = sbr.rel target = $region3
    $region8: #{lstm_lm_forward.5} parent=1 // loop_exit
      _

// kernel: lstm_lm_forward.9
$region0: #{lstm_lm_forward.9}
  #allocation0 [shape = 'u32[]', space=smem, size = 0x4, offset = 0x4, fixed_abs, tag = 'smem constant byte address 0x4 - core index']
  #allocation1 [shape = 'u32[144,128]{1,0:T(1,128)}', space=vmem, size = 0x12000, scoped, tag = 'internal scratch']
  #allocation2 [shape = 'f32[16,128]{1,0:T(8,128)}', space=vmem, size = 0x2000, scoped, tag = 'scratch operand']
  %s0 = inlined_call_operand.vmem [shape: bf16[16,128], index: 0, kind: input, shape index: {}]
  %s1 = inlined_call_operand.vmem [shape: bf16[128,128], index: 1, kind: input, shape index: {}]
  %s2 = inlined_call_operand.vmem [shape: f32[1,128], index: 2, kind: input, shape index: {}]
  %s3 = inlined_call_operand.hbm [shape: f32[16,128], index: 3, kind: output, shape index: {}]
  %s4 = sld [smem:[#allocation0]]
  $region30: #{lstm_lm_forward.9} parent=0
    _
  %s6 = ssub.s32 1, %s4
  %s7 = scalar_select 0, %s6, %s4
  $region1: #{lstm_lm_forward.9} parent=0
    #allocation3 [shape = 'u8[8192]{0}', space=vmem, size = 0x2000, scoped, tag = 'output window, operand 0, single buffered']
    #allocation4 [shape = 's32[1]{0}', space=sflag, size = 0x4, scoped, tag = 'scoped memory for lstm_lm_forward.9']
    %8 = vsyncpa [#allocation4], 0
    // Predicated region
    $region2: #{lstm_lm_forward.9} parent=1 // pred_check
      _
    $region3: #{lstm_lm_forward.9} parent=1 // pred_check_branch
      %10 = sbr.rel (0) target = $region5
    $region4: #{lstm_lm_forward.9} parent=1 // pred_region
      _
    $region5: #{lstm_lm_forward.9} parent=1 // pred_fallthru
      _
    // Predicated region
    $region6: #{lstm_lm_forward.9} parent=1 // pred_check
      _
    $region7: #{lstm_lm_forward.9} parent=1 // pred_check_branch
      %12 = sbr.rel (0) target = $region9
    $region8: #{lstm_lm_forward.9} parent=1 // pred_region
      _
    $region9: #{lstm_lm_forward.9} parent=1 // pred_fallthru
      _
    // Predicated region
    $region10: #{lstm_lm_forward.9} parent=1 // pred_check
      _
    $region11: #{lstm_lm_forward.9} parent=1 // pred_check_branch
      %14 = sbr.rel (0) target = $region13
    $region12: #{lstm_lm_forward.9} parent=1 // pred_region
      _
    $region13: #{lstm_lm_forward.9} parent=1 // pred_fallthru
      _
    %p16 = scmp.eq.s32.totalorder 0, 0
    // Predicated region
    $region14: #{lstm_lm_forward.9} parent=1 // pred_check
      %p17 = pneg %p16
    $region15: #{lstm_lm_forward.9} parent=1 // pred_check_branch
      %19 = sbr.rel (%p17) target = $region17
    $region16: #{lstm_lm_forward.9} parent=1 // pred_region
      %20 = vst [vmem:[#allocation2] sm:$0xff] 0.0
      %21 = vst [vmem:[#allocation2 + $0x8] sm:$0xff] 0.0
    $region17: #{lstm_lm_forward.9} parent=1 // pred_fallthru
      _
    %v22 = vld [vmem:[#allocation2] sm:$0xff]
    %v23 = vld [vmem:[#allocation2 + $0x8] sm:$0xff]
    %v24 = vld [vmem:[%s0] sm:$0xf]
    %v25 = vld [vmem:[%s0 + $0x4] sm:$0xf]
    %v26 = vld [vmem:[%s1] sm:$0xf]
    %v27 = vld [vmem:[%s1 + $0x4] sm:$0xf]
    %v28 = vld [vmem:[%s1 + $0x8] sm:$0xf]
    %v29 = vld [vmem:[%s1 + $0xc] sm:$0xf]
    %v30 = vld [vmem:[%s1 + $0x10] sm:$0xf]
    %v31 = vld [vmem:[%s1 + $0x14] sm:$0xf]
    %v32 = vld [vmem:[%s1 + $0x18] sm:$0xf]
    %v33 = vld [vmem:[%s1 + $0x1c] sm:$0xf]
    %v34 = vld [vmem:[%s1 + $0x20] sm:$0xf]
    %v35 = vld [vmem:[%s1 + $0x24] sm:$0xf]
    %v36 = vld [vmem:[%s1 + $0x28] sm:$0xf]
    %v37 = vld [vmem:[%s1 + $0x2c] sm:$0xf]
    %v38 = vld [vmem:[%s1 + $0x30] sm:$0xf]
    %v39 = vld [vmem:[%s1 + $0x34] sm:$0xf]
    %v40 = vld [vmem:[%s1 + $0x38] sm:$0xf]
    %v41 = vld [vmem:[%s1 + $0x3c] sm:$0xf]
    %v44 = vunpack.c.l.b16 %v24
    %v45 = vunpack.c.l.b16 %v25
    %v46 = vpack.c.b16 %v45, %v44
    %v64 = vunpack.c.l.b16 %v26
    %v65 = vunpack.c.l.b16 %v27
    %v66 = vunpack.c.l.b16 %v28
    %v67 = vunpack.c.l.b16 %v29
    %v68 = vunpack.c.l.b16 %v30
    %v69 = vunpack.c.l.b16 %v31
    %v70 = vunpack.c.l.b16 %v32
    %v71 = vunpack.c.l.b16 %v33
    %v72 = vunpack.c.l.b16 %v34
    %v73 = vunpack.c.l.b16 %v35
    %v74 = vunpack.c.l.b16 %v36
    %v75 = vunpack.c.l.b16 %v37
    %v76 = vunpack.c.l.b16 %v38
    %v77 = vunpack.c.l.b16 %v39
    %v78 = vunpack.c.l.b16 %v40
    %v79 = vunpack.c.l.b16 %v41
    %v80 = vpack.c.b16 %v65, %v64
    %v81 = vpack.c.b16 %v67, %v66
    %v82 = vpack.c.b16 %v69, %v68
    %v83 = vpack.c.b16 %v71, %v70
    %v84 = vpack.c.b16 %v73, %v72
    %v85 = vpack.c.b16 %v75, %v74
    %v86 = vpack.c.b16 %v77, %v76
    %v87 = vpack.c.b16 %v79, %v78
    %96 = vmatprep.subr.bf16.mxu0 0
    %97 = vmatpush1.bf16.msra.mxu0 %v80
    %98 = vmatprep.subr.bf16.mxu0 0
    %99 = vmatpush1.bf16.msra.mxu0 %v81
    %100 = vmatprep.subr.bf16.mxu0 0
    %101 = vmatpush1.bf16.msra.mxu0 %v82
    %102 = vmatprep.subr.bf16.mxu0 0
    %103 = vmatpush1.bf16.msra.mxu0 %v83
    %104 = vmatprep.subr.bf16.mxu0 0
    %105 = vmatpush1.bf16.msra.mxu0 %v84
    %106 = vmatprep.subr.bf16.mxu0 0
    %107 = vmatpush1.bf16.msra.mxu0 %v85
    %108 = vmatprep.subr.bf16.mxu0 0
    %109 = vmatpush1.bf16.msra.mxu0 %v86
    %110 = vmatprep.subr.bf16.mxu0 0
    %111 = vmatpush1.bf16.msra.mxu0 %v87
    %112 = vmatprep.subr.bf16.mxu0 0
    %113 = vmatpush1.bf16.msra.mxu0 0
    %114 = vmatprep.subr.bf16.mxu0 0
    %115 = vmatpush1.bf16.msra.mxu0 0
    %116 = vmatprep.subr.bf16.mxu0 0
    %117 = vmatpush1.bf16.msra.mxu0 0
    %118 = vmatprep.subr.bf16.mxu0 0
    %119 = vmatpush1.bf16.msra.mxu0 0
    %120 = vmatprep.subr.bf16.mxu0 0
    %121 = vmatpush1.bf16.msra.mxu0 0
    %122 = vmatprep.subr.bf16.mxu0 0
    %123 = vmatpush1.bf16.msra.mxu0 0
    %124 = vmatprep.subr.bf16.mxu0 0
    %125 = vmatpush1.bf16.msra.mxu0 0
    %126 = vmatprep.subr.bf16.mxu0 0
    %127 = vmatpush1.bf16.msra.mxu0 0
    %128 = vmatprep.mubr.bf16.mxu0 0
    %129 = vmatmul.mubr.bf16.gmra.mrb[0].mxu0 %v46
    %v130 = vpop.f32.mrb[0].mxu0
    %v131 = vadd.f32 0.0, %v130
    %v132 = vpop.f32.mrb[0].mxu0
    %v133 = vpop.f32.mrb[0].mxu0
    %v134 = vadd.f32 0.0, %v133
    %v135 = vpop.f32.mrb[0].mxu0
    %136 = vdwg.mxu0
    %v137 = vadd.f32 %v22, %v131
    %v138 = vadd.f32 %v23, %v134
    %139 = vst [vmem:[#allocation2] sm:$0xff] %v137
    %140 = vst [vmem:[#allocation2 + $0x8] sm:$0xff] %v138
    // Predicated region
    $region18: #{lstm_lm_forward.9} parent=1 // pred_check
      %p141 = pneg %p16
    $region19: #{lstm_lm_forward.9} parent=1 // pred_check_branch
      %143 = sbr.rel (%p141) target = $region21
    $region20: #{lstm_lm_forward.9} parent=1 // pred_region
      %v144 = vld [vmem:[#allocation2] sm:$0xff]
      %v145 = vld [vmem:[#allocation2 + $0x8] sm:$0xff]
      %v146 = vld [vmem:[%s2] sm:$0x1]
      %v148 = vlaneseq
      %v149 = vshrl.u32 %v148, 7
      %v150 = vsub.s32 0, %v149
      %v151 = vrot.slane %v146, %v150
      %v153 = vadd.f32 %v144, %v151
      %v154 = vadd.f32 %v145, %v151
      %155 = vst [vmem:[#allocation3] sm:$0xff] %v153
      %156 = vst [vmem:[#allocation3 + $0x8] sm:$0xff] %v154
    $region21: #{lstm_lm_forward.9} parent=1 // pred_fallthru
      _
    // Predicated region
    $region22: #{lstm_lm_forward.9} parent=1 // pred_check
      _
    $region23: #{lstm_lm_forward.9} parent=1 // pred_check_branch
      %158 = sbr.rel (0) target = $region25
    $region24: #{lstm_lm_forward.9} parent=1 // pred_region
      %s160 = ssub.s32 256, 256
      %161 = vsyncadd [#allocation4], %s160
      %s162 = sshll.u32 [#allocation3], 4
      %s163 = int_to_ptr.vmem [resolvable:$true] %s162
      %168 = dma.vmem_to_hbm [thread:$0]  %s163, 256, %s3, [#allocation4], 128, 128, 8
    $region25: #{lstm_lm_forward.9} parent=1 // pred_fallthru
      _
    // Predicated region
    $region26: #{lstm_lm_forward.9} parent=1 // pred_check
      _
    $region27: #{lstm_lm_forward.9} parent=1 // pred_check_branch
      %170 = sbr.rel (0) target = $region29
    $region28: #{lstm_lm_forward.9} parent=1 // pred_region
      %171 = dma.done [#allocation4], 256
    $region29: #{lstm_lm_forward.9} parent=1 // pred_fallthru
      _
    %172 = vsyncpa [#allocation4], 1

// kernel: lstm_lm_forward.6
$region0: #{lstm_lm_forward.6}
  #allocation0 [shape = 'u32[]', space=smem, size = 0x4, offset = 0x4, fixed_abs, tag = 'smem constant byte address 0x4 - core index']
  #allocation1 [shape = 'u32[144,128]{1,0:T(1,128)}', space=vmem, size = 0x12000, scoped, tag = 'internal scratch']
  #allocation2 [shape = 'f32[2,128]{1,0:T(2,128)}', space=vmem, size = 0x400, scoped, tag = 'scratch operand']
  #allocation3 [shape = 'f32[2,128]{1,0:T(2,128)}', space=vmem, size = 0x400, scoped, tag = 'scratch operand']
  %s0 = inlined_call_operand.vmem [shape: bf16[8,2,512], index: 0, kind: input, shape index: {}]
  %s1 = inlined_call_operand.vmem [shape: bf16[128,512], index: 1, kind: input, shape index: {}]
  %s2 = inlined_call_operand.vmem [shape: bf16[8,2,128], index: 2, kind: output, shape index: {0}]
  %s3 = inlined_call_operand.vmem [shape: f32[2,128], index: 3, kind: output, shape index: {1}]
  %s4 = inlined_call_operand.vmem [shape: f32[2,128], index: 4, kind: output, shape index: {2}]
  %5 = xla_tuple %s2, %s3, %s4
  %s6 = sld [smem:[#allocation0]]
  $region42: #{lstm_lm_forward.6} parent=0
    _
  %s8 = ssub.s32 1, %s6
  %s9 = scalar_select 0, %s8, %s6
  // Predicated region
  $region2: #{lstm_lm_forward.6} parent=0 // pred_check
    _
  $region3: #{lstm_lm_forward.6} parent=0 // pred_check_branch
    %11 = sbr.rel (0) target = $region5
  $region4: #{lstm_lm_forward.6} parent=0 // pred_region
    _
  $region5: #{lstm_lm_forward.6} parent=0 // pred_fallthru
    _
  // Predicated region
  $region6: #{lstm_lm_forward.6} parent=0 // pred_check
    _
  $region7: #{lstm_lm_forward.6} parent=0 // pred_check_branch
    %13 = sbr.rel (0) target = $region9
  $region8: #{lstm_lm_forward.6} parent=0 // pred_region
    _
  $region9: #{lstm_lm_forward.6} parent=0 // pred_fallthru
    _
  %p15 = scmp.eq.s32.totalorder 0, 0
  // Predicated region
  $region10: #{lstm_lm_forward.6} parent=0 // pred_check
    %p16 = pneg %p15
  $region11: #{lstm_lm_forward.6} parent=0 // pred_check_branch
    %18 = sbr.rel (%p16) target = $region13
  $region12: #{lstm_lm_forward.6} parent=0 // pred_region
    %19 = vst [vmem:[#allocation2] sm:$0x3] 0.0
    %20 = vst [vmem:[#allocation3] sm:$0x3] 0.0
  $region13: #{lstm_lm_forward.6} parent=0 // pred_fallthru
    _
  %v21 = vld [vmem:[%s1] sm:$0xff]
  %v22 = vld [vmem:[%s1 + $0x8] sm:$0xff]
  %v23 = vld [vmem:[%s1 + $0x10] sm:$0xff]
  %v24 = vld [vmem:[%s1 + $0x18] sm:$0xff]
  %v25 = vld [vmem:[%s1 + $0x20] sm:$0xff]
  %v26 = vld [vmem:[%s1 + $0x28] sm:$0xff]
  %v27 = vld [vmem:[%s1 + $0x30] sm:$0xff]
  %v28 = vld [vmem:[%s1 + $0x38] sm:$0xff]
  %v29 = vld [vmem:[%s1 + $0x40] sm:$0xff]
  %v30 = vld [vmem:[%s1 + $0x48] sm:$0xff]
  %v31 = vld [vmem:[%s1 + $0x50] sm:$0xff]
  %v32 = vld [vmem:[%s1 + $0x58] sm:$0xff]
  %v33 = vld [vmem:[%s1 + $0x60] sm:$0xff]
  %v34 = vld [vmem:[%s1 + $0x68] sm:$0xff]
  %v35 = vld [vmem:[%s1 + $0x70] sm:$0xff]
  %v36 = vld [vmem:[%s1 + $0x78] sm:$0xff]
  %v37 = vld [vmem:[%s1 + $0x80] sm:$0xff]
  %v38 = vld [vmem:[%s1 + $0x88] sm:$0xff]
  %v39 = vld [vmem:[%s1 + $0x90] sm:$0xff]
  %v40 = vld [vmem:[%s1 + $0x98] sm:$0xff]
  %v41 = vld [vmem:[%s1 + $0xa0] sm:$0xff]
  %v42 = vld [vmem:[%s1 + $0xa8] sm:$0xff]
  %v43 = vld [vmem:[%s1 + $0xb0] sm:$0xff]
  %v44 = vld [vmem:[%s1 + $0xb8] sm:$0xff]
  %v45 = vld [vmem:[%s1 + $0xc0] sm:$0xff]
  %v46 = vld [vmem:[%s1 + $0xc8] sm:$0xff]
  %v47 = vld [vmem:[%s1 + $0xd0] sm:$0xff]
  %v48 = vld [vmem:[%s1 + $0xd8] sm:$0xff]
  %v49 = vld [vmem:[%s1 + $0xe0] sm:$0xff]
  %v50 = vld [vmem:[%s1 + $0xe8] sm:$0xff]
  %v51 = vld [vmem:[%s1 + $0xf0] sm:$0xff]
  %v52 = vld [vmem:[%s1 + $0xf8] sm:$0xff]
  %v53 = vld [vmem:[#allocation2] sm:$0x3]
  %v54 = vld [vmem:[#allocation3] sm:$0x3]
  %v55 = vld [vmem:[%s0] sm:$0xf]
  %v56 = vunpack.c.l.bf16 %v55
  %v57 = vpack.c.bf16 %v53, %v53
  %v90 = vunpack.c.l.b16 %v21
  %v91 = vunpack.c.h.b16 %v21
  %v92 = vunpack.c.l.b16 %v22
  %v93 = vunpack.c.h.b16 %v22
  %v94 = vunpack.c.l.b16 %v23
  %v95 = vunpack.c.h.b16 %v23
  %v96 = vunpack.c.l.b16 %v24
  %v97 = vunpack.c.h.b16 %v24
  %v98 = vunpack.c.l.b16 %v25
  %v99 = vunpack.c.h.b16 %v25
  %v100 = vunpack.c.l.b16 %v26
  %v101 = vunpack.c.h.b16 %v26
  %v102 = vunpack.c.l.b16 %v27
  %v103 = vunpack.c.h.b16 %v27
  %v104 = vunpack.c.l.b16 %v28
  %v105 = vunpack.c.h.b16 %v28
  %v106 = vunpack.c.l.b16 %v29
  %v107 = vunpack.c.h.b16 %v29
  %v108 = vunpack.c.l.b16 %v30
  %v109 = vunpack.c.h.b16 %v30
  %v110 = vunpack.c.l.b16 %v31
  %v111 = vunpack.c.h.b16 %v31
  %v112 = vunpack.c.l.b16 %v32
  %v113 = vunpack.c.h.b16 %v32
  %v114 = vunpack.c.l.b16 %v33
  %v115 = vunpack.c.h.b16 %v33
  %v116 = vunpack.c.l.b16 %v34
  %v117 = vunpack.c.h.b16 %v34
  %v118 = vunpack.c.l.b16 %v35
  %v119 = vunpack.c.h.b16 %v35
  %v120 = vunpack.c.l.b16 %v36
  %v121 = vunpack.c.h.b16 %v36
  %v122 = vunpack.c.l.b16 %v37
  %v123 = vunpack.c.h.b16 %v37
  %v124 = vunpack.c.l.b16 %v38
  %v125 = vunpack.c.h.b16 %v38
  %v126 = vunpack.c.l.b16 %v39
  %v127 = vunpack.c.h.b16 %v39
  %v128 = vunpack.c.l.b16 %v40
  %v129 = vunpack.c.h.b16 %v40
  %v130 = vunpack.c.l.b16 %v41
  %v131 = vunpack.c.h.b16 %v41
  %v132 = vunpack.c.l.b16 %v42
  %v133 = vunpack.c.h.b16 %v42
  %v134 = vunpack.c.l.b16 %v43
  %v135 = vunpack.c.h.b16 %v43
  %v136 = vunpack.c.l.b16 %v44
  %v137 = vunpack.c.h.b16 %v44
  %v138 = vunpack.c.l.b16 %v45
  %v139 = vunpack.c.h.b16 %v45
  %v140 = vunpack.c.l.b16 %v46
  %v141 = vunpack.c.h.b16 %v46
  %v142 = vunpack.c.l.b16 %v47
  %v143 = vunpack.c.h.b16 %v47
  %v144 = vunpack.c.l.b16 %v48
  %v145 = vunpack.c.h.b16 %v48
  %v146 = vunpack.c.l.b16 %v49
  %v147 = vunpack.c.h.b16 %v49
  %v148 = vunpack.c.l.b16 %v50
  %v149 = vunpack.c.h.b16 %v50
  %v150 = vunpack.c.l.b16 %v51
  %v151 = vunpack.c.h.b16 %v51
  %v152 = vunpack.c.l.b16 %v52
  %v153 = vunpack.c.h.b16 %v52
  %v154 = vpack.c.b16 %v94, %v90
  %v155 = vpack.c.b16 %v95, %v91
  %v156 = vpack.c.b16 %v96, %v92
  %v157 = vpack.c.b16 %v97, %v93
  %v158 = vpack.c.b16 %v102, %v98
  %v159 = vpack.c.b16 %v103, %v99
  %v160 = vpack.c.b16 %v104, %v100
  %v161 = vpack.c.b16 %v105, %v101
  %v162 = vpack.c.b16 %v110, %v106
  %v163 = vpack.c.b16 %v111, %v107
  %v164 = vpack.c.b16 %v112, %v108
  %v165 = vpack.c.b16 %v113, %v109
  %v166 = vpack.c.b16 %v118, %v114
  %v167 = vpack.c.b16 %v119, %v115
  %v168 = vpack.c.b16 %v120, %v116
  %v169 = vpack.c.b16 %v121, %v117
  %v170 = vpack.c.b16 %v126, %v122
  %v171 = vpack.c.b16 %v127, %v123
  %v172 = vpack.c.b16 %v128, %v124
  %v173 = vpack.c.b16 %v129, %v125
  %v174 = vpack.c.b16 %v134, %v130
  %v175 = vpack.c.b16 %v135, %v131
  %v176 = vpack.c.b16 %v136, %v132
  %v177 = vpack.c.b16 %v137, %v133
  %v178 = vpack.c.b16 %v142, %v138
  %v179 = vpack.c.b16 %v143, %v139
  %v180 = vpack.c.b16 %v144, %v140
  %v181 = vpack.c.b16 %v145, %v141
  %v182 = vpack.c.b16 %v150, %v146
  %v183 = vpack.c.b16 %v151, %v147
  %v184 = vpack.c.b16 %v152, %v148
  %v185 = vpack.c.b16 %v153, %v149
  %218 = vmatprep.subr.bf16.mxu0 %v155
  %219 = vmatpush1.bf16.msra.mxu0 %v154
  %220 = vmatprep.subr.bf16.mxu0 %v159
  %221 = vmatpush1.bf16.msra.mxu0 %v158
  %222 = vmatprep.subr.bf16.mxu0 %v163
  %223 = vmatpush1.bf16.msra.mxu0 %v162
  %224 = vmatprep.subr.bf16.mxu0 %v167
  %225 = vmatpush1.bf16.msra.mxu0 %v166
  %226 = vmatprep.subr.bf16.mxu0 %v171
  %227 = vmatpush1.bf16.msra.mxu0 %v170
  %228 = vmatprep.subr.bf16.mxu0 %v175
  %229 = vmatpush1.bf16.msra.mxu0 %v174
  %230 = vmatprep.subr.bf16.mxu0 %v179
  %231 = vmatpush1.bf16.msra.mxu0 %v178
  %232 = vmatprep.subr.bf16.mxu0 %v183
  %233 = vmatpush1.bf16.msra.mxu0 %v182
  %234 = vmatprep.subr.bf16.mxu0 0
  %235 = vmatpush1.bf16.msra.mxu0 0
  %236 = vmatprep.subr.bf16.mxu0 0
  %237 = vmatpush1.bf16.msra.mxu0 0
  %238 = vmatprep.subr.bf16.mxu0 0
  %239 = vmatpush1.bf16.msra.mxu0 0
  %240 = vmatprep.subr.bf16.mxu0 0
  %241 = vmatpush1.bf16.msra.mxu0 0
  %242 = vmatprep.subr.bf16.mxu0 0
  %243 = vmatpush1.bf16.msra.mxu0 0
  %244 = vmatprep.subr.bf16.mxu0 0
  %245 = vmatpush1.bf16.msra.mxu0 0
  %246 = vmatprep.subr.bf16.mxu0 0
  %247 = vmatpush1.bf16.msra.mxu0 0
  %248 = vmatprep.subr.bf16.mxu0 0
  %249 = vmatpush1.bf16.msra.mxu0 0
  %250 = vmatprep.mubr.bf16.mxu0 0
  %251 = vmatmul.mubr.bf16.gmra.mrb[0].mxu0 %v57
  %v252 = vpop.f32.mrb[0].mxu0
  %v253 = vadd.f32 0.0, %v252
  %v254 = vpop.f32.mrb[0].mxu0
  %v255 = vadd.f32 0.0, %v254
  %v256 = vpop.f32.mrb[0].mxu0
  %v257 = vpop.f32.mrb[0].mxu0
  %258 = vdwg.mxu0
  %259 = vmatprep.subr.bf16.mxu0 %v157
  %260 = vmatpush1.bf16.msra.mxu0 %v156
  %261 = vmatprep.subr.bf16.mxu0 %v161
  %262 = vmatpush1.bf16.msra.mxu0 %v160
  %263 = vmatprep.subr.bf16.mxu0 %v165
  %264 = vmatpush1.bf16.msra.mxu0 %v164
  %265 = vmatprep.subr.bf16.mxu0 %v169
  %266 = vmatpush1.bf16.msra.mxu0 %v168
  %267 = vmatprep.subr.bf16.mxu0 %v173
  %268 = vmatpush1.bf16.msra.mxu0 %v172
  %269 = vmatprep.subr.bf16.mxu0 %v177
  %270 = vmatpush1.bf16.msra.mxu0 %v176
  %271 = vmatprep.subr.bf16.mxu0 %v181
  %272 = vmatpush1.bf16.msra.mxu0 %v180
  %273 = vmatprep.subr.bf16.mxu0 %v185
  %274 = vmatpush1.bf16.msra.mxu0 %v184
  %275 = vmatprep.subr.bf16.mxu0 0
  %276 = vmatpush1.bf16.msra.mxu0 0
  %277 = vmatprep.subr.bf16.mxu0 0
  %278 = vmatpush1.bf16.msra.mxu0 0
  %279 = vmatprep.subr.bf16.mxu0 0
  %280 = vmatpush1.bf16.msra.mxu0 0
  %281 = vmatprep.subr.bf16.mxu0 0
  %282 = vmatpush1.bf16.msra.mxu0 0
  %283 = vmatprep.subr.bf16.mxu0 0
  %284 = vmatpush1.bf16.msra.mxu0 0
  %285 = vmatprep.subr.bf16.mxu0 0
  %286 = vmatpush1.bf16.msra.mxu0 0
  %287 = vmatprep.subr.bf16.mxu0 0
  %288 = vmatpush1.bf16.msra.mxu0 0
  %289 = vmatprep.subr.bf16.mxu0 0
  %290 = vmatpush1.bf16.msra.mxu0 0
  %291 = vmatprep.mubr.bf16.mxu0 0
  %292 = vmatmul.mubr.bf16.gmra.mrb[0].mxu0 %v57
  %v293 = vpop.f32.mrb[0].mxu0
  %v294 = vadd.f32 0.0, %v293
  %v295 = vpop.f32.mrb[0].mxu0
  %v296 = vadd.f32 0.0, %v295
  %v297 = vpop.f32.mrb[0].mxu0
  %v298 = vpop.f32.mrb[0].mxu0
  %299 = vdwg.mxu0
  %v304 = vcombine.low %v253, %v255
  %v305 = vcombine.low %v294, %v296
  %v307 = vunpack.c.l.s4 1983009808
  %v308 = vunpack.c.0.s8 %v307
  %v309 = vlaneseq
  %v310 = vshrl.u32 %v309, 7
  %v311 = vsub.s32 %v308, %v310
  %v312 = vrot.slane %v304, %v311
  %v314 = vunpack.c.l.s4 1983009808
  %v315 = vunpack.c.0.s8 %v314
  %v316 = vlaneseq
  %v317 = vshrl.u32 %v316, 7
  %v318 = vsub.s32 %v315, %v317
  %v319 = vrot.slane %v305, %v318
  %v320 = vcombine.low %v312, %v319
  %v322 = vadd.f32 %v56, %v320
  %v323 = vmul.f32 %v322, 0.5
  %v324 = vtanh.pop %v323
  %v325 = vmul.f32 %v324, 0.5
  %v326 = vadd.f32 %v325, 0.5
  %v328 = vrot.slane %v322, 2
  %v330 = vmul.f32 %v328, 0.5
  %v331 = vtanh.pop %v330
  %v332 = vmul.f32 %v331, 0.5
  %v333 = vadd.f32 %v332, 0.5
  %v334 = vrot.slane %v322, 4
  %v336 = vtanh.pop %v334
  %v337 = vrot.slane %v322, 6
  %v339 = vmul.f32 %v337, 0.5
  %v340 = vtanh.pop %v339
  %v341 = vmul.f32 %v340, 0.5
  %v342 = vadd.f32 %v341, 0.5
  %v343 = vmul.f32 %v333, %v54
  %v344 = vmul.f32 %v326, %v336
  %v345 = vadd.f32 %v343, %v344
  %v346 = vtanh.pop %v345
  %v347 = vmul.f32 %v342, %v346
  %v348 = vpack.c.bf16 %v347, %v347
  %349 = vst [vmem:[%s2] sm:$0x1] %v348
  %s350 = scalar_lea.vmem %s0, 4
  %v351 = vld [vmem:[%s350] sm:$0xf]
  %v352 = vunpack.c.l.bf16 %v351
  %353 = vmatprep.subr.bf16.mxu0 %v155
  %354 = vmatpush1.bf16.msra.mxu0 %v154
  %355 = vmatprep.subr.bf16.mxu0 %v159
  %356 = vmatpush1.bf16.msra.mxu0 %v158
  %357 = vmatprep.subr.bf16.mxu0 %v163
  %358 = vmatpush1.bf16.msra.mxu0 %v162
  %359 = vmatprep.subr.bf16.mxu0 %v167
  %360 = vmatpush1.bf16.msra.mxu0 %v166
  %361 = vmatprep.subr.bf16.mxu0 %v171
  %362 = vmatpush1.bf16.msra.mxu0 %v170
  %363 = vmatprep.subr.bf16.mxu0 %v175
  %364 = vmatpush1.bf16.msra.mxu0 %v174
  %365 = vmatprep.subr.bf16.mxu0 %v179
  %366 = vmatpush1.bf16.msra.mxu0 %v178
  %367 = vmatprep.subr.bf16.mxu0 %v183
  %368 = vmatpush1.bf16.msra.mxu0 %v182
  %369 = vmatprep.subr.bf16.mxu0 0
  %370 = vmatpush1.bf16.msra.mxu0 0
  %371 = vmatprep.subr.bf16.mxu0 0
  %372 = vmatpush1.bf16.msra.mxu0 0
  %373 = vmatprep.subr.bf16.mxu0 0
  %374 = vmatpush1.bf16.msra.mxu0 0
  %375 = vmatprep.subr.bf16.mxu0 0
  %376 = vmatpush1.bf16.msra.mxu0 0
  %377 = vmatprep.subr.bf16.mxu0 0
  %378 = vmatpush1.bf16.msra.mxu0 0
  %379 = vmatprep.subr.bf16.mxu0 0
  %380 = vmatpush1.bf16.msra.mxu0 0
  %381 = vmatprep.subr.bf16.mxu0 0
  %382 = vmatpush1.bf16.msra.mxu0 0
  %383 = vmatprep.subr.bf16.mxu0 0
  %384 = vmatpush1.bf16.msra.mxu0 0
  %385 = vmatprep.mubr.bf16.mxu0 0
  %386 = vmatmul.mubr.bf16.gmra.mrb[0].mxu0 %v348
  %v387 = vpop.f32.mrb[0].mxu0
  %v388 = vadd.f32 0.0, %v387
  %v389 = vpop.f32.mrb[0].mxu0
  %v390 = vadd.f32 0.0, %v389
  %v391 = vpop.f32.mrb[0].mxu0
  %v392 = vpop.f32.mrb[0].mxu0
  %393 = vdwg.mxu0
  %394 = vmatprep.subr.bf16.mxu0 %v157
  %395 = vmatpush1.bf16.msra.mxu0 %v156
  %396 = vmatprep.subr.bf16.mxu0 %v161
  %397 = vmatpush1.bf16.msra.mxu0 %v160
  %398 = vmatprep.subr.bf16.mxu0 %v165
  %399 = vmatpush1.bf16.msra.mxu0 %v164
  %400 = vmatprep.subr.bf16.mxu0 %v169
  %401 = vmatpush1.bf16.msra.mxu0 %v168
  %402 = vmatprep.subr.bf16.mxu0 %v173
  %403 = vmatpush1.bf16.msra.mxu0 %v172
  %404 = vmatprep.subr.bf16.mxu0 %v177
  %405 = vmatpush1.bf16.msra.mxu0 %v176
  %406 = vmatprep.subr.bf16.mxu0 %v181
  %407 = vmatpush1.bf16.msra.mxu0 %v180
  %408 = vmatprep.subr.bf16.mxu0 %v185
  %409 = vmatpush1.bf16.msra.mxu0 %v184
  %410 = vmatprep.subr.bf16.mxu0 0
  %411 = vmatpush1.bf16.msra.mxu0 0
  %412 = vmatprep.subr.bf16.mxu0 0
  %413 = vmatpush1.bf16.msra.mxu0 0
  %414 = vmatprep.subr.bf16.mxu0 0
  %415 = vmatpush1.bf16.msra.mxu0 0
  %416 = vmatprep.subr.bf16.mxu0 0
  %417 = vmatpush1.bf16.msra.mxu0 0
  %418 = vmatprep.subr.bf16.mxu0 0
  %419 = vmatpush1.bf16.msra.mxu0 0
  %420 = vmatprep.subr.bf16.mxu0 0
  %421 = vmatpush1.bf16.msra.mxu0 0
  %422 = vmatprep.subr.bf16.mxu0 0
  %423 = vmatpush1.bf16.msra.mxu0 0
  %424 = vmatprep.subr.bf16.mxu0 0
  %425 = vmatpush1.bf16.msra.mxu0 0
  %426 = vmatprep.mubr.bf16.mxu0 0
  %427 = vmatmul.mubr.bf16.gmra.mrb[0].mxu0 %v348
  %v428 = vpop.f32.mrb[0].mxu0
  %v429 = vadd.f32 0.0, %v428
  %v430 = vpop.f32.mrb[0].mxu0
  %v431 = vadd.f32 0.0, %v430
  %v432 = vpop.f32.mrb[0].mxu0
  %v433 = vpop.f32.mrb[0].mxu0
  %434 = vdwg.mxu0
  %v439 = vcombine.low %v388, %v390
  %v440 = vcombine.low %v429, %v431
  %v442 = vunpack.c.l.s4 1983009808
  %v443 = vunpack.c.0.s8 %v442
  %v444 = vlaneseq
  %v445 = vshrl.u32 %v444, 7
  %v446 = vsub.s32 %v443, %v445
  %v447 = vrot.slane %v439, %v446
  %v449 = vunpack.c.l.s4 1983009808
  %v450 = vunpack.c.0.s8 %v449
  %v451 = vlaneseq
  %v452 = vshrl.u32 %v451, 7
  %v453 = vsub.s32 %v450, %v452
  %v454 = vrot.slane %v440, %v453
  %v455 = vcombine.low %v447, %v454
  %v457 = vadd.f32 %v352, %v455
  %v458 = vmul.f32 %v457, 0.5
  %v459 = vtanh.pop %v458
  %v460 = vmul.f32 %v459, 0.5
  %v461 = vadd.f32 %v460, 0.5
  %v463 = vrot.slane %v457, 2
  %v465 = vmul.f32 %v463, 0.5
  %v466 = vtanh.pop %v465
  %v467 = vmul.f32 %v466, 0.5
  %v468 = vadd.f32 %v467, 0.5
  %v469 = vrot.slane %v457, 4
  %v471 = vtanh.pop %v469
  %v472 = vrot.slane %v457, 6
  %v474 = vmul.f32 %v472, 0.5
  %v475 = vtanh.pop %v474
  %v476 = vmul.f32 %v475, 0.5
  %v477 = vadd.f32 %v476, 0.5
  %v478 = vmul.f32 %v468, %v345
  %v479 = vmul.f32 %v461, %v471
  %v480 = vadd.f32 %v478, %v479
  %v481 = vtanh.pop %v480
  %v482 = vmul.f32 %v477, %v481
  %v483 = vpack.c.bf16 %v482, %v482
  %s484 = scalar_lea.vmem %s2, 1
  %485 = vst [vmem:[%s484] sm:$0x1] %v483
  %s486 = scalar_lea.vmem %s0, 8
  %v487 = vld [vmem:[%s486] sm:$0xf]
  %v488 = vunpack.c.l.bf16 %v487
  %489 = vmatprep.subr.bf16.mxu0 %v155
  %490 = vmatpush1.bf16.msra.mxu0 %v154
  %491 = vmatprep.subr.bf16.mxu0 %v159
  %492 = vmatpush1.bf16.msra.mxu0 %v158
  %493 = vmatprep.subr.bf16.mxu0 %v163
  %494 = vmatpush1.bf16.msra.mxu0 %v162
  %495 = vmatprep.subr.bf16.mxu0 %v167
  %496 = vmatpush1.bf16.msra.mxu0 %v166
  %497 = vmatprep.subr.bf16.mxu0 %v171
  %498 = vmatpush1.bf16.msra.mxu0 %v170
  %499 = vmatprep.subr.bf16.mxu0 %v175
  %500 = vmatpush1.bf16.msra.mxu0 %v174
  %501 = vmatprep.subr.bf16.mxu0 %v179
  %502 = vmatpush1.bf16.msra.mxu0 %v178
  %503 = vmatprep.subr.bf16.mxu0 %v183
  %504 = vmatpush1.bf16.msra.mxu0 %v182
  %505 = vmatprep.subr.bf16.mxu0 0
  %506 = vmatpush1.bf16.msra.mxu0 0
  %507 = vmatprep.subr.bf16.mxu0 0
  %508 = vmatpush1.bf16.msra.mxu0 0
  %509 = vmatprep.subr.bf16.mxu0 0
  %510 = vmatpush1.bf16.msra.mxu0 0
  %511 = vmatprep.subr.bf16.mxu0 0
  %512 = vmatpush1.bf16.msra.mxu0 0
  %513 = vmatprep.subr.bf16.mxu0 0
  %514 = vmatpush1.bf16.msra.mxu0 0
  %515 = vmatprep.subr.bf16.mxu0 0
  %516 = vmatpush1.bf16.msra.mxu0 0
  %517 = vmatprep.subr.bf16.mxu0 0
  %518 = vmatpush1.bf16.msra.mxu0 0
  %519 = vmatprep.subr.bf16.mxu0 0
  %520 = vmatpush1.bf16.msra.mxu0 0
  %521 = vmatprep.mubr.bf16.mxu0 0
  %522 = vmatmul.mubr.bf16.gmra.mrb[0].mxu0 %v483
  %v523 = vpop.f32.mrb[0].mxu0
  %v524 = vadd.f32 0.0, %v523
  %v525 = vpop.f32.mrb[0].mxu0
  %v526 = vadd.f32 0.0, %v525
  %v527 = vpop.f32.mrb[0].mxu0
  %v528 = vpop.f32.mrb[0].mxu0
  %529 = vdwg.mxu0
  %530 = vmatprep.subr.bf16.mxu0 %v157
  %531 = vmatpush1.bf16.msra.mxu0 %v156
  %532 = vmatprep.subr.bf16.mxu0 %v161
  %533 = vmatpush1.bf16.msra.mxu0 %v160
  %534 = vmatprep.subr.bf16.mxu0 %v165
  %535 = vmatpush1.bf16.msra.mxu0 %v164
  %536 = vmatprep.subr.bf16.mxu0 %v169
  %537 = vmatpush1.bf16.msra.mxu0 %v168
  %538 = vmatprep.subr.bf16.mxu0 %v173
  %539 = vmatpush1.bf16.msra.mxu0 %v172
  %540 = vmatprep.subr.bf16.mxu0 %v177
  %541 = vmatpush1.bf16.msra.mxu0 %v176
  %542 = vmatprep.subr.bf16.mxu0 %v181
  %543 = vmatpush1.bf16.msra.mxu0 %v180
  %544 = vmatprep.subr.bf16.mxu0 %v185
  %545 = vmatpush1.bf16.msra.mxu0 %v184
  %546 = vmatprep.subr.bf16.mxu0 0
  %547 = vmatpush1.bf16.msra.mxu0 0
  %548 = vmatprep.subr.bf16.mxu0 0
  %549 = vmatpush1.bf16.msra.mxu0 0
  %550 = vmatprep.subr.bf16.mxu0 0
  %551 = vmatpush1.bf16.msra.mxu0 0
  %552 = vmatprep.subr.bf16.mxu0 0
  %553 = vmatpush1.bf16.msra.mxu0 0
  %554 = vmatprep.subr.bf16.mxu0 0
  %555 = vmatpush1.bf16.msra.mxu0 0
  %556 = vmatprep.subr.bf16.mxu0 0
  %557 = vmatpush1.bf16.msra.mxu0 0
  %558 = vmatprep.subr.bf16.mxu0 0
  %559 = vmatpush1.bf16.msra.mxu0 0
  %560 = vmatprep.subr.bf16.mxu0 0
  %561 = vmatpush1.bf16.msra.mxu0 0
  %562 = vmatprep.mubr.bf16.mxu0 0
  %563 = vmatmul.mubr.bf16.gmra.mrb[0].mxu0 %v483
  %v564 = vpop.f32.mrb[0].mxu0
  %v565 = vadd.f32 0.0, %v564
  %v566 = vpop.f32.mrb[0].mxu0
  %v567 = vadd.f32 0.0, %v566
  %v568 = vpop.f32.mrb[0].mxu0
  %v569 = vpop.f32.mrb[0].mxu0
  %570 = vdwg.mxu0
  %v575 = vcombine.low %v524, %v526
  %v576 = vcombine.low %v565, %v567
  %v578 = vunpack.c.l.s4 1983009808
  %v579 = vunpack.c.0.s8 %v578
  %v580 = vlaneseq
  %v581 = vshrl.u32 %v580, 7
  %v582 = vsub.s32 %v579, %v581
  %v583 = vrot.slane %v575, %v582
  %v585 = vunpack.c.l.s4 1983009808
  %v586 = vunpack.c.0.s8 %v585
  %v587 = vlaneseq
  %v588 = vshrl.u32 %v587, 7
  %v589 = vsub.s32 %v586, %v588
  %v590 = vrot.slane %v576, %v589
  %v591 = vcombine.low %v583, %v590
  %v593 = vadd.f32 %v488, %v591
  %v594 = vmul.f32 %v593, 0.5
  %v595 = vtanh.pop %v594
  %v596 = vmul.f32 %v595, 0.5
  %v597 = vadd.f32 %v596, 0.5
  %v599 = vrot.slane %v593, 2
  %v601 = vmul.f32 %v599, 0.5
  %v602 = vtanh.pop %v601
  %v603 = vmul.f32 %v602, 0.5
  %v604 = vadd.f32 %v603, 0.5
  %v605 = vrot.slane %v593, 4
  %v607 = vtanh.pop %v605
  %v608 = vrot.slane %v593, 6
  %v610 = vmul.f32 %v608, 0.5
  %v611 = vtanh.pop %v610
  %v612 = vmul.f32 %v611, 0.5
  %v613 = vadd.f32 %v612, 0.5
  %v614 = vmul.f32 %v604, %v480
  %v615 = vmul.f32 %v597, %v607
  %v616 = vadd.f32 %v614, %v615
  %v617 = vtanh.pop %v616
  %v618 = vmul.f32 %v613, %v617
  %v619 = vpack.c.bf16 %v618, %v618
  %s620 = scalar_lea.vmem %s2, 2
  %621 = vst [vmem:[%s620] sm:$0x1] %v619
  %s622 = scalar_lea.vmem %s0, 12
  %v623 = vld [vmem:[%s622] sm:$0xf]
  %v624 = vunpack.c.l.bf16 %v623
  %625 = vmatprep.subr.bf16.mxu0 %v155
  %626 = vmatpush1.bf16.msra.mxu0 %v154
  %627 = vmatprep.subr.bf16.mxu0 %v159
  %628 = vmatpush1.bf16.msra.mxu0 %v158
  %629 = vmatprep.subr.bf16.mxu0 %v163
  %630 = vmatpush1.bf16.msra.mxu0 %v162
  %631 = vmatprep.subr.bf16.mxu0 %v167
  %632 = vmatpush1.bf16.msra.mxu0 %v166
  %633 = vmatprep.subr.bf16.mxu0 %v171
  %634 = vmatpush1.bf16.msra.mxu0 %v170
  %635 = vmatprep.subr.bf16.mxu0 %v175
  %636 = vmatpush1.bf16.msra.mxu0 %v174
  %637 = vmatprep.subr.bf16.mxu0 %v179
  %638 = vmatpush1.bf16.msra.mxu0 %v178
  %639 = vmatprep.subr.bf16.mxu0 %v183
  %640 = vmatpush1.bf16.msra.mxu0 %v182
  %641 = vmatprep.subr.bf16.mxu0 0
  %642 = vmatpush1.bf16.msra.mxu0 0
  %643 = vmatprep.subr.bf16.mxu0 0
  %644 = vmatpush1.bf16.msra.mxu0 0
  %645 = vmatprep.subr.bf16.mxu0 0
  %646 = vmatpush1.bf16.msra.mxu0 0
  %647 = vmatprep.subr.bf16.mxu0 0
  %648 = vmatpush1.bf16.msra.mxu0 0
  %649 = vmatprep.subr.bf16.mxu0 0
  %650 = vmatpush1.bf16.msra.mxu0 0
  %651 = vmatprep.subr.bf16.mxu0 0
  %652 = vmatpush1.bf16.msra.mxu0 0
  %653 = vmatprep.subr.bf16.mxu0 0
  %654 = vmatpush1.bf16.msra.mxu0 0
  %655 = vmatprep.subr.bf16.mxu0 0
  %656 = vmatpush1.bf16.msra.mxu0 0
  %657 = vmatprep.mubr.bf16.mxu0 0
  %658 = vmatmul.mubr.bf16.gmra.mrb[0].mxu0 %v619
  %v659 = vpop.f32.mrb[0].mxu0
  %v660 = vadd.f32 0.0, %v659
  %v661 = vpop.f32.mrb[0].mxu0
  %v662 = vadd.f32 0.0, %v661
  %v663 = vpop.f32.mrb[0].mxu0
  %v664 = vpop.f32.mrb[0].mxu0
  %665 = vdwg.mxu0
  %666 = vmatprep.subr.bf16.mxu0 %v157
  %667 = vmatpush1.bf16.msra.mxu0 %v156
  %668 = vmatprep.subr.bf16.mxu0 %v161
  %669 = vmatpush1.bf16.msra.mxu0 %v160
  %670 = vmatprep.subr.bf16.mxu0 %v165
  %671 = vmatpush1.bf16.msra.mxu0 %v164
  %672 = vmatprep.subr.bf16.mxu0 %v169
  %673 = vmatpush1.bf16.msra.mxu0 %v168
  %674 = vmatprep.subr.bf16.mxu0 %v173
  %675 = vmatpush1.bf16.msra.mxu0 %v172
  %676 = vmatprep.subr.bf16.mxu0 %v177
  %677 = vmatpush1.bf16.msra.mxu0 %v176
  %678 = vmatprep.subr.bf16.mxu0 %v181
  %679 = vmatpush1.bf16.msra.mxu0 %v180
  %680 = vmatprep.subr.bf16.mxu0 %v185
  %681 = vmatpush1.bf16.msra.mxu0 %v184
  %682 = vmatprep.subr.bf16.mxu0 0
  %683 = vmatpush1.bf16.msra.mxu0 0
  %684 = vmatprep.subr.bf16.mxu0 0
  %685 = vmatpush1.bf16.msra.mxu0 0
  %686 = vmatprep.subr.bf16.mxu0 0
  %687 = vmatpush1.bf16.msra.mxu0 0
  %688 = vmatprep.subr.bf16.mxu0 0
  %689 = vmatpush1.bf16.msra.mxu0 0
  %690 = vmatprep.subr.bf16.mxu0 0
  %691 = vmatpush1.bf16.msra.mxu0 0
  %692 = vmatprep.subr.bf16.mxu0 0
  %693 = vmatpush1.bf16.msra.mxu0 0
  %694 = vmatprep.subr.bf16.mxu0 0
  %695 = vmatpush1.bf16.msra.mxu0 0
  %696 = vmatprep.subr.bf16.mxu0 0
  %697 = vmatpush1.bf16.msra.mxu0 0
  %698 = vmatprep.mubr.bf16.mxu0 0
  %699 = vmatmul.mubr.bf16.gmra.mrb[0].mxu0 %v619
  %v700 = vpop.f32.mrb[0].mxu0
  %v701 = vadd.f32 0.0, %v700
  %v702 = vpop.f32.mrb[0].mxu0
  %v703 = vadd.f32 0.0, %v702
  %v704 = vpop.f32.mrb[0].mxu0
  %v705 = vpop.f32.mrb[0].mxu0
  %706 = vdwg.mxu0
  %v711 = vcombine.low %v660, %v662
  %v712 = vcombine.low %v701, %v703
  %v714 = vunpack.c.l.s4 1983009808
  %v715 = vunpack.c.0.s8 %v714
  %v716 = vlaneseq
  %v717 = vshrl.u32 %v716, 7
  %v718 = vsub.s32 %v715, %v717
  %v719 = vrot.slane %v711, %v718
  %v721 = vunpack.c.l.s4 1983009808
  %v722 = vunpack.c.0.s8 %v721
  %v723 = vlaneseq
  %v724 = vshrl.u32 %v723, 7
  %v725 = vsub.s32 %v722, %v724
  %v726 = vrot.slane %v712, %v725
  %v727 = vcombine.low %v719, %v726
  %v729 = vadd.f32 %v624, %v727
  %v730 = vmul.f32 %v729, 0.5
  %v731 = vtanh.pop %v730
  %v732 = vmul.f32 %v731, 0.5
  %v733 = vadd.f32 %v732, 0.5
  %v735 = vrot.slane %v729, 2
  %v737 = vmul.f32 %v735, 0.5
  %v738 = vtanh.pop %v737
  %v739 = vmul.f32 %v738, 0.5
  %v740 = vadd.f32 %v739, 0.5
  %v741 = vrot.slane %v729, 4
  %v743 = vtanh.pop %v741
  %v744 = vrot.slane %v729, 6
  %v746 = vmul.f32 %v744, 0.5
  %v747 = vtanh.pop %v746
  %v748 = vmul.f32 %v747, 0.5
  %v749 = vadd.f32 %v748, 0.5
  %v750 = vmul.f32 %v740, %v616
  %v751 = vmul.f32 %v733, %v743
  %v752 = vadd.f32 %v750, %v751
  %v753 = vtanh.pop %v752
  %v754 = vmul.f32 %v749, %v753
  %v755 = vpack.c.bf16 %v754, %v754
  %s756 = scalar_lea.vmem %s2, 3
  %757 = vst [vmem:[%s756] sm:$0x1] %v755
  %s758 = scalar_lea.vmem %s0, 16
  %v759 = vld [vmem:[%s758] sm:$0xf]
  %v760 = vunpack.c.l.bf16 %v759
  %761 = vmatprep.subr.bf16.mxu0 %v155
  %762 = vmatpush1.bf16.msra.mxu0 %v154
  %763 = vmatprep.subr.bf16.mxu0 %v159
  %764 = vmatpush1.bf16.msra.mxu0 %v158
  %765 = vmatprep.subr.bf16.mxu0 %v163
  %766 = vmatpush1.bf16.msra.mxu0 %v162
  %767 = vmatprep.subr.bf16.mxu0 %v167
  %768 = vmatpush1.bf16.msra.mxu0 %v166
  %769 = vmatprep.subr.bf16.mxu0 %v171
  %770 = vmatpush1.bf16.msra.mxu0 %v170
  %771 = vmatprep.subr.bf16.mxu0 %v175
  %772 = vmatpush1.bf16.msra.mxu0 %v174
  %773 = vmatprep.subr.bf16.mxu0 %v179
  %774 = vmatpush1.bf16.msra.mxu0 %v178
  %775 = vmatprep.subr.bf16.mxu0 %v183
  %776 = vmatpush1.bf16.msra.mxu0 %v182
  %777 = vmatprep.subr.bf16.mxu0 0
  %778 = vmatpush1.bf16.msra.mxu0 0
  %779 = vmatprep.subr.bf16.mxu0 0
  %780 = vmatpush1.bf16.msra.mxu0 0
  %781 = vmatprep.subr.bf16.mxu0 0
  %782 = vmatpush1.bf16.msra.mxu0 0
  %783 = vmatprep.subr.bf16.mxu0 0
  %784 = vmatpush1.bf16.msra.mxu0 0
  %785 = vmatprep.subr.bf16.mxu0 0
  %786 = vmatpush1.bf16.msra.mxu0 0
  %787 = vmatprep.subr.bf16.mxu0 0
  %788 = vmatpush1.bf16.msra.mxu0 0
  %789 = vmatprep.subr.bf16.mxu0 0
  %790 = vmatpush1.bf16.msra.mxu0 0
  %791 = vmatprep.subr.bf16.mxu0 0
  %792 = vmatpush1.bf16.msra.mxu0 0
  %793 = vmatprep.mubr.bf16.mxu0 0
  %794 = vmatmul.mubr.bf16.gmra.mrb[0].mxu0 %v755
  %v795 = vpop.f32.mrb[0].mxu0
  %v796 = vadd.f32 0.0, %v795
  %v797 = vpop.f32.mrb[0].mxu0
  %v798 = vadd.f32 0.0, %v797
  %v799 = vpop.f32.mrb[0].mxu0
  %v800 = vpop.f32.mrb[0].mxu0
  %801 = vdwg.mxu0
  %802 = vmatprep.subr.bf16.mxu0 %v157
  %803 = vmatpush1.bf16.msra.mxu0 %v156
  %804 = vmatprep.subr.bf16.mxu0 %v161
  %805 = vmatpush1.bf16.msra.mxu0 %v160
  %806 = vmatprep.subr.bf16.mxu0 %v165
  %807 = vmatpush1.bf16.msra.mxu0 %v164
  %808 = vmatprep.subr.bf16.mxu0 %v169
  %809 = vmatpush1.bf16.msra.mxu0 %v168
  %810 = vmatprep.subr.bf16.mxu0 %v173
  %811 = vmatpush1.bf16.msra.mxu0 %v172
  %812 = vmatprep.subr.bf16.mxu0 %v177
  %813 = vmatpush1.bf16.msra.mxu0 %v176
  %814 = vmatprep.subr.bf16.mxu0 %v181
  %815 = vmatpush1.bf16.msra.mxu0 %v180
  %816 = vmatprep.subr.bf16.mxu0 %v185
  %817 = vmatpush1.bf16.msra.mxu0 %v184
  %818 = vmatprep.subr.bf16.mxu0 0
  %819 = vmatpush1.bf16.msra.mxu0 0
  %820 = vmatprep.subr.bf16.mxu0 0
  %821 = vmatpush1.bf16.msra.mxu0 0
  %822 = vmatprep.subr.bf16.mxu0 0
  %823 = vmatpush1.bf16.msra.mxu0 0
  %824 = vmatprep.subr.bf16.mxu0 0
  %825 = vmatpush1.bf16.msra.mxu0 0
  %826 = vmatprep.subr.bf16.mxu0 0
  %827 = vmatpush1.bf16.msra.mxu0 0
  %828 = vmatprep.subr.bf16.mxu0 0
  %829 = vmatpush1.bf16.msra.mxu0 0
  %830 = vmatprep.subr.bf16.mxu0 0
  %831 = vmatpush1.bf16.msra.mxu0 0
  %832 = vmatprep.subr.bf16.mxu0 0
  %833 = vmatpush1.bf16.msra.mxu0 0
  %834 = vmatprep.mubr.bf16.mxu0 0
  %835 = vmatmul.mubr.bf16.gmra.mrb[0].mxu0 %v755
  %v836 = vpop.f32.mrb[0].mxu0
  %v837 = vadd.f32 0.0, %v836
  %v838 = vpop.f32.mrb[0].mxu0
  %v839 = vadd.f32 0.0, %v838
  %v840 = vpop.f32.mrb[0].mxu0
  %v841 = vpop.f32.mrb[0].mxu0
  %842 = vdwg.mxu0
  %v847 = vcombine.low %v796, %v798
  %v848 = vcombine.low %v837, %v839
  %v850 = vunpack.c.l.s4 1983009808
  %v851 = vunpack.c.0.s8 %v850
  %v852 = vlaneseq
  %v853 = vshrl.u32 %v852, 7
  %v854 = vsub.s32 %v851, %v853
  %v855 = vrot.slane %v847, %v854
  %v857 = vunpack.c.l.s4 1983009808
  %v858 = vunpack.c.0.s8 %v857
  %v859 = vlaneseq
  %v860 = vshrl.u32 %v859, 7
  %v861 = vsub.s32 %v858, %v860
  %v862 = vrot.slane %v848, %v861
  %v863 = vcombine.low %v855, %v862
  %v865 = vadd.f32 %v760, %v863
  %v866 = vmul.f32 %v865, 0.5
  %v867 = vtanh.pop %v866
  %v868 = vmul.f32 %v867, 0.5
  %v869 = vadd.f32 %v868, 0.5
  %v871 = vrot.slane %v865, 2
  %v873 = vmul.f32 %v871, 0.5
  %v874 = vtanh.pop %v873
  %v875 = vmul.f32 %v874, 0.5
  %v876 = vadd.f32 %v875, 0.5
  %v877 = vrot.slane %v865, 4
  %v879 = vtanh.pop %v877
  %v880 = vrot.slane %v865, 6
  %v882 = vmul.f32 %v880, 0.5
  %v883 = vtanh.pop %v882
  %v884 = vmul.f32 %v883, 0.5
  %v885 = vadd.f32 %v884, 0.5
  %v886 = vmul.f32 %v876, %v752
  %v887 = vmul.f32 %v869, %v879
  %v888 = vadd.f32 %v886, %v887
  %v889 = vtanh.pop %v888
  %v890 = vmul.f32 %v885, %v889
  %v891 = vpack.c.bf16 %v890, %v890
  %s892 = scalar_lea.vmem %s2, 4
  %893 = vst [vmem:[%s892] sm:$0x1] %v891
  %s894 = scalar_lea.vmem %s0, 20
  %v895 = vld [vmem:[%s894] sm:$0xf]
  %v896 = vunpack.c.l.bf16 %v895
  %897 = vmatprep.subr.bf16.mxu0 %v155
  %898 = vmatpush1.bf16.msra.mxu0 %v154
  %899 = vmatprep.subr.bf16.mxu0 %v159
  %900 = vmatpush1.bf16.msra.mxu0 %v158
  %901 = vmatprep.subr.bf16.mxu0 %v163
  %902 = vmatpush1.bf16.msra.mxu0 %v162
  %903 = vmatprep.subr.bf16.mxu0 %v167
  %904 = vmatpush1.bf16.msra.mxu0 %v166
  %905 = vmatprep.subr.bf16.mxu0 %v171
  %906 = vmatpush1.bf16.msra.mxu0 %v170
  %907 = vmatprep.subr.bf16.mxu0 %v175
  %908 = vmatpush1.bf16.msra.mxu0 %v174
  %909 = vmatprep.subr.bf16.mxu0 %v179
  %910 = vmatpush1.bf16.msra.mxu0 %v178
  %911 = vmatprep.subr.bf16.mxu0 %v183
  %912 = vmatpush1.bf16.msra.mxu0 %v182
  %913 = vmatprep.subr.bf16.mxu0 0
  %914 = vmatpush1.bf16.msra.mxu0 0
  %915 = vmatprep.subr.bf16.mxu0 0
  %916 = vmatpush1.bf16.msra.mxu0 0
  %917 = vmatprep.subr.bf16.mxu0 0
  %918 = vmatpush1.bf16.msra.mxu0 0
  %919 = vmatprep.subr.bf16.mxu0 0
  %920 = vmatpush1.bf16.msra.mxu0 0
  %921 = vmatprep.subr.bf16.mxu0 0
  %922 = vmatpush1.bf16.msra.mxu0 0
  %923 = vmatprep.subr.bf16.mxu0 0
  %924 = vmatpush1.bf16.msra.mxu0 0
  %925 = vmatprep.subr.bf16.mxu0 0
  %926 = vmatpush1.bf16.msra.mxu0 0
  %927 = vmatprep.subr.bf16.mxu0 0
  %928 = vmatpush1.bf16.msra.mxu0 0
  %929 = vmatprep.mubr.bf16.mxu0 0
  %930 = vmatmul.mubr.bf16.gmra.mrb[0].mxu0 %v891
  %v931 = vpop.f32.mrb[0].mxu0
  %v932 = vadd.f32 0.0, %v931
  %v933 = vpop.f32.mrb[0].mxu0
  %v934 = vadd.f32 0.0, %v933
  %v935 = vpop.f32.mrb[0].mxu0
  %v936 = vpop.f32.mrb[0].mxu0
  %937 = vdwg.mxu0
  %938 = vmatprep.subr.bf16.mxu0 %v157
  %939 = vmatpush1.bf16.msra.mxu0 %v156
  %940 = vmatprep.subr.bf16.mxu0 %v161
  %941 = vmatpush1.bf16.msra.mxu0 %v160
  %942 = vmatprep.subr.bf16.mxu0 %v165
  %943 = vmatpush1.bf16.msra.mxu0 %v164
  %944 = vmatprep.subr.bf16.mxu0 %v169
  %945 = vmatpush1.bf16.msra.mxu0 %v168
  %946 = vmatprep.subr.bf16.mxu0 %v173
  %947 = vmatpush1.bf16.msra.mxu0 %v172
  %948 = vmatprep.subr.bf16.mxu0 %v177
  %949 = vmatpush1.bf16.msra.mxu0 %v176
  %950 = vmatprep.subr.bf16.mxu0 %v181
  %951 = vmatpush1.bf16.msra.mxu0 %v180
  %952 = vmatprep.subr.bf16.mxu0 %v185
  %953 = vmatpush1.bf16.msra.mxu0 %v184
  %954 = vmatprep.subr.bf16.mxu0 0
  %955 = vmatpush1.bf16.msra.mxu0 0
  %956 = vmatprep.subr.bf16.mxu0 0
  %957 = vmatpush1.bf16.msra.mxu0 0
  %958 = vmatprep.subr.bf16.mxu0 0
  %959 = vmatpush1.bf16.msra.mxu0 0
  %960 = vmatprep.subr.bf16.mxu0 0
  %961 = vmatpush1.bf16.msra.mxu0 0
  %962 = vmatprep.subr.bf16.mxu0 0
  %963 = vmatpush1.bf16.msra.mxu0 0
  %964 = vmatprep.subr.bf16.mxu0 0
  %965 = vmatpush1.bf16.msra.mxu0 0
  %966 = vmatprep.subr.bf16.mxu0 0
  %967 = vmatpush1.bf16.msra.mxu0 0
  %968 = vmatprep.subr.bf16.mxu0 0
  %969 = vmatpush1.bf16.msra.mxu0 0
  %970 = vmatprep.mubr.bf16.mxu0 0
  %971 = vmatmul.mubr.bf16.gmra.mrb[0].mxu0 %v891
  %v972 = vpop.f32.mrb[0].mxu0
  %v973 = vadd.f32 0.0, %v972
  %v974 = vpop.f32.mrb[0].mxu0
  %v975 = vadd.f32 0.0, %v974
  %v976 = vpop.f32.mrb[0].mxu0
  %v977 = vpop.f32.mrb[0].mxu0
  %978 = vdwg.mxu0
  %v983 = vcombine.low %v932, %v934
  %v984 = vcombine.low %v973, %v975
  %v986 = vunpack.c.l.s4 1983009808
  %v987 = vunpack.c.0.s8 %v986
  %v988 = vlaneseq
  %v989 = vshrl.u32 %v988, 7
  %v990 = vsub.s32 %v987, %v989
  %v991 = vrot.slane %v983, %v990
  %v993 = vunpack.c.l.s4 1983009808
  %v994 = vunpack.c.0.s8 %v993
  %v995 = vlaneseq
  %v996 = vshrl.u32 %v995, 7
  %v997 = vsub.s32 %v994, %v996
  %v998 = vrot.slane %v984, %v997
  %v999 = vcombine.low %v991, %v998
  %v1001 = vadd.f32 %v896, %v999
  %v1002 = vmul.f32 %v1001, 0.5
  %v1003 = vtanh.pop %v1002
  %v1004 = vmul.f32 %v1003, 0.5
  %v1005 = vadd.f32 %v1004, 0.5
  %v1007 = vrot.slane %v1001, 2
  %v1009 = vmul.f32 %v1007, 0.5
  %v1010 = vtanh.pop %v1009
  %v1011 = vmul.f32 %v1010, 0.5
  %v1012 = vadd.f32 %v1011, 0.5
  %v1013 = vrot.slane %v1001, 4
  %v1015 = vtanh.pop %v1013
  %v1016 = vrot.slane %v1001, 6
  %v1018 = vmul.f32 %v1016, 0.5
  %v1019 = vtanh.pop %v1018
  %v1020 = vmul.f32 %v1019, 0.5
  %v1021 = vadd.f32 %v1020, 0.5
  %v1022 = vmul.f32 %v1012, %v888
  %v1023 = vmul.f32 %v1005, %v1015
  %v1024 = vadd.f32 %v1022, %v1023
  %v1025 = vtanh.pop %v1024
  %v1026 = vmul.f32 %v1021, %v1025
  %v1027 = vpack.c.bf16 %v1026, %v1026
  %s1028 = scalar_lea.vmem %s2, 5
  %1029 = vst [vmem:[%s1028] sm:$0x1] %v1027
  %s1030 = scalar_lea.vmem %s0, 24
  %v1031 = vld [vmem:[%s1030] sm:$0xf]
  %v1032 = vunpack.c.l.bf16 %v1031
  %1033 = vmatprep.subr.bf16.mxu0 %v155
  %1034 = vmatpush1.bf16.msra.mxu0 %v154
  %1035 = vmatprep.subr.bf16.mxu0 %v159
  %1036 = vmatpush1.bf16.msra.mxu0 %v158
  %1037 = vmatprep.subr.bf16.mxu0 %v163
  %1038 = vmatpush1.bf16.msra.mxu0 %v162
  %1039 = vmatprep.subr.bf16.mxu0 %v167
  %1040 = vmatpush1.bf16.msra.mxu0 %v166
  %1041 = vmatprep.subr.bf16.mxu0 %v171
  %1042 = vmatpush1.bf16.msra.mxu0 %v170
  %1043 = vmatprep.subr.bf16.mxu0 %v175
  %1044 = vmatpush1.bf16.msra.mxu0 %v174
  %1045 = vmatprep.subr.bf16.mxu0 %v179
  %1046 = vmatpush1.bf16.msra.mxu0 %v178
  %1047 = vmatprep.subr.bf16.mxu0 %v183
  %1048 = vmatpush1.bf16.msra.mxu0 %v182
  %1049 = vmatprep.subr.bf16.mxu0 0
  %1050 = vmatpush1.bf16.msra.mxu0 0
  %1051 = vmatprep.subr.bf16.mxu0 0
  %1052 = vmatpush1.bf16.msra.mxu0 0
  %1053 = vmatprep.subr.bf16.mxu0 0
  %1054 = vmatpush1.bf16.msra.mxu0 0
  %1055 = vmatprep.subr.bf16.mxu0 0
  %1056 = vmatpush1.bf16.msra.mxu0 0
  %1057 = vmatprep.subr.bf16.mxu0 0
  %1058 = vmatpush1.bf16.msra.mxu0 0
  %1059 = vmatprep.subr.bf16.mxu0 0
  %1060 = vmatpush1.bf16.msra.mxu0 0
  %1061 = vmatprep.subr.bf16.mxu0 0
  %1062 = vmatpush1.bf16.msra.mxu0 0
  %1063 = vmatprep.subr.bf16.mxu0 0
  %1064 = vmatpush1.bf16.msra.mxu0 0
  %1065 = vmatprep.mubr.bf16.mxu0 0
  %1066 = vmatmul.mubr.bf16.gmra.mrb[0].mxu0 %v1027
  %v1067 = vpop.f32.mrb[0].mxu0
  %v1068 = vadd.f32 0.0, %v1067
  %v1069 = vpop.f32.mrb[0].mxu0
  %v1070 = vadd.f32 0.0, %v1069
  %v1071 = vpop.f32.mrb[0].mxu0
  %v1072 = vpop.f32.mrb[0].mxu0
  %1073 = vdwg.mxu0
  %1074 = vmatprep.subr.bf16.mxu0 %v157
  %1075 = vmatpush1.bf16.msra.mxu0 %v156
  %1076 = vmatprep.subr.bf16.mxu0 %v161
  %1077 = vmatpush1.bf16.msra.mxu0 %v160
  %1078 = vmatprep.subr.bf16.mxu0 %v165
  %1079 = vmatpush1.bf16.msra.mxu0 %v164
  %1080 = vmatprep.subr.bf16.mxu0 %v169
  %1081 = vmatpush1.bf16.msra.mxu0 %v168
  %1082 = vmatprep.subr.bf16.mxu0 %v173
  %1083 = vmatpush1.bf16.msra.mxu0 %v172
  %1084 = vmatprep.subr.bf16.mxu0 %v177
  %1085 = vmatpush1.bf16.msra.mxu0 %v176
  %1086 = vmatprep.subr.bf16.mxu0 %v181
  %1087 = vmatpush1.bf16.msra.mxu0 %v180
  %1088 = vmatprep.subr.bf16.mxu0 %v185
  %1089 = vmatpush1.bf16.msra.mxu0 %v184
  %1090 = vmatprep.subr.bf16.mxu0 0
  %1091 = vmatpush1.bf16.msra.mxu0 0
  %1092 = vmatprep.subr.bf16.mxu0 0
  %1093 = vmatpush1.bf16.msra.mxu0 0
  %1094 = vmatprep.subr.bf16.mxu0 0
  %1095 = vmatpush1.bf16.msra.mxu0 0
  %1096 = vmatprep.subr.bf16.mxu0 0
  %1097 = vmatpush1.bf16.msra.mxu0 0
  %1098 = vmatprep.subr.bf16.mxu0 0
  %1099 = vmatpush1.bf16.msra.mxu0 0
  %1100 = vmatprep.subr.bf16.mxu0 0
  %1101 = vmatpush1.bf16.msra.mxu0 0
  %1102 = vmatprep.subr.bf16.mxu0 0
  %1103 = vmatpush1.bf16.msra.mxu0 0
  %1104 = vmatprep.subr.bf16.mxu0 0
  %1105 = vmatpush1.bf16.msra.mxu0 0
  %1106 = vmatprep.mubr.bf16.mxu0 0
  %1107 = vmatmul.mubr.bf16.gmra.mrb[0].mxu0 %v1027
  %v1108 = vpop.f32.mrb[0].mxu0
  %v1109 = vadd.f32 0.0, %v1108
  %v1110 = vpop.f32.mrb[0].mxu0
  %v1111 = vadd.f32 0.0, %v1110
  %v1112 = vpop.f32.mrb[0].mxu0
  %v1113 = vpop.f32.mrb[0].mxu0
  %1114 = vdwg.mxu0
  %v1119 = vcombine.low %v1068, %v1070
  %v1120 = vcombine.low %v1109, %v1111
  %v1122 = vunpack.c.l.s4 1983009808
  %v1123 = vunpack.c.0.s8 %v1122
  %v1124 = vlaneseq
  %v1125 = vshrl.u32 %v1124, 7
  %v1126 = vsub.s32 %v1123, %v1125
  %v1127 = vrot.slane %v1119, %v1126
  %v1129 = vunpack.c.l.s4 1983009808
  %v1130 = vunpack.c.0.s8 %v1129
  %v1131 = vlaneseq
  %v1132 = vshrl.u32 %v1131, 7
  %v1133 = vsub.s32 %v1130, %v1132
  %v1134 = vrot.slane %v1120, %v1133
  %v1135 = vcombine.low %v1127, %v1134
  %v1137 = vadd.f32 %v1032, %v1135
  %v1138 = vmul.f32 %v1137, 0.5
  %v1139 = vtanh.pop %v1138
  %v1140 = vmul.f32 %v1139, 0.5
  %v1141 = vadd.f32 %v1140, 0.5
  %v1143 = vrot.slane %v1137, 2
  %v1145 = vmul.f32 %v1143, 0.5
  %v1146 = vtanh.pop %v1145
  %v1147 = vmul.f32 %v1146, 0.5
  %v1148 = vadd.f32 %v1147, 0.5
  %v1149 = vrot.slane %v1137, 4
  %v1151 = vtanh.pop %v1149
  %v1152 = vrot.slane %v1137, 6
  %v1154 = vmul.f32 %v1152, 0.5
  %v1155 = vtanh.pop %v1154
  %v1156 = vmul.f32 %v1155, 0.5
  %v1157 = vadd.f32 %v1156, 0.5
  %v1158 = vmul.f32 %v1148, %v1024
  %v1159 = vmul.f32 %v1141, %v1151
  %v1160 = vadd.f32 %v1158, %v1159
  %v1161 = vtanh.pop %v1160
  %v1162 = vmul.f32 %v1157, %v1161
  %v1163 = vpack.c.bf16 %v1162, %v1162
  %s1164 = scalar_lea.vmem %s2, 6
  %1165 = vst [vmem:[%s1164] sm:$0x1] %v1163
  %s1166 = scalar_lea.vmem %s0, 28
  %v1167 = vld [vmem:[%s1166] sm:$0xf]
  %v1168 = vunpack.c.l.bf16 %v1167
  %1169 = vmatprep.subr.bf16.mxu0 %v155
  %1170 = vmatpush1.bf16.msra.mxu0 %v154
  %1171 = vmatprep.subr.bf16.mxu0 %v159
  %1172 = vmatpush1.bf16.msra.mxu0 %v158
  %1173 = vmatprep.subr.bf16.mxu0 %v163
  %1174 = vmatpush1.bf16.msra.mxu0 %v162
  %1175 = vmatprep.subr.bf16.mxu0 %v167
  %1176 = vmatpush1.bf16.msra.mxu0 %v166
  %1177 = vmatprep.subr.bf16.mxu0 %v171
  %1178 = vmatpush1.bf16.msra.mxu0 %v170
  %1179 = vmatprep.subr.bf16.mxu0 %v175
  %1180 = vmatpush1.bf16.msra.mxu0 %v174
  %1181 = vmatprep.subr.bf16.mxu0 %v179
  %1182 = vmatpush1.bf16.msra.mxu0 %v178
  %1183 = vmatprep.subr.bf16.mxu0 %v183
  %1184 = vmatpush1.bf16.msra.mxu0 %v182
  %1185 = vmatprep.subr.bf16.mxu0 0
  %1186 = vmatpush1.bf16.msra.mxu0 0
  %1187 = vmatprep.subr.bf16.mxu0 0
  %1188 = vmatpush1.bf16.msra.mxu0 0
  %1189 = vmatprep.subr.bf16.mxu0 0
  %1190 = vmatpush1.bf16.msra.mxu0 0
  %1191 = vmatprep.subr.bf16.mxu0 0
  %1192 = vmatpush1.bf16.msra.mxu0 0
  %1193 = vmatprep.subr.bf16.mxu0 0
  %1194 = vmatpush1.bf16.msra.mxu0 0
  %1195 = vmatprep.subr.bf16.mxu0 0
  %1196 = vmatpush1.bf16.msra.mxu0 0
  %1197 = vmatprep.subr.bf16.mxu0 0
  %1198 = vmatpush1.bf16.msra.mxu0 0
  %1199 = vmatprep.subr.bf16.mxu0 0
  %1200 = vmatpush1.bf16.msra.mxu0 0
  %1201 = vmatprep.mubr.bf16.mxu0 0
  %1202 = vmatmul.mubr.bf16.gmra.mrb[0].mxu0 %v1163
  %v1203 = vpop.f32.mrb[0].mxu0
  %v1204 = vadd.f32 0.0, %v1203
  %v1205 = vpop.f32.mrb[0].mxu0
  %v1206 = vadd.f32 0.0, %v1205
  %v1207 = vpop.f32.mrb[0].mxu0
  %v1208 = vpop.f32.mrb[0].mxu0
  %1209 = vdwg.mxu0
  %1210 = vmatprep.subr.bf16.mxu0 %v157
  %1211 = vmatpush1.bf16.msra.mxu0 %v156
  %1212 = vmatprep.subr.bf16.mxu0 %v161
  %1213 = vmatpush1.bf16.msra.mxu0 %v160
  %1214 = vmatprep.subr.bf16.mxu0 %v165
  %1215 = vmatpush1.bf16.msra.mxu0 %v164
  %1216 = vmatprep.subr.bf16.mxu0 %v169
  %1217 = vmatpush1.bf16.msra.mxu0 %v168
  %1218 = vmatprep.subr.bf16.mxu0 %v173
  %1219 = vmatpush1.bf16.msra.mxu0 %v172
  %1220 = vmatprep.subr.bf16.mxu0 %v177
  %1221 = vmatpush1.bf16.msra.mxu0 %v176
  %1222 = vmatprep.subr.bf16.mxu0 %v181
  %1223 = vmatpush1.bf16.msra.mxu0 %v180
  %1224 = vmatprep.subr.bf16.mxu0 %v185
  %1225 = vmatpush1.bf16.msra.mxu0 %v184
  %1226 = vmatprep.subr.bf16.mxu0 0
  %1227 = vmatpush1.bf16.msra.mxu0 0
  %1228 = vmatprep.subr.bf16.mxu0 0
  %1229 = vmatpush1.bf16.msra.mxu0 0
  %1230 = vmatprep.subr.bf16.mxu0 0
  %1231 = vmatpush1.bf16.msra.mxu0 0
  %1232 = vmatprep.subr.bf16.mxu0 0
  %1233 = vmatpush1.bf16.msra.mxu0 0
  %1234 = vmatprep.subr.bf16.mxu0 0
  %1235 = vmatpush1.bf16.msra.mxu0 0
  %1236 = vmatprep.subr.bf16.mxu0 0
  %1237 = vmatpush1.bf16.msra.mxu0 0
  %1238 = vmatprep.subr.bf16.mxu0 0
  %1239 = vmatpush1.bf16.msra.mxu0 0
  %1240 = vmatprep.subr.bf16.mxu0 0
  %1241 = vmatpush1.bf16.msra.mxu0 0
  %1242 = vmatprep.mubr.bf16.mxu0 0
  %1243 = vmatmul.mubr.bf16.gmra.mrb[0].mxu0 %v1163
  %v1244 = vpop.f32.mrb[0].mxu0
  %v1245 = vadd.f32 0.0, %v1244
  %v1246 = vpop.f32.mrb[0].mxu0
  %v1247 = vadd.f32 0.0, %v1246
  %v1248 = vpop.f32.mrb[0].mxu0
  %v1249 = vpop.f32.mrb[0].mxu0
  %1250 = vdwg.mxu0
  %v1255 = vcombine.low %v1204, %v1206
  %v1256 = vcombine.low %v1245, %v1247
  %v1258 = vunpack.c.l.s4 1983009808
  %v1259 = vunpack.c.0.s8 %v1258
  %v1260 = vlaneseq
  %v1261 = vshrl.u32 %v1260, 7
  %v1262 = vsub.s32 %v1259, %v1261
  %v1263 = vrot.slane %v1255, %v1262
  %v1265 = vunpack.c.l.s4 1983009808
  %v1266 = vunpack.c.0.s8 %v1265
  %v1267 = vlaneseq
  %v1268 = vshrl.u32 %v1267, 7
  %v1269 = vsub.s32 %v1266, %v1268
  %v1270 = vrot.slane %v1256, %v1269
  %v1271 = vcombine.low %v1263, %v1270
  %v1273 = vadd.f32 %v1168, %v1271
  %v1274 = vmul.f32 %v1273, 0.5
  %v1275 = vtanh.pop %v1274
  %v1276 = vmul.f32 %v1275, 0.5
  %v1277 = vadd.f32 %v1276, 0.5
  %v1279 = vrot.slane %v1273, 2
  %v1281 = vmul.f32 %v1279, 0.5
  %v1282 = vtanh.pop %v1281
  %v1283 = vmul.f32 %v1282, 0.5
  %v1284 = vadd.f32 %v1283, 0.5
  %v1285 = vrot.slane %v1273, 4
  %v1287 = vtanh.pop %v1285
  %v1288 = vrot.slane %v1273, 6
  %v1290 = vmul.f32 %v1288, 0.5
  %v1291 = vtanh.pop %v1290
  %v1292 = vmul.f32 %v1291, 0.5
  %v1293 = vadd.f32 %v1292, 0.5
  %v1294 = vmul.f32 %v1284, %v1160
  %v1295 = vmul.f32 %v1277, %v1287
  %v1296 = vadd.f32 %v1294, %v1295
  %v1297 = vtanh.pop %v1296
  %v1298 = vmul.f32 %v1293, %v1297
  %v1299 = vpack.c.bf16 %v1298, %v1298
  %s1300 = scalar_lea.vmem %s2, 7
  %1301 = vst [vmem:[%s1300] sm:$0x1] %v1299
  %1302 = vst [vmem:[#allocation2] sm:$0x3] %v1298
  %1303 = vst [vmem:[#allocation3] sm:$0x3] %v1296
  // Predicated region
  $region14: #{lstm_lm_forward.6} parent=0 // pred_check
    %p1304 = pneg %p15
  $region15: #{lstm_lm_forward.6} parent=0 // pred_check_branch
    %1306 = sbr.rel (%p1304) target = $region17
  $region16: #{lstm_lm_forward.6} parent=0 // pred_region
    %1307 = vst [vmem:[%s3] sm:$0x3] %v1298
    %1308 = vst [vmem:[%s4] sm:$0x3] %v1296
  $region17: #{lstm_lm_forward.6} parent=0 // pred_fallthru
    _
  // Predicated region
  $region18: #{lstm_lm_forward.6} parent=0 // pred_check
    _
  $region19: #{lstm_lm_forward.6} parent=0 // pred_check_branch
    %1310 = sbr.rel (0) target = $region21
  $region20: #{lstm_lm_forward.6} parent=0 // pred_region
    _
  $region21: #{lstm_lm_forward.6} parent=0 // pred_fallthru
    _
  // Predicated region
  $region22: #{lstm_lm_forward.6} parent=0 // pred_check
    _
  $region23: #{lstm_lm_forward.6} parent=0 // pred_check_branch
    %1312 = sbr.rel (0) target = $region25
  $region24: #{lstm_lm_forward.6} parent=0 // pred_region
    _
  $region25: #{lstm_lm_forward.6} parent=0 // pred_fallthru
    _
  // Predicated region
  $region26: #{lstm_lm_forward.6} parent=0 // pred_check
    _
  $region27: #{lstm_lm_forward.6} parent=0 // pred_check_branch
    %1314 = sbr.rel (0) target = $region29
  $region28: #{lstm_lm_forward.6} parent=0 // pred_region
    _
  $region29: #{lstm_lm_forward.6} parent=0 // pred_fallthru
    _
  // Predicated region
  $region30: #{lstm_lm_forward.6} parent=0 // pred_check
    _
  $region31: #{lstm_lm_forward.6} parent=0 // pred_check_branch
    %1316 = sbr.rel (0) target = $region33
  $region32: #{lstm_lm_forward.6} parent=0 // pred_region
    _
  $region33: #{lstm_lm_forward.6} parent=0 // pred_fallthru
    _
  // Predicated region
  $region34: #{lstm_lm_forward.6} parent=0 // pred_check
    _
  $region35: #{lstm_lm_forward.6} parent=0 // pred_check_branch
    %1318 = sbr.rel (0) target = $region37
  $region36: #{lstm_lm_forward.6} parent=0 // pred_region
    _
  $region37: #{lstm_lm_forward.6} parent=0 // pred_fallthru
    _
  // Predicated region
  $region38: #{lstm_lm_forward.6} parent=0 // pred_check
    _
  $region39: #{lstm_lm_forward.6} parent=0 // pred_check_branch
    %1320 = sbr.rel (0) target = $region41
  $region40: #{lstm_lm_forward.6} parent=0 // pred_region
    _
  $region41: #{lstm_lm_forward.6} parent=0 // pred_fallthru
    _

</llo_original>
